<compile_context>
chip_gen: v7x
topology: tpu7x:2x2x1
jax: 0.10.0
libtpu: 0.0.40
codegen_flags: <defaults>
</compile_context>

<pallas_src>
import functools

import jax
import jax.numpy as jnp
from jax.experimental import pallas as pl
from jax.experimental.pallas import tpu as pltpu


# ----------------------------------------------------------------------------
# small helpers
# ----------------------------------------------------------------------------
def _round_up(x, m):
    return ((x + m - 1) // m) * m


def _choose_tm(m):
    """Lane-axis tile: big enough to amortize per-step overhead, >=2 tiles if possible."""
    m128 = _round_up(m, 128)
    if m128 <= 256:
        return m128
    half = _round_up((m128 + 1) // 2, 128)
    return min(1024, half)


# ----------------------------------------------------------------------------
# Pallas kernels: fused (weight @ patches) + bias [+ PReLU], lane-dense output
#   w_ref : (N, K)  bf16        p_ref : (K, TM) bf16
#   b_ref : (N, 1)  f32         alpha : (1,)    f32 in SMEM
#   o_ref : (N, TM) f32
# ----------------------------------------------------------------------------
def _matmul_bias_kernel(w_ref, p_ref, b_ref, o_ref):
    acc = jnp.dot(w_ref[...], p_ref[...], preferred_element_type=jnp.float32)
    o_ref[...] = (acc + b_ref[...]).astype(o_ref.dtype)


def _matmul_bias_prelu_kernel(w_ref, p_ref, b_ref, alpha_ref, o_ref):
    acc = jnp.dot(w_ref[...], p_ref[...], preferred_element_type=jnp.float32)
    acc = acc + b_ref[...]
    alpha = alpha_ref[0]
    o_ref[...] = jnp.where(acc >= 0.0, acc, alpha * acc).astype(o_ref.dtype)


def fused_matmul_bias_act(wmat, patches, bias_col, alpha):
    """wmat (N,K) bf16, patches (K,M), bias_col (N,1) f32, alpha scalar or None.
    Returns (N, M) f32."""
    n_rows, k = wmat.shape
    k2, m = patches.shape
    assert k == k2
    tm = _choose_tm(m)
    m_pad = _round_up(m, tm)
    p = patches.astype(jnp.bfloat16)
    if m_pad != m:
        p = jnp.pad(p, ((0, 0), (0, m_pad - m)))

    in_specs = [
        pl.BlockSpec((n_rows, k), lambda i: (0, 0)),     # weights (constant block)
        pl.BlockSpec((k, tm), lambda i: (0, i)),         # patch tile (lane-dense M)
        pl.BlockSpec((n_rows, 1), lambda i: (0, 0)),     # bias column (constant block)
    ]
    args = [wmat, p, bias_col]
    if alpha is not None:
        in_specs.append(pl.BlockSpec(memory_space=pltpu.MemorySpace.SMEM))
        args.append(jnp.asarray(alpha, jnp.float32).reshape(1))
        kern = _matmul_bias_prelu_kernel
    else:
        kern = _matmul_bias_kernel

    out = pl.pallas_call(
        kern,
        out_shape=jax.ShapeDtypeStruct((n_rows, m_pad), jnp.float32),
        grid_spec=pltpu.PrefetchScalarGridSpec(
            num_scalar_prefetch=0,
            grid=(m_pad // tm,),
            in_specs=in_specs,
            out_specs=pl.BlockSpec((n_rows, tm), lambda i: (0, i)),
        ),
        compiler_params=pltpu.CompilerParams(dimension_semantics=("parallel",)),
    )(*args)
    return out[:, :m]


# ----------------------------------------------------------------------------
# im2col glue (CBHW layout -> [K, M] patches, no transposes, lane-dense M)
# ----------------------------------------------------------------------------
def _im2col_kbm(x, kh, kw, stride, pad):
    """x: (C, B, H, W) -> patches (C*kh*kw, B*Ho*Wo). K order = (ci, i, j)."""
    C, B, H, W = x.shape
    xp = jnp.pad(x, ((0, 0), (0, 0), (pad, pad), (pad, pad)))
    Ho = (H + 2 * pad - kh) // stride + 1
    Wo = (W + 2 * pad - kw) // stride + 1
    taps = []
    for i in range(kh):
        for j in range(kw):
            taps.append(xp[:, :, i:i + stride * (Ho - 1) + 1:stride,
                               j:j + stride * (Wo - 1) + 1:stride])
    p = jnp.stack(taps, axis=1)                       # (C, kh*kw, B, Ho, Wo)
    return p.reshape(C * kh * kw, B * Ho * Wo), Ho, Wo


# ----------------------------------------------------------------------------
# parameter preparation (hoisted out of the forward path)
# ----------------------------------------------------------------------------
def _pad_rows(wmat, bias, n):
    n_pad = _round_up(n, 8)
    if n_pad != n:
        wmat = jnp.pad(wmat, ((0, n_pad - n), (0, 0)))
        bias = jnp.pad(bias, (0, n_pad - n))
    return wmat, bias, n_pad


def _prep_conv(w, b, alpha, stride, pad):
    """w: (C_out, C_in, kh, kw) like torch.nn.Conv2d."""
    C_out, C_in, kh, kw = w.shape
    wmat = w.reshape(C_out, C_in * kh * kw)
    wmat, bias, n_pad = _pad_rows(wmat, b, C_out)
    return dict(mode="conv",
                wmat=wmat.astype(jnp.bfloat16),
                bias=bias.reshape(n_pad, 1).astype(jnp.float32),
                alpha=None if alpha is None else jnp.asarray(alpha, jnp.float32),
                n=C_out, n_pad=n_pad, kh=kh, kw=kw, stride=stride, pad=pad)


def _prep_deconv(w, b, alpha, stride, pad):
    """w: (C_in, C_out, kh, kw) like torch.nn.ConvTranspose2d."""
    C_in, C_out, k, _ = w.shape
    w_t = jnp.transpose(w, (1, 0, 2, 3))              # (C_out, C_in, k, k)
    if stride == 2 and k % 2 == 0 and pad % 2 == 0:
        kk = k // 2
        sub_pad = kk - 1 - pad // 2
        mats, biases = [], []
        n_pad = _round_up(C_out, 8)
        for r in range(2):
            for c in range(2):
                # phase (r, c) sub-kernel: w_eff[a,b] = w[..., r + k-2-2a, c + k-2-2b]
                w_sub = jnp.flip(w_t[:, :, r::2, c::2], axis=(2, 3))
                m = w_sub.reshape(C_out, C_in * kk * kk)
                m, bb, _ = _pad_rows(m, b, C_out)
                mats.append(m)
                biases.append(bb)
        wmat = jnp.concatenate(mats, axis=0)           # (4*n_pad, C_in*kk*kk)
        bias = jnp.concatenate(biases, axis=0)
        return dict(mode="deconv_poly",
                    wmat=wmat.astype(jnp.bfloat16),
                    bias=bias.reshape(4 * n_pad, 1).astype(jnp.float32),
                    alpha=jnp.asarray(alpha, jnp.float32),
                    n=C_out, n_pad=n_pad, kh=kk, kw=kk, stride=1, pad=sub_pad)
    # TODO(synk): generic-stride deconv falls back to zero-dilated conv (not hit here).
    w_eq = jnp.flip(w_t, axis=(2, 3)).reshape(C_out, C_in * k * k)
    w_eq, bias, n_pad = _pad_rows(w_eq, b, C_out)
    return dict(mode="deconv_dilate",
                wmat=w_eq.astype(jnp.bfloat16),
                bias=bias.reshape(n_pad, 1).astype(jnp.float32),
                alpha=jnp.asarray(alpha, jnp.float32),
                n=C_out, n_pad=n_pad, kh=k, kw=k, stride=stride, pad=k - 1 - pad)


# ----------------------------------------------------------------------------
# conv / deconv application (x in CBHW layout)
# ----------------------------------------------------------------------------
def conv2d_apply(x, p):
    C, B, H, W = x.shape
    patches, Ho, Wo = _im2col_kbm(x.astype(jnp.bfloat16), p["kh"], p["kw"],
                                  p["stride"], p["pad"])
    out = fused_matmul_bias_act(p["wmat"], patches, p["bias"], p["alpha"])
    return out[:p["n"]].reshape(p["n"], B, Ho, Wo)


def deconv2d_apply(x, p):
    C, B, H, W = x.shape
    if p["mode"] == "deconv_poly":
        patches, Ho, Wo = _im2col_kbm(x.astype(jnp.bfloat16), p["kh"], p["kw"],
                                      1, p["pad"])
        out = fused_matmul_bias_act(p["wmat"], patches, p["bias"], p["alpha"])
        out = out.reshape(2, 2, p["n_pad"], B, Ho, Wo)[:, :, :p["n"]]
        # interleave the 4 output phases: (r, c, co, b, h, w) -> (co, b, 2h, 2w)
        return out.transpose(2, 3, 4, 0, 5, 1).reshape(p["n"], B, 2 * Ho, 2 * Wo)
    # zero-dilation fallback (generic stride)
    s = p["stride"]
    if s > 1:
        xd = jnp.zeros((C, B, (H - 1) * s + 1, (W - 1) * s + 1), x.dtype)
        xd = xd.at[:, :, ::s, ::s].set(x)
    else:
        xd = x
    patches, Ho, Wo = _im2col_kbm(xd.astype(jnp.bfloat16), p["kh"], p["kw"], 1, p["pad"])
    out = fused_matmul_bias_act(p["wmat"], patches, p["bias"], p["alpha"])
    return out[:p["n"]].reshape(p["n"], B, Ho, Wo)


# ----------------------------------------------------------------------------
# DBPN/PBPN blocks (activation='prelu', norm=None, up_mode='deconv')
# ----------------------------------------------------------------------------
def up_block(x, params):
    h0 = deconv2d_apply(x, params["u1"])
    l0 = conv2d_apply(h0, params["u2"])
    h1 = deconv2d_apply(l0 - x, params["u3"])
    return h1 + h0


def down_block(x, params):
    l0 = conv2d_apply(x, params["d1"])
    h0 = deconv2d_apply(l0, params["d2"])
    l1 = conv2d_apply(h0 - x, params["d3"])
    return l1 + l0


def pbpn_block_custom(x, params, num_expand, resized_img=None):
    """Mirrors PBPNBlock_Custom.forward (reconstruction=True). x is NCHW."""
    xc = jnp.transpose(x, (1, 0, 2, 3))               # NCHW -> CBHW once
    fmaps = [xc]
    for _ in range(num_expand):
        fmaps.append(up_block(fmaps[-1], params))

    # reconstructor: ConvBlock(base_filter, 3, 3, 1, 1, activation=None, norm=None)
    reconst = conv2d_apply(fmaps[num_expand], params["r"])
    if resized_img is not None:
        reconst = reconst + jnp.transpose(resized_img, (1, 0, 2, 3))

    for i in range(num_expand):
        if i == num_expand - 1:
            fmaps[0] = jnp.concatenate(
                [fmaps[0], down_block(fmaps[-1], params)], axis=0)
        else:
            fmaps.append(down_block(fmaps[-1], params))

    fmaps = [jnp.transpose(f, (1, 0, 2, 3)) for f in fmaps]   # CBHW -> NCHW
    reconst = jnp.transpose(reconst, (1, 0, 2, 3))
    return fmaps, reconst


# ----------------------------------------------------------------------------
# Deterministic parameter construction (raw torch-layout -> matmul-ready)
# ----------------------------------------------------------------------------
def init_params(key, base_filter, kernel, stride, padding):
    C, k = base_filter, kernel
    keys = jax.random.split(key, 16)
    scale = 0.05
    raw_w, raw_b, raw_a = {}, {}, {}
    for idx, name in enumerate(["u1", "u2", "u3", "d1", "d2", "d3"]):
        raw_w[name] = scale * jax.random.normal(keys[idx], (C, C, k, k), jnp.float32)
        raw_b[name] = 0.01 * jax.random.normal(keys[7 + idx], (C,), jnp.float32)
        raw_a[name] = jnp.float32(0.25)               # torch.nn.PReLU() default init
    r_w = scale * jax.random.normal(keys[6], (3, C, 3, 3), jnp.float32)
    r_b = jnp.zeros((3,), jnp.float32)

    params = {
        "u1": _prep_deconv(raw_w["u1"], raw_b["u1"], raw_a["u1"], stride, padding),
        "u2": _prep_conv(raw_w["u2"], raw_b["u2"], raw_a["u2"], stride, padding),
        "u3": _prep_deconv(raw_w["u3"], raw_b["u3"], raw_a["u3"], stride, padding),
        "d1": _prep_conv(raw_w["d1"], raw_b["d1"], raw_a["d1"], stride, padding),
        "d2": _prep_deconv(raw_w["d2"], raw_b["d2"], raw_a["d2"], stride, padding),
        "d3": _prep_conv(raw_w["d3"], raw_b["d3"], raw_a["d3"], stride, padding),
        "r":  _prep_conv(r_w, r_b, None, 1, 1),
    }
    return params


# ----------------------------------------------------------------------------
if __name__ == "__main__":
    base_filter = 8
    kernel, stride, padding = 6, 2, 2                 # 2x up / down projection
    num_expand = 2
    B, H, W = 2, 16, 16

    key = jax.random.PRNGKey(0)
    kx, kp = jax.random.split(key)
    x = jax.random.normal(kx, (B, base_filter, H, W), jnp.float32)
    params = init_params(kp, base_filter, kernel, stride, padding)

    fwd = jax.jit(lambda inp: pbpn_block_custom(inp, params, num_expand))
    feature_maps, reconst_img = fwd(x)

    for fm in feature_maps:
        jax.block_until_ready(fm)
    jax.block_until_ready(reconst_img)

    # sanity on shapes implied by the forward pass
    assert feature_maps[0].shape == (B, 2 * base_filter, H, W)          # channel concat
    assert feature_maps[1].shape == (B, base_filter, 2 * H, 2 * W)
    assert feature_maps[2].shape == (B, base_filter, 4 * H, 4 * W)
    assert feature_maps[3].shape == (B, base_filter, 2 * H, 2 * W)
    assert reconst_img.shape == (B, 3, 4 * H, 4 * W)

    print("KERNEL_OK")
</pallas_src>

<mosaic_0001>
module attributes {stable_mosaic.version = 11 : i64} {
  func.func @_matmul_bias_prelu_kernel(%arg0: i32, %arg1: memref<32x72xbf16, #tpu.memory_space<vmem>>, %arg2: memref<72x256xbf16, #tpu.memory_space<vmem>>, %arg3: memref<32x1xf32, #tpu.memory_space<vmem>>, %arg4: memref<1xf32, #tpu.memory_space<smem>>, %arg5: memref<32x256xf32, #tpu.memory_space<vmem>>) attributes {dimension_semantics = [#tpu.dimension_semantics<parallel>], iteration_bounds = array<i64: 2>, scalar_prefetch = 0 : i64, scratch_operands = 0 : i64, tpu.core_type = #tpu.core_type<tc>, window_params = [{pipeline_mode = #tpu.pipeline_mode<synchronous>, transform_indices = @transform_0, window_bounds = array<i64: 32, 72>}, {transform_indices = @transform_1, window_bounds = array<i64: 72, 256>}, {pipeline_mode = #tpu.pipeline_mode<synchronous>, transform_indices = @transform_2, window_bounds = array<i64: 32, 1>}, {transform_indices = @transform_3, window_bounds = array<i64: 1>}, {transform_indices = @transform_4, window_bounds = array<i64: 32, 256>}]} {
    %c0 = arith.constant 0 : index
    %c0_0 = arith.constant 0 : index
    %0 = vector.load %arg1[%c0, %c0_0] : memref<32x72xbf16, #tpu.memory_space<vmem>>, vector<32x72xbf16>
    %c0_1 = arith.constant 0 : index
    %c0_2 = arith.constant 0 : index
    %1 = vector.load %arg2[%c0_1, %c0_2] : memref<72x256xbf16, #tpu.memory_space<vmem>>, vector<72x256xbf16>
    %cst = arith.constant dense<0.000000e+00> : vector<32x256xf32>
    %2 = tpu.matmul %0, %1, %cst {dimension_numbers = #tpu.dot_dimension_numbers<[1], [0], [0], [1], [0, 0, 1, 1], [], []>} : vector<32x72xbf16>, vector<72x256xbf16>, vector<32x256xf32> -> vector<32x256xf32>
    %c0_3 = arith.constant 0 : index
    %c0_4 = arith.constant 0 : index
    %3 = vector.load %arg3[%c0_3, %c0_4] : memref<32x1xf32, #tpu.memory_space<vmem>>, vector<32x1xf32>
    %4 = vector.broadcast %3 : vector<32x1xf32> to vector<32x256xf32>
    %5 = arith.addf %2, %4 : vector<32x256xf32>
    %c0_5 = arith.constant 0 : index
    %6 = memref.load %arg4[%c0_5] : memref<1xf32, #tpu.memory_space<smem>>
    %cst_6 = arith.constant 0.000000e+00 : f32
    %7 = vector.broadcast %cst_6 : f32 to vector<32x256xf32>
    %8 = arith.cmpf oge, %5, %7 : vector<32x256xf32>
    %9 = vector.broadcast %6 : f32 to vector<32x256xf32>
    %10 = arith.mulf %9, %5 : vector<32x256xf32>
    %11 = arith.select %8, %5, %10 : vector<32x256xi1>, vector<32x256xf32>
    %c0_7 = arith.constant 0 : index
    %c0_8 = arith.constant 0 : index
    %12 = vector.load %arg5[%c0_7, %c0_8] : memref<32x256xf32, #tpu.memory_space<vmem>>, vector<32x256xf32>
    tpu.vector_store %arg5[%c0_7, %c0_8], %11 {strides = array<i32>} : memref<32x256xf32, #tpu.memory_space<vmem>>, vector<32x256xf32>,
    return
  }
  func.func @transform_0(%arg0: i32) -> (i32, i32) {
    %c0_i32 = arith.constant 0 : i32
    %c0_i32_0 = arith.constant 0 : i32
    %c0_i32_1 = arith.constant 0 : i32
    return %c0_i32, %c0_i32_0 : i32, i32
  }
  func.func @transform_1(%arg0: i32) -> (i32, i32) {
    %c0_i32 = arith.constant 0 : i32
    %c0_i32_0 = arith.constant 0 : i32
    return %c0_i32, %arg0 : i32, i32
  }
  func.func @transform_2(%arg0: i32) -> (i32, i32) {
    %c0_i32 = arith.constant 0 : i32
    %c0_i32_0 = arith.constant 0 : i32
    %c0_i32_1 = arith.constant 0 : i32
    return %c0_i32, %c0_i32_0 : i32, i32
  }
  func.func @transform_3(%arg0: i32) -> i32 {
    %c0_i32 = arith.constant 0 : i32
    %c0_i32_0 = arith.constant 0 : i32
    return %c0_i32 : i32
  }
  func.func @transform_4(%arg0: i32) -> (i32, i32) {
    %c0_i32 = arith.constant 0 : i32
    %c0_i32_0 = arith.constant 0 : i32
    return %c0_i32, %arg0 : i32, i32
  }
}

module attributes {stable_mosaic.version = 11 : i64} {
  func.func @_matmul_bias_prelu_kernel(%arg0: i32, %arg1: memref<8x288xbf16, #tpu.memory_space<vmem>>, %arg2: memref<288x256xbf16, #tpu.memory_space<vmem>>, %arg3: memref<8x1xf32, #tpu.memory_space<vmem>>, %arg4: memref<1xf32, #tpu.memory_space<smem>>, %arg5: memref<8x256xf32, #tpu.memory_space<vmem>>) attributes {dimension_semantics = [#tpu.dimension_semantics<parallel>], iteration_bounds = array<i64: 2>, scalar_prefetch = 0 : i64, scratch_operands = 0 : i64, tpu.core_type = #tpu.core_type<tc>, window_params = [{pipeline_mode = #tpu.pipeline_mode<synchronous>, transform_indices = @transform_0, window_bounds = array<i64: 8, 288>}, {transform_indices = @transform_1, window_bounds = array<i64: 288, 256>}, {pipeline_mode = #tpu.pipeline_mode<synchronous>, transform_indices = @transform_2, window_bounds = array<i64: 8, 1>}, {transform_indices = @transform_3, window_bounds = array<i64: 1>}, {transform_indices = @transform_4, window_bounds = array<i64: 8, 256>}]} {
    %c0 = arith.constant 0 : index
    %c0_0 = arith.constant 0 : index
    %0 = vector.load %arg1[%c0, %c0_0] : memref<8x288xbf16, #tpu.memory_space<vmem>>, vector<8x288xbf16>
    %c0_1 = arith.constant 0 : index
    %c0_2 = arith.constant 0 : index
    %1 = vector.load %arg2[%c0_1, %c0_2] : memref<288x256xbf16, #tpu.memory_space<vmem>>, vector<288x256xbf16>
    %cst = arith.constant dense<0.000000e+00> : vector<8x256xf32>
    %2 = tpu.matmul %0, %1, %cst {dimension_numbers = #tpu.dot_dimension_numbers<[1], [0], [0], [1], [0, 0, 1, 1], [], []>} : vector<8x288xbf16>, vector<288x256xbf16>, vector<8x256xf32> -> vector<8x256xf32>
    %c0_3 = arith.constant 0 : index
    %c0_4 = arith.constant 0 : index
    %3 = vector.load %arg3[%c0_3, %c0_4] : memref<8x1xf32, #tpu.memory_space<vmem>>, vector<8x1xf32>
    %4 = vector.broadcast %3 : vector<8x1xf32> to vector<8x256xf32>
    %5 = arith.addf %2, %4 : vector<8x256xf32>
    %c0_5 = arith.constant 0 : index
    %6 = memref.load %arg4[%c0_5] : memref<1xf32, #tpu.memory_space<smem>>
    %cst_6 = arith.constant 0.000000e+00 : f32
    %7 = vector.broadcast %cst_6 : f32 to vector<8x256xf32>
    %8 = arith.cmpf oge, %5, %7 : vector<8x256xf32>
    %9 = vector.broadcast %6 : f32 to vector<8x256xf32>
    %10 = arith.mulf %9, %5 : vector<8x256xf32>
    %11 = arith.select %8, %5, %10 : vector<8x256xi1>, vector<8x256xf32>
    %c0_7 = arith.constant 0 : index
    %c0_8 = arith.constant 0 : index
    %12 = vector.load %arg5[%c0_7, %c0_8] : memref<8x256xf32, #tpu.memory_space<vmem>>, vector<8x256xf32>
    tpu.vector_store %arg5[%c0_7, %c0_8], %11 {strides = array<i32>} : memref<8x256xf32, #tpu.memory_space<vmem>>, vector<8x256xf32>,
    return
  }
  func.func @transform_0(%arg0: i32) -> (i32, i32) {
    %c0_i32 = arith.constant 0 : i32
    %c0_i32_0 = arith.constant 0 : i32
    %c0_i32_1 = arith.constant 0 : i32
    return %c0_i32, %c0_i32_0 : i32, i32
  }
  func.func @transform_1(%arg0: i32) -> (i32, i32) {
    %c0_i32 = arith.constant 0 : i32
    %c0_i32_0 = arith.constant 0 : i32
    return %c0_i32, %arg0 : i32, i32
  }
  func.func @transform_2(%arg0: i32) -> (i32, i32) {
    %c0_i32 = arith.constant 0 : i32
    %c0_i32_0 = arith.constant 0 : i32
    %c0_i32_1 = arith.constant 0 : i32
    return %c0_i32, %c0_i32_0 : i32, i32
  }
  func.func @transform_3(%arg0: i32) -> i32 {
    %c0_i32 = arith.constant 0 : i32
    %c0_i32_0 = arith.constant 0 : i32
    return %c0_i32 : i32
  }
  func.func @transform_4(%arg0: i32) -> (i32, i32) {
    %c0_i32 = arith.constant 0 : i32
    %c0_i32_0 = arith.constant 0 : i32
    return %c0_i32, %arg0 : i32, i32
  }
}

module attributes {stable_mosaic.version = 11 : i64} {
  func.func @_matmul_bias_prelu_kernel(%arg0: i32, %arg1: memref<32x72xbf16, #tpu.memory_space<vmem>>, %arg2: memref<72x256xbf16, #tpu.memory_space<vmem>>, %arg3: memref<32x1xf32, #tpu.memory_space<vmem>>, %arg4: memref<1xf32, #tpu.memory_space<smem>>, %arg5: memref<32x256xf32, #tpu.memory_space<vmem>>) attributes {dimension_semantics = [#tpu.dimension_semantics<parallel>], iteration_bounds = array<i64: 2>, scalar_prefetch = 0 : i64, scratch_operands = 0 : i64, tpu.core_type = #tpu.core_type<tc>, window_params = [{pipeline_mode = #tpu.pipeline_mode<synchronous>, transform_indices = @transform_0, window_bounds = array<i64: 32, 72>}, {transform_indices = @transform_1, window_bounds = array<i64: 72, 256>}, {pipeline_mode = #tpu.pipeline_mode<synchronous>, transform_indices = @transform_2, window_bounds = array<i64: 32, 1>}, {transform_indices = @transform_3, window_bounds = array<i64: 1>}, {transform_indices = @transform_4, window_bounds = array<i64: 32, 256>}]} {
    %c0 = arith.constant 0 : index
    %c0_0 = arith.constant 0 : index
    %0 = vector.load %arg1[%c0, %c0_0] : memref<32x72xbf16, #tpu.memory_space<vmem>>, vector<32x72xbf16>
    %c0_1 = arith.constant 0 : index
    %c0_2 = arith.constant 0 : index
    %1 = vector.load %arg2[%c0_1, %c0_2] : memref<72x256xbf16, #tpu.memory_space<vmem>>, vector<72x256xbf16>
    %cst = arith.constant dense<0.000000e+00> : vector<32x256xf32>
    %2 = tpu.matmul %0, %1, %cst {dimension_numbers = #tpu.dot_dimension_numbers<[1], [0], [0], [1], [0, 0, 1, 1], [], []>} : vector<32x72xbf16>, vector<72x256xbf16>, vector<32x256xf32> -> vector<32x256xf32>
    %c0_3 = arith.constant 0 : index
    %c0_4 = arith.constant 0 : index
    %3 = vector.load %arg3[%c0_3, %c0_4] : memref<32x1xf32, #tpu.memory_space<vmem>>, vector<32x1xf32>
    %4 = vector.broadcast %3 : vector<32x1xf32> to vector<32x256xf32>
    %5 = arith.addf %2, %4 : vector<32x256xf32>
    %c0_5 = arith.constant 0 : index
    %6 = memref.load %arg4[%c0_5] : memref<1xf32, #tpu.memory_space<smem>>
    %cst_6 = arith.constant 0.000000e+00 : f32
    %7 = vector.broadcast %cst_6 : f32 to vector<32x256xf32>
    %8 = arith.cmpf oge, %5, %7 : vector<32x256xf32>
    %9 = vector.broadcast %6 : f32 to vector<32x256xf32>
    %10 = arith.mulf %9, %5 : vector<32x256xf32>
    %11 = arith.select %8, %5, %10 : vector<32x256xi1>, vector<32x256xf32>
    %c0_7 = arith.constant 0 : index
    %c0_8 = arith.constant 0 : index
    %12 = vector.load %arg5[%c0_7, %c0_8] : memref<32x256xf32, #tpu.memory_space<vmem>>, vector<32x256xf32>
    tpu.vector_store %arg5[%c0_7, %c0_8], %11 {strides = array<i32>} : memref<32x256xf32, #tpu.memory_space<vmem>>, vector<32x256xf32>,
    return
  }
  func.func @transform_0(%arg0: i32) -> (i32, i32) {
    %c0_i32 = arith.constant 0 : i32
    %c0_i32_0 = arith.constant 0 : i32
    %c0_i32_1 = arith.constant 0 : i32
    return %c0_i32, %c0_i32_0 : i32, i32
  }
  func.func @transform_1(%arg0: i32) -> (i32, i32) {
    %c0_i32 = arith.constant 0 : i32
    %c0_i32_0 = arith.constant 0 : i32
    return %c0_i32, %arg0 : i32, i32
  }
  func.func @transform_2(%arg0: i32) -> (i32, i32) {
    %c0_i32 = arith.constant 0 : i32
    %c0_i32_0 = arith.constant 0 : i32
    %c0_i32_1 = arith.constant 0 : i32
    return %c0_i32, %c0_i32_0 : i32, i32
  }
  func.func @transform_3(%arg0: i32) -> i32 {
    %c0_i32 = arith.constant 0 : i32
    %c0_i32_0 = arith.constant 0 : i32
    return %c0_i32 : i32
  }
  func.func @transform_4(%arg0: i32) -> (i32, i32) {
    %c0_i32 = arith.constant 0 : i32
    %c0_i32_0 = arith.constant 0 : i32
    return %c0_i32, %arg0 : i32, i32
  }
}

module attributes {stable_mosaic.version = 11 : i64} {
  func.func @_matmul_bias_prelu_kernel(%arg0: i32, %arg1: memref<32x72xbf16, #tpu.memory_space<vmem>>, %arg2: memref<72x1024xbf16, #tpu.memory_space<vmem>>, %arg3: memref<32x1xf32, #tpu.memory_space<vmem>>, %arg4: memref<1xf32, #tpu.memory_space<smem>>, %arg5: memref<32x1024xf32, #tpu.memory_space<vmem>>) attributes {dimension_semantics = [#tpu.dimension_semantics<parallel>], iteration_bounds = array<i64: 2>, scalar_prefetch = 0 : i64, scratch_operands = 0 : i64, tpu.core_type = #tpu.core_type<tc>, window_params = [{pipeline_mode = #tpu.pipeline_mode<synchronous>, transform_indices = @transform_0, window_bounds = array<i64: 32, 72>}, {transform_indices = @transform_1, window_bounds = array<i64: 72, 1024>}, {pipeline_mode = #tpu.pipeline_mode<synchronous>, transform_indices = @transform_2, window_bounds = array<i64: 32, 1>}, {transform_indices = @transform_3, window_bounds = array<i64: 1>}, {transform_indices = @transform_4, window_bounds = array<i64: 32, 1024>}]} {
    %c0 = arith.constant 0 : index
    %c0_0 = arith.constant 0 : index
    %0 = vector.load %arg1[%c0, %c0_0] : memref<32x72xbf16, #tpu.memory_space<vmem>>, vector<32x72xbf16>
    %c0_1 = arith.constant 0 : index
    %c0_2 = arith.constant 0 : index
    %1 = vector.load %arg2[%c0_1, %c0_2] : memref<72x1024xbf16, #tpu.memory_space<vmem>>, vector<72x1024xbf16>
    %cst = arith.constant dense<0.000000e+00> : vector<32x1024xf32>
    %2 = tpu.matmul %0, %1, %cst {dimension_numbers = #tpu.dot_dimension_numbers<[1], [0], [0], [1], [0, 0, 1, 1], [], []>} : vector<32x72xbf16>, vector<72x1024xbf16>, vector<32x1024xf32> -> vector<32x1024xf32>
    %c0_3 = arith.constant 0 : index
    %c0_4 = arith.constant 0 : index
    %3 = vector.load %arg3[%c0_3, %c0_4] : memref<32x1xf32, #tpu.memory_space<vmem>>, vector<32x1xf32>
    %4 = vector.broadcast %3 : vector<32x1xf32> to vector<32x1024xf32>
    %5 = arith.addf %2, %4 : vector<32x1024xf32>
    %c0_5 = arith.constant 0 : index
    %6 = memref.load %arg4[%c0_5] : memref<1xf32, #tpu.memory_space<smem>>
    %cst_6 = arith.constant 0.000000e+00 : f32
    %7 = vector.broadcast %cst_6 : f32 to vector<32x1024xf32>
    %8 = arith.cmpf oge, %5, %7 : vector<32x1024xf32>
    %9 = vector.broadcast %6 : f32 to vector<32x1024xf32>
    %10 = arith.mulf %9, %5 : vector<32x1024xf32>
    %11 = arith.select %8, %5, %10 : vector<32x1024xi1>, vector<32x1024xf32>
    %c0_7 = arith.constant 0 : index
    %c0_8 = arith.constant 0 : index
    %12 = vector.load %arg5[%c0_7, %c0_8] : memref<32x1024xf32, #tpu.memory_space<vmem>>, vector<32x1024xf32>
    tpu.vector_store %arg5[%c0_7, %c0_8], %11 {strides = array<i32>} : memref<32x1024xf32, #tpu.memory_space<vmem>>, vector<32x1024xf32>,
    return
  }
  func.func @transform_0(%arg0: i32) -> (i32, i32) {
    %c0_i32 = arith.constant 0 : i32
    %c0_i32_0 = arith.constant 0 : i32
    %c0_i32_1 = arith.constant 0 : i32
    return %c0_i32, %c0_i32_0 : i32, i32
  }
  func.func @transform_1(%arg0: i32) -> (i32, i32) {
    %c0_i32 = arith.constant 0 : i32
    %c0_i32_0 = arith.constant 0 : i32
    return %c0_i32, %arg0 : i32, i32
  }
  func.func @transform_2(%arg0: i32) -> (i32, i32) {
    %c0_i32 = arith.constant 0 : i32
    %c0_i32_0 = arith.constant 0 : i32
    %c0_i32_1 = arith.constant 0 : i32
    return %c0_i32, %c0_i32_0 : i32, i32
  }
  func.func @transform_3(%arg0: i32) -> i32 {
    %c0_i32 = arith.constant 0 : i32
    %c0_i32_0 = arith.constant 0 : i32
    return %c0_i32 : i32
  }
  func.func @transform_4(%arg0: i32) -> (i32, i32) {
    %c0_i32 = arith.constant 0 : i32
    %c0_i32_0 = arith.constant 0 : i32
    return %c0_i32, %arg0 : i32, i32
  }
}

module attributes {stable_mosaic.version = 11 : i64} {
  func.func @_matmul_bias_prelu_kernel(%arg0: i32, %arg1: memref<8x288xbf16, #tpu.memory_space<vmem>>, %arg2: memref<288x1024xbf16, #tpu.memory_space<vmem>>, %arg3: memref<8x1xf32, #tpu.memory_space<vmem>>, %arg4: memref<1xf32, #tpu.memory_space<smem>>, %arg5: memref<8x1024xf32, #tpu.memory_space<vmem>>) attributes {dimension_semantics = [#tpu.dimension_semantics<parallel>], iteration_bounds = array<i64: 2>, scalar_prefetch = 0 : i64, scratch_operands = 0 : i64, tpu.core_type = #tpu.core_type<tc>, window_params = [{pipeline_mode = #tpu.pipeline_mode<synchronous>, transform_indices = @transform_0, window_bounds = array<i64: 8, 288>}, {transform_indices = @transform_1, window_bounds = array<i64: 288, 1024>}, {pipeline_mode = #tpu.pipeline_mode<synchronous>, transform_indices = @transform_2, window_bounds = array<i64: 8, 1>}, {transform_indices = @transform_3, window_bounds = array<i64: 1>}, {transform_indices = @transform_4, window_bounds = array<i64: 8, 1024>}]} {
    %c0 = arith.constant 0 : index
    %c0_0 = arith.constant 0 : index
    %0 = vector.load %arg1[%c0, %c0_0] : memref<8x288xbf16, #tpu.memory_space<vmem>>, vector<8x288xbf16>
    %c0_1 = arith.constant 0 : index
    %c0_2 = arith.constant 0 : index
    %1 = vector.load %arg2[%c0_1, %c0_2] : memref<288x1024xbf16, #tpu.memory_space<vmem>>, vector<288x1024xbf16>
    %cst = arith.constant dense<0.000000e+00> : vector<8x1024xf32>
    %2 = tpu.matmul %0, %1, %cst {dimension_numbers = #tpu.dot_dimension_numbers<[1], [0], [0], [1], [0, 0, 1, 1], [], []>} : vector<8x288xbf16>, vector<288x1024xbf16>, vector<8x1024xf32> -> vector<8x1024xf32>
    %c0_3 = arith.constant 0 : index
    %c0_4 = arith.constant 0 : index
    %3 = vector.load %arg3[%c0_3, %c0_4] : memref<8x1xf32, #tpu.memory_space<vmem>>, vector<8x1xf32>
    %4 = vector.broadcast %3 : vector<8x1xf32> to vector<8x1024xf32>
    %5 = arith.addf %2, %4 : vector<8x1024xf32>
    %c0_5 = arith.constant 0 : index
    %6 = memref.load %arg4[%c0_5] : memref<1xf32, #tpu.memory_space<smem>>
    %cst_6 = arith.constant 0.000000e+00 : f32
    %7 = vector.broadcast %cst_6 : f32 to vector<8x1024xf32>
    %8 = arith.cmpf oge, %5, %7 : vector<8x1024xf32>
    %9 = vector.broadcast %6 : f32 to vector<8x1024xf32>
    %10 = arith.mulf %9, %5 : vector<8x1024xf32>
    %11 = arith.select %8, %5, %10 : vector<8x1024xi1>, vector<8x1024xf32>
    %c0_7 = arith.constant 0 : index
    %c0_8 = arith.constant 0 : index
    %12 = vector.load %arg5[%c0_7, %c0_8] : memref<8x1024xf32, #tpu.memory_space<vmem>>, vector<8x1024xf32>
    tpu.vector_store %arg5[%c0_7, %c0_8], %11 {strides = array<i32>} : memref<8x1024xf32, #tpu.memory_space<vmem>>, vector<8x1024xf32>,
    return
  }
  func.func @transform_0(%arg0: i32) -> (i32, i32) {
    %c0_i32 = arith.constant 0 : i32
    %c0_i32_0 = arith.constant 0 : i32
    %c0_i32_1 = arith.constant 0 : i32
    return %c0_i32, %c0_i32_0 : i32, i32
  }
  func.func @transform_1(%arg0: i32) -> (i32, i32) {
    %c0_i32 = arith.constant 0 : i32
    %c0_i32_0 = arith.constant 0 : i32
    return %c0_i32, %arg0 : i32, i32
  }
  func.func @transform_2(%arg0: i32) -> (i32, i32) {
    %c0_i32 = arith.constant 0 : i32
    %c0_i32_0 = arith.constant 0 : i32
    %c0_i32_1 = arith.constant 0 : i32
    return %c0_i32, %c0_i32_0 : i32, i32
  }
  func.func @transform_3(%arg0: i32) -> i32 {
    %c0_i32 = arith.constant 0 : i32
    %c0_i32_0 = arith.constant 0 : i32
    return %c0_i32 : i32
  }
  func.func @transform_4(%arg0: i32) -> (i32, i32) {
    %c0_i32 = arith.constant 0 : i32
    %c0_i32_0 = arith.constant 0 : i32
    return %c0_i32, %arg0 : i32, i32
  }
}

module attributes {stable_mosaic.version = 11 : i64} {
  func.func @_matmul_bias_kernel(%arg0: i32, %arg1: memref<8x72xbf16, #tpu.memory_space<vmem>>, %arg2: memref<72x1024xbf16, #tpu.memory_space<vmem>>, %arg3: memref<8x1xf32, #tpu.memory_space<vmem>>, %arg4: memref<8x1024xf32, #tpu.memory_space<vmem>>) attributes {dimension_semantics = [#tpu.dimension_semantics<parallel>], iteration_bounds = array<i64: 8>, scalar_prefetch = 0 : i64, scratch_operands = 0 : i64, tpu.core_type = #tpu.core_type<tc>, window_params = [{pipeline_mode = #tpu.pipeline_mode<synchronous>, transform_indices = @transform_0, window_bounds = array<i64: 8, 72>}, {transform_indices = @transform_1, window_bounds = array<i64: 72, 1024>}, {pipeline_mode = #tpu.pipeline_mode<synchronous>, transform_indices = @transform_2, window_bounds = array<i64: 8, 1>}, {transform_indices = @transform_3, window_bounds = array<i64: 8, 1024>}]} {
    %c0 = arith.constant 0 : index
    %c0_0 = arith.constant 0 : index
    %0 = vector.load %arg1[%c0, %c0_0] : memref<8x72xbf16, #tpu.memory_space<vmem>>, vector<8x72xbf16>
    %c0_1 = arith.constant 0 : index
    %c0_2 = arith.constant 0 : index
    %1 = vector.load %arg2[%c0_1, %c0_2] : memref<72x1024xbf16, #tpu.memory_space<vmem>>, vector<72x1024xbf16>
    %cst = arith.constant dense<0.000000e+00> : vector<8x1024xf32>
    %2 = tpu.matmul %0, %1, %cst {dimension_numbers = #tpu.dot_dimension_numbers<[1], [0], [0], [1], [0, 0, 1, 1], [], []>} : vector<8x72xbf16>, vector<72x1024xbf16>, vector<8x1024xf32> -> vector<8x1024xf32>
    %c0_3 = arith.constant 0 : index
    %c0_4 = arith.constant 0 : index
    %3 = vector.load %arg3[%c0_3, %c0_4] : memref<8x1xf32, #tpu.memory_space<vmem>>, vector<8x1xf32>
    %4 = vector.broadcast %3 : vector<8x1xf32> to vector<8x1024xf32>
    %5 = arith.addf %2, %4 : vector<8x1024xf32>
    %c0_5 = arith.constant 0 : index
    %c0_6 = arith.constant 0 : index
    %6 = vector.load %arg4[%c0_5, %c0_6] : memref<8x1024xf32, #tpu.memory_space<vmem>>, vector<8x1024xf32>
    tpu.vector_store %arg4[%c0_5, %c0_6], %5 {strides = array<i32>} : memref<8x1024xf32, #tpu.memory_space<vmem>>, vector<8x1024xf32>,
    return
  }
  func.func @transform_0(%arg0: i32) -> (i32, i32) {
    %c0_i32 = arith.constant 0 : i32
    %c0_i32_0 = arith.constant 0 : i32
    %c0_i32_1 = arith.constant 0 : i32
    return %c0_i32, %c0_i32_0 : i32, i32
  }
  func.func @transform_1(%arg0: i32) -> (i32, i32) {
    %c0_i32 = arith.constant 0 : i32
    %c0_i32_0 = arith.constant 0 : i32
    return %c0_i32, %arg0 : i32, i32
  }
  func.func @transform_2(%arg0: i32) -> (i32, i32) {
    %c0_i32 = arith.constant 0 : i32
    %c0_i32_0 = arith.constant 0 : i32
    %c0_i32_1 = arith.constant 0 : i32
    return %c0_i32, %c0_i32_0 : i32, i32
  }
  func.func @transform_3(%arg0: i32) -> (i32, i32) {
    %c0_i32 = arith.constant 0 : i32
    %c0_i32_0 = arith.constant 0 : i32
    return %c0_i32, %arg0 : i32, i32
  }
}

</mosaic_0001>

<llo_original>
// kernel: _lambda_.13
$region0: #{_lambda_.13}
  #allocation0 [shape = 'u32[]', space=smem, size = 0x4, offset = 0x4, fixed_abs, tag = 'smem constant byte address 0x4 - core index']
  #allocation1 [shape = 'u32[144,128]{1,0:T(1,128)}', space=vmem, size = 0x12000, scoped, tag = 'internal scratch']
  #allocation2 [shape = 'f32[1]{0:T(128)S(6)}', space=smem, size = 0x200, scoped, tag = 'scoped memory for _lambda_.13']
  %s0 = inlined_call_operand.hbm [shape: bf16[32,72], index: 0, kind: input, shape index: {}]
  %s1 = inlined_call_operand.vmem [shape: bf16[72,512], index: 1, kind: input, shape index: {}]
  %s2 = inlined_call_operand.hbm [shape: f32[32,1], index: 2, kind: input, shape index: {}]
  %s3 = inlined_call_operand.<no memory space> [shape: f32[1], index: 3, kind: input, shape index: {}]
  %s4 = inlined_call_operand.vmem [shape: f32[32,512], index: 4, kind: output, shape index: {}]
  %s5 = sld [smem:[#allocation0]]
  $region114: #{_lambda_.13} parent=0
    _
  %s7 = ssub.s32 1, %s5
  %s8 = scalar_select 0, %s7, %s5
  %9 = sst [smem:[#allocation2]] %s3
  $region1: #{_lambda_.13} parent=0
    #allocation3 [shape = 'u8[8192]{0}', space=vmem, size = 0x2000, scoped, tag = 'input window, operand 0, single buffered']
    #allocation4 [shape = 's32[2]{0}', space=sflag, size = 0x8, scoped, tag = 'scoped memory for _lambda_.13']
    #allocation5 [shape = 'u8[73728]{0}', space=vmem, size = 0x12000, scoped, tag = 'input window, operand 1']
    #allocation6 [shape = 'u8[16384]{0}', space=vmem, size = 0x4000, scoped, tag = 'input window, operand 2, single buffered']
    #allocation7 [shape = 's32[1]{0}', space=sflag, size = 0x4, scoped, tag = 'scoped memory for _lambda_.13']
    #allocation8 [shape = 'u8[65536]{0}', space=vmem, size = 0x10000, scoped, tag = 'output window, operand 0']
    %10 = vsyncpa [#allocation4], 0
    %11 = vsyncpa [#allocation7], 0
    loop: start=0, step=1, limit=4
    $region2: #{_lambda_.13} parent=1 // loop_pre_header
      _
    $region3: #{_lambda_.13} parent=1 // loop_header
      %s13 = sphi 0, %s17
      %p14 = scmp.ge.s32.totalorder %s13, 4
      %s21 = sphi 0, %s21
      %s23 = sphi 0, %s21
      %s24 = sphi 0, %s23
      %s38 = sphi 0, %s24
      %s44 = sphi 0, %s46
      %s47 = sphi 0, %s44
      %s48 = sphi 0, %s47
      %s64 = sphi 0, %s48
      %s68 = sphi 0, %s68
      %s70 = sphi 0, %s68
      %s71 = sphi 0, %s70
      %s85 = sphi 0, %s71
      %s89 = sphi 0, %s89
      %s91 = sphi 0, %s89
      %s92 = sphi 0, %s91
      %s106 = sphi 0, %s92
      %s112 = sphi 0, %s114
      %s115 = sphi 0, %s112
      %s116 = sphi 0, %s115
      %s132 = sphi 0, %s116
    $region4: #{_lambda_.13} parent=1 // loop_header_branch
      %16 = sbr.rel (%p14) target = $region8
    $region5: #{_lambda_.13} parent=1 // loop_body
      %s18 = ssub.s32 %s13, 1
      %s19 = ssub.s32 %s13, 2
      %s20 = sadd.s32 %s13, 1
      %s22 = sadd.s32 %s21, 1
      %p25 = scmp.eq.s32.totalorder %s13, 1
      %p26 = scmp.ne.s32.totalorder %s21, %s23
      %p27 = scmp.eq.s32.totalorder %s13, 0
      %p28 = por %p26, %p27
      %p29 = scmp.ne.s32.totalorder %s21, %s23
      %p30 = scmp.eq.s32.totalorder %s18, 1
      %p31 = por %p29, %p30
      %p32 = scmp.ne.s32.totalorder %s23, %s24
      %p33 = scmp.eq.s32.totalorder %s18, 0
      %p34 = por %p32, %p33
      %p35 = scmp.ne.s32.totalorder %s23, %s24
      %p36 = scmp.eq.s32.totalorder %s19, 1
      %p37 = por %p35, %p36
      %p39 = scmp.ne.s32.totalorder %s24, %s38
      %p40 = scmp.eq.s32.totalorder %s19, 0
      %p41 = por %p39, %p40
      %s42 = ssub.s32 %s13, %s20
      %p43 = scmp.eq.s32.totalorder %s42, 0
      %s45 = sadd.s32 %s44, 1
      %s46 = scalar_select %p43, %s44, %s45
      %p49 = pneg %p43
      %p50 = scmp.eq.s32.totalorder %s13, 1
      %p51 = por %p49, %p50
      %p52 = scmp.ne.s32.totalorder %s44, %s47
      %p53 = scmp.eq.s32.totalorder %s13, 0
      %p54 = por %p52, %p53
      %p55 = scmp.ne.s32.totalorder %s44, %s47
      %p56 = scmp.eq.s32.totalorder %s18, 1
      %p57 = por %p55, %p56
      %p58 = scmp.ne.s32.totalorder %s47, %s48
      %p59 = scmp.eq.s32.totalorder %s18, 0
      %p60 = por %p58, %p59
      %p61 = scmp.ne.s32.totalorder %s47, %s48
      %p62 = scmp.eq.s32.totalorder %s19, 1
      %p63 = por %p61, %p62
      %p65 = scmp.ne.s32.totalorder %s48, %s64
      %p66 = scmp.eq.s32.totalorder %s19, 0
      %p67 = por %p65, %p66
      %s69 = sadd.s32 %s68, 1
      %p72 = scmp.eq.s32.totalorder %s13, 1
      %p73 = scmp.ne.s32.totalorder %s68, %s70
      %p74 = scmp.eq.s32.totalorder %s13, 0
      %p75 = por %p73, %p74
      %p76 = scmp.ne.s32.totalorder %s68, %s70
      %p77 = scmp.eq.s32.totalorder %s18, 1
      %p78 = por %p76, %p77
      %p79 = scmp.ne.s32.totalorder %s70, %s71
      %p80 = scmp.eq.s32.totalorder %s18, 0
      %p81 = por %p79, %p80
      %p82 = scmp.ne.s32.totalorder %s70, %s71
      %p83 = scmp.eq.s32.totalorder %s19, 1
      %p84 = por %p82, %p83
      %p86 = scmp.ne.s32.totalorder %s71, %s85
      %p87 = scmp.eq.s32.totalorder %s19, 0
      %p88 = por %p86, %p87
      %s90 = sadd.s32 %s89, 1
      %p93 = scmp.eq.s32.totalorder %s13, 1
      %p94 = scmp.ne.s32.totalorder %s89, %s91
      %p95 = scmp.eq.s32.totalorder %s13, 0
      %p96 = por %p94, %p95
      %p97 = scmp.ne.s32.totalorder %s89, %s91
      %p98 = scmp.eq.s32.totalorder %s18, 1
      %p99 = por %p97, %p98
      %p100 = scmp.ne.s32.totalorder %s91, %s92
      %p101 = scmp.eq.s32.totalorder %s18, 0
      %p102 = por %p100, %p101
      %p103 = scmp.ne.s32.totalorder %s91, %s92
      %p104 = scmp.eq.s32.totalorder %s19, 1
      %p105 = por %p103, %p104
      %p107 = scmp.ne.s32.totalorder %s92, %s106
      %p108 = scmp.eq.s32.totalorder %s19, 0
      %p109 = por %p107, %p108
      %s110 = ssub.s32 %s13, %s20
      %p111 = scmp.eq.s32.totalorder %s110, 0
      %s113 = sadd.s32 %s112, 1
      %s114 = scalar_select %p111, %s112, %s113
      %p117 = pneg %p111
      %p118 = scmp.eq.s32.totalorder %s13, 1
      %p119 = por %p117, %p118
      %p120 = scmp.ne.s32.totalorder %s112, %s115
      %p121 = scmp.eq.s32.totalorder %s13, 0
      %p122 = por %p120, %p121
      %p123 = scmp.ne.s32.totalorder %s112, %s115
      %p124 = scmp.eq.s32.totalorder %s18, 1
      %p125 = por %p123, %p124
      %p126 = scmp.ne.s32.totalorder %s115, %s116
      %p127 = scmp.eq.s32.totalorder %s18, 0
      %p128 = por %p126, %p127
      %p129 = scmp.ne.s32.totalorder %s115, %s116
      %p130 = scmp.eq.s32.totalorder %s19, 1
      %p131 = por %p129, %p130
      %p133 = scmp.ne.s32.totalorder %s116, %s132
      %p134 = scmp.eq.s32.totalorder %s19, 0
      %p135 = por %p133, %p134
      %p136 = scmp.le.s32.totalorder 1, %s13
      %p137 = scmp.lt.s32.totalorder %s13, 3
      %p138 = pnand %p136, %p137
      %p139 = pneg %p138
      // Predicated region
      $region9: #{_lambda_.13} parent=5 // pred_check
        _
      $region10: #{_lambda_.13} parent=5 // pred_check_branch
        %141 = sbr.rel (%p138) target = $region12
      $region11: #{_lambda_.13} parent=5 // pred_region
        %s142 = ssub.s32 %s13, 1
        // Predicated region
        $region13: #{_lambda_.13} parent=11 // pred_check
          %p143 = pneg %p34
        $region14: #{_lambda_.13} parent=11 // pred_check_branch
          %145 = sbr.rel (%p143) target = $region16
        $region15: #{_lambda_.13} parent=11 // pred_region
          %s147 = ssub.s32 256, 256
          %148 = vsyncadd [#allocation4], %s147
          %s149 = sshll.u32 [#allocation3], 4
          %s150 = int_to_ptr.vmem [resolvable:$true] %s149
          %155 = dma.hbm_to_vmem [thread:$0]  %s0, 256, %s150, [#allocation4], 64, 64, 4
        $region16: #{_lambda_.13} parent=11 // pred_fallthru
          _
        // Predicated region
        $region17: #{_lambda_.13} parent=11 // pred_check
          %p156 = pneg %p81
        $region18: #{_lambda_.13} parent=11 // pred_check_branch
          %158 = sbr.rel (%p156) target = $region20
        $region19: #{_lambda_.13} parent=11 // pred_region
          %s160 = ssub.s32 512, 512
          %161 = vsyncadd [#allocation7], %s160
          %s162 = sshll.u32 [#allocation6], 4
          %s163 = int_to_ptr.vmem [resolvable:$true] %s162
          %168 = dma.hbm_to_vmem [thread:$0]  %s2, 512, %s163, [#allocation7], 128, 128, 8
        $region20: #{_lambda_.13} parent=11 // pred_fallthru
          _
        // Predicated region
        $region21: #{_lambda_.13} parent=11 // pred_check
          %p169 = pneg %p102
        $region22: #{_lambda_.13} parent=11 // pred_check_branch
          %171 = sbr.rel (%p169) target = $region24
        $region23: #{_lambda_.13} parent=11 // pred_region
          _
        $region24: #{_lambda_.13} parent=11 // pred_fallthru
          _
      $region12: #{_lambda_.13} parent=5 // pred_fallthru
        _
      %p172 = scmp.lt.s32.totalorder %s13, 2
      // Predicated region
      $region25: #{_lambda_.13} parent=5 // pred_check
        %p173 = pneg %p172
      $region26: #{_lambda_.13} parent=5 // pred_check_branch
        %175 = sbr.rel (%p173) target = $region28
      $region27: #{_lambda_.13} parent=5 // pred_region
        // Predicated region
        $region29: #{_lambda_.13} parent=27 // pred_check
          %p176 = pneg %p54
        $region30: #{_lambda_.13} parent=27 // pred_check_branch
          %178 = sbr.rel (%p176) target = $region32
        $region31: #{_lambda_.13} parent=27 // pred_region
          %s179 = sand.u32 %s44, 1
          %s180 = sand.u32 %s44, 1
          %s181 = smul.addr %s180, 72
          %s182 = scalar_lea.vmem [#allocation5], %s181
          %s183 = smul.u32 2, %s13
          %s184 = smul.addr %s183, 4
          %s185 = scalar_lea.vmem %s1, %s184
          // Predicated region
          $region33: #{_lambda_.13} parent=31 // pred_check
            _
          $region34: #{_lambda_.13} parent=31 // pred_check_branch
            %187 = sbr.rel (0) target = $region36
          $region35: #{_lambda_.13} parent=31 // pred_region
            // Predicated region
            $region37: #{_lambda_.13} parent=35 // pred_check
              _
            $region38: #{_lambda_.13} parent=35 // pred_check_branch
              %189 = sbr.rel (0) target = $region40
            $region39: #{_lambda_.13} parent=35 // pred_region
              // Predicated region
              $region52: #{_lambda_.13} parent=39 // pred_check
                _
              $region53: #{_lambda_.13} parent=39 // pred_check_branch
                %220 = sbr.rel (0) target = $region55
              $region54: #{_lambda_.13} parent=39 // pred_region
                loop: start=0, step=1, limit=1
                $region56: #{_lambda_.13} parent=54 // loop_pre_header
                  _
                $region57: #{_lambda_.13} parent=54 // loop_header
                  %s222 = sphi 0, %s226
                  %p223 = scmp.ge.s32.totalorder %s222, 1
                  %s227 = sphi %s185, %s185
                  %s228 = sphi %s182, %s182
                $region58: #{_lambda_.13} parent=54 // loop_header_branch
                  %225 = sbr.rel (%p223) target = $region62
                $region59: #{_lambda_.13} parent=54 // loop_body
                  %v229 = vld [vmem:[%s227] sm:$0xff]
                  %230 = vst [vmem:[%s228] sm:$0xff] %v229
                  %v231 = vld [vmem:[%s227 + $0x10] sm:$0xff]
                  %232 = vst [vmem:[%s228 + $0x8] sm:$0xff] %v231
                  %v233 = vld [vmem:[%s227 + $0x20] sm:$0xff]
                  %234 = vst [vmem:[%s228 + $0x10] sm:$0xff] %v233
                  %v235 = vld [vmem:[%s227 + $0x30] sm:$0xff]
                  %236 = vst [vmem:[%s228 + $0x18] sm:$0xff] %v235
                  %v237 = vld [vmem:[%s227 + $0x40] sm:$0xff]
                  %238 = vst [vmem:[%s228 + $0x20] sm:$0xff] %v237
                  %v239 = vld [vmem:[%s227 + $0x50] sm:$0xff]
                  %240 = vst [vmem:[%s228 + $0x28] sm:$0xff] %v239
                  %v241 = vld [vmem:[%s227 + $0x60] sm:$0xff]
                  %242 = vst [vmem:[%s228 + $0x30] sm:$0xff] %v241
                  %v243 = vld [vmem:[%s227 + $0x70] sm:$0xff]
                  %244 = vst [vmem:[%s228 + $0x38] sm:$0xff] %v243
                  %v245 = vld [vmem:[%s227 + $0x80] sm:$0xff]
                  %246 = vst [vmem:[%s228 + $0x40] sm:$0xff] %v245
                $region60: #{_lambda_.13} parent=54 // loop_footer
                  %s226 = sadd.s32 1, %s222
                $region61: #{_lambda_.13} parent=54 // loop_footer_branch
                  %221 = sbr.rel target = $region57
                $region62: #{_lambda_.13} parent=54 // loop_exit
                  _
              $region55: #{_lambda_.13} parent=39 // pred_fallthru
                _
              // Predicated region
              $region63: #{_lambda_.13} parent=39 // pred_check
                _
              $region64: #{_lambda_.13} parent=39 // pred_check_branch
                %248 = sbr.rel target = $region66
              $region65: #{_lambda_.13} parent=39 // pred_region
                _
              $region66: #{_lambda_.13} parent=39 // pred_fallthru
                _
            $region40: #{_lambda_.13} parent=35 // pred_fallthru
              _
            // Predicated region
            $region41: #{_lambda_.13} parent=35 // pred_check
              _
            $region42: #{_lambda_.13} parent=35 // pred_check_branch
              %191 = sbr.rel target = $region44
            $region43: #{_lambda_.13} parent=35 // pred_region
              loop: start=0, step=1, limit=1
              $region45: #{_lambda_.13} parent=43 // loop_pre_header
                _
              $region46: #{_lambda_.13} parent=43 // loop_header
                %s194 = sphi 0, %s198
                %p195 = scmp.ge.s32.totalorder %s194, 1
                %s199 = sphi %s185, %s185
                %s200 = sphi %s182, %s182
              $region47: #{_lambda_.13} parent=43 // loop_header_branch
                %197 = sbr.rel (%p195) target = $region51
              $region48: #{_lambda_.13} parent=43 // loop_body
                %v201 = vld [vmem:[%s199] sm:$0xff]
                %202 = vst [vmem:[%s200] sm:$0xff] %v201
                %v203 = vld [vmem:[%s199 + $0x10] sm:$0xff]
                %204 = vst [vmem:[%s200 + $0x8] sm:$0xff] %v203
                %v205 = vld [vmem:[%s199 + $0x20] sm:$0xff]
                %206 = vst [vmem:[%s200 + $0x10] sm:$0xff] %v205
                %v207 = vld [vmem:[%s199 + $0x30] sm:$0xff]
                %208 = vst [vmem:[%s200 + $0x18] sm:$0xff] %v207
                %v209 = vld [vmem:[%s199 + $0x40] sm:$0xff]
                %210 = vst [vmem:[%s200 + $0x20] sm:$0xff] %v209
                %v211 = vld [vmem:[%s199 + $0x50] sm:$0xff]
                %212 = vst [vmem:[%s200 + $0x28] sm:$0xff] %v211
                %v213 = vld [vmem:[%s199 + $0x60] sm:$0xff]
                %214 = vst [vmem:[%s200 + $0x30] sm:$0xff] %v213
                %v215 = vld [vmem:[%s199 + $0x70] sm:$0xff]
                %216 = vst [vmem:[%s200 + $0x38] sm:$0xff] %v215
                %v217 = vld [vmem:[%s199 + $0x80] sm:$0xff]
                %218 = vst [vmem:[%s200 + $0x40] sm:$0xff] %v217
              $region49: #{_lambda_.13} parent=43 // loop_footer
                %s198 = sadd.s32 1, %s194
              $region50: #{_lambda_.13} parent=43 // loop_footer_branch
                %193 = sbr.rel target = $region46
              $region51: #{_lambda_.13} parent=43 // loop_exit
                _
            $region44: #{_lambda_.13} parent=35 // pred_fallthru
              _
          $region36: #{_lambda_.13} parent=31 // pred_fallthru
            _
          %249 = vnop
        $region32: #{_lambda_.13} parent=27 // pred_fallthru
          _
      $region28: #{_lambda_.13} parent=5 // pred_fallthru
        _
      %p250 = scmp.le.s32.totalorder 1, %s13
      %p251 = scmp.lt.s32.totalorder %s13, 3
      %p252 = pnand %p250, %p251
      %p253 = pneg %p252
      // Predicated region
      $region67: #{_lambda_.13} parent=5 // pred_check
        _
      $region68: #{_lambda_.13} parent=5 // pred_check_branch
        %255 = sbr.rel (%p252) target = $region70
      $region69: #{_lambda_.13} parent=5 // pred_region
        %s256 = ssub.s32 %s13, 1
        // Predicated region
        $region71: #{_lambda_.13} parent=69 // pred_check
          %p257 = pneg %p34
        $region72: #{_lambda_.13} parent=69 // pred_check_branch
          %259 = sbr.rel (%p257) target = $region74
        $region73: #{_lambda_.13} parent=69 // pred_region
          %260 = dma.done [#allocation4], 256
        $region74: #{_lambda_.13} parent=69 // pred_fallthru
          _
        %s261 = sand.u32 %s47, 1
        %s262 = sand.u32 %s47, 1
        %s263 = smul.addr %s262, 72
        %s264 = scalar_lea.vmem [#allocation5], %s263
        // Predicated region
        $region75: #{_lambda_.13} parent=69 // pred_check
          %p265 = pneg %p60
        $region76: #{_lambda_.13} parent=69 // pred_check_branch
          %267 = sbr.rel (%p265) target = $region78
        $region77: #{_lambda_.13} parent=69 // pred_region
          _
        $region78: #{_lambda_.13} parent=69 // pred_fallthru
          _
        // Predicated region
        $region79: #{_lambda_.13} parent=69 // pred_check
          %p268 = pneg %p81
        $region80: #{_lambda_.13} parent=69 // pred_check_branch
          %270 = sbr.rel (%p268) target = $region82
        $region81: #{_lambda_.13} parent=69 // pred_region
          %271 = dma.done [#allocation7], 512
        $region82: #{_lambda_.13} parent=69 // pred_fallthru
          _
        %p272 = pneg %p34
        %p273 = pneg %p31
        %s274 = sand.u32 %s47, 1
        %s275 = sand.u32 %s47, 1
        %s276 = smul.addr %s275, 72
        %s277 = scalar_lea.vmem [#allocation5], %s276
        %p278 = pneg %p60
        %p279 = pneg %p57
        %p280 = pneg %p81
        %p281 = pneg %p78
        %p282 = pneg %p102
        %p283 = pneg %p99
        %p284 = pneg %p128
        %p285 = pneg %p125
        %s286 = sand.u32 %s115, 1
        %s287 = sand.u32 %s115, 1
        %s288 = smul.addr %s287, 64
        %s289 = scalar_lea.vmem [#allocation8], %s288
        %s290 = smul.u32 2, %s18
        %s291 = smul.u32 2, %s18
        %v293 = vld [vmem:[#allocation3] sm:$0xf]
        %v294 = vld [vmem:[#allocation3 + $0x4] sm:$0xf]
        %v295 = vld [vmem:[#allocation3 + $0x8] sm:$0xf]
        %v296 = vld [vmem:[#allocation3 + $0xc] sm:$0xf]
        %v297 = vld [vmem:[%s264] sm:$0xff]
        %v298 = vld [vmem:[%s264 + $0x8] sm:$0xff]
        %v299 = vld [vmem:[%s264 + $0x10] sm:$0xff]
        %v300 = vld [vmem:[%s264 + $0x18] sm:$0xff]
        %v301 = vld [vmem:[%s264 + $0x20] sm:$0xff]
        %v302 = vld [vmem:[%s264 + $0x28] sm:$0xff]
        %v303 = vld [vmem:[%s264 + $0x30] sm:$0xff]
        %v304 = vld [vmem:[%s264 + $0x38] sm:$0xff]
        %v305 = vld [vmem:[%s264 + $0x40] sm:$0xff]
        %v306 = vld [vmem:[#allocation6] sm:$0xff]
        %v307 = vld [vmem:[#allocation6 + $0x8] sm:$0xff]
        %v308 = vld [vmem:[#allocation6 + $0x10] sm:$0xff]
        %v309 = vld [vmem:[#allocation6 + $0x18] sm:$0xff]
        %311 = vset.pattern.permute.xlu0 0
        %312 = vperm.xlu0 %311, %v306
        %v313 = vpop.permute.xlu0 %312
        %316 = vset.pattern.permute.xlu0 0
        %317 = vperm.xlu0 %316, %v307
        %v318 = vpop.permute.xlu0 %317
        %321 = vset.pattern.permute.xlu0 0
        %322 = vperm.xlu0 %321, %v308
        %v323 = vpop.permute.xlu0 %322
        %326 = vset.pattern.permute.xlu0 0
        %327 = vperm.xlu0 %326, %v309
        %v328 = vpop.permute.xlu0 %327
        %v334 = vunpack.c.l.b16 %v293
        %v335 = vunpack.c.l.b16 %v294
        %v336 = vunpack.c.l.b16 %v295
        %v337 = vunpack.c.l.b16 %v296
        %v338 = vpack.c.b16 %v335, %v334
        %v339 = vpack.c.b16 %v337, %v336
        %v349 = vunpack.c.l.b16 %v297
        %v350 = vunpack.c.h.b16 %v297
        %v351 = vunpack.c.l.b16 %v298
        %v352 = vunpack.c.h.b16 %v298
        %v353 = vunpack.c.l.b16 %v299
        %v354 = vunpack.c.h.b16 %v299
        %v355 = vunpack.c.l.b16 %v300
        %v356 = vunpack.c.h.b16 %v300
        %v357 = vunpack.c.l.b16 %v301
        %v358 = vunpack.c.h.b16 %v301
        %v359 = vunpack.c.l.b16 %v302
        %v360 = vunpack.c.h.b16 %v302
        %v361 = vunpack.c.l.b16 %v303
        %v362 = vunpack.c.h.b16 %v303
        %v363 = vunpack.c.l.b16 %v304
        %v364 = vunpack.c.h.b16 %v304
        %v365 = vunpack.c.l.b16 %v305
        %v366 = vunpack.c.h.b16 %v305
        %v367 = vpack.c.b16 %v351, %v349
        %v368 = vpack.c.b16 %v352, %v350
        %v369 = vpack.c.b16 %v355, %v353
        %v370 = vpack.c.b16 %v356, %v354
        %v371 = vpack.c.b16 %v359, %v357
        %v372 = vpack.c.b16 %v360, %v358
        %v373 = vpack.c.b16 %v363, %v361
        %v374 = vpack.c.b16 %v364, %v362
        %v375 = vpack.c.b16 %v365, %v365
        %v376 = vpack.c.b16 %v366, %v366
        %vm385 = vcmask 588800
        %v387 = vsel %vm385, %v338, 0
        %v390 = vsel %vm385, %v339, 0
        %vm392 = vcmask 1043456
        %v394 = vsel %vm392, %v375, 0
        %v397 = vsel %vm392, %v376, 0
        %399 = vmatprep.subr.bf16.mxu0 %v368
        %400 = vmatpush1.bf16.msra.mxu0 %v367
        %401 = vmatprep.subr.bf16.mxu0 %v370
        %402 = vmatpush1.bf16.msra.mxu0 %v369
        %403 = vmatprep.subr.bf16.mxu0 %v372
        %404 = vmatpush1.bf16.msra.mxu0 %v371
        %405 = vmatprep.subr.bf16.mxu0 %v374
        %406 = vmatpush1.bf16.msra.mxu0 %v373
        %407 = vmatprep.subr.bf16.mxu0 %v397
        %408 = vmatpush1.bf16.msra.mxu0 %v394
        %409 = vmatprep.subr.bf16.mxu0 0
        %410 = vmatpush1.bf16.msra.mxu0 0
        %411 = vmatprep.subr.bf16.mxu0 0
        %412 = vmatpush1.bf16.msra.mxu0 0
        %413 = vmatprep.subr.bf16.mxu0 0
        %414 = vmatpush1.bf16.msra.mxu0 0
        %415 = vmatprep.subr.bf16.mxu0 0
        %416 = vmatpush1.bf16.msra.mxu0 0
        %417 = vmatprep.subr.bf16.mxu0 0
        %418 = vmatpush1.bf16.msra.mxu0 0
        %419 = vmatprep.subr.bf16.mxu0 0
        %420 = vmatpush1.bf16.msra.mxu0 0
        %421 = vmatprep.subr.bf16.mxu0 0
        %422 = vmatpush1.bf16.msra.mxu0 0
        %423 = vmatprep.subr.bf16.mxu0 0
        %424 = vmatpush1.bf16.msra.mxu0 0
        %425 = vmatprep.subr.bf16.mxu0 0
        %426 = vmatpush1.bf16.msra.mxu0 0
        %427 = vmatprep.subr.bf16.mxu0 0
        %428 = vmatpush1.bf16.msra.mxu0 0
        %429 = vmatprep.subr.bf16.mxu0 0
        %430 = vmatpush1.bf16.msra.mxu0 0
        %431 = vmatprep.mubr.bf16.mxu0 0
        %432 = vmatmul.mubr.bf16.gmra.mrb[0].mxu0 %v387
        %v433 = vpop.f32.mrb[0].mxu0
        %v434 = vadd.f32 %v313, %v433
        %v435 = vpop.f32.mrb[0].mxu0
        %v436 = vadd.f32 %v313, %v435
        %v437 = vpop.f32.mrb[0].mxu0
        %v438 = vadd.f32 %v318, %v437
        %v439 = vpop.f32.mrb[0].mxu0
        %v440 = vadd.f32 %v318, %v439
        %441 = vmatprep.mubr.bf16.mxu0 0
        %442 = vmatmul.mubr.bf16.gmra.mrb[0].mxu0 %v390
        %v443 = vpop.f32.mrb[0].mxu0
        %v444 = vadd.f32 %v323, %v443
        %v445 = vpop.f32.mrb[0].mxu0
        %v446 = vadd.f32 %v323, %v445
        %v447 = vpop.f32.mrb[0].mxu0
        %v448 = vadd.f32 %v328, %v447
        %v449 = vpop.f32.mrb[0].mxu0
        %v450 = vadd.f32 %v328, %v449
        %451 = vdwg.mxu0
        %s452 = sld [smem:[#allocation2]]
        %vm453 = vcmp.ge.f32.partialorder %v434, 0.0
        %vm454 = vcmp.ge.f32.partialorder %v436, 0.0
        %vm455 = vcmp.ge.f32.partialorder %v438, 0.0
        %vm456 = vcmp.ge.f32.partialorder %v440, 0.0
        %vm457 = vcmp.ge.f32.partialorder %v444, 0.0
        %vm458 = vcmp.ge.f32.partialorder %v446, 0.0
        %vm459 = vcmp.ge.f32.partialorder %v448, 0.0
        %vm460 = vcmp.ge.f32.partialorder %v450, 0.0
        %v461 = vstv %s452
        %v462 = vmul.f32 %v461, %v434
        %v463 = vmul.f32 %v461, %v436
        %v464 = vmul.f32 %v461, %v438
        %v465 = vmul.f32 %v461, %v440
        %v466 = vmul.f32 %v461, %v444
        %v467 = vmul.f32 %v461, %v446
        %v468 = vmul.f32 %v461, %v448
        %v469 = vmul.f32 %v461, %v450
        %v470 = vsel %vm453, %v434, %v462
        %v471 = vsel %vm454, %v436, %v463
        %v472 = vsel %vm455, %v438, %v464
        %v473 = vsel %vm456, %v440, %v465
        %v474 = vsel %vm457, %v444, %v466
        %v475 = vsel %vm458, %v446, %v467
        %v476 = vsel %vm459, %v448, %v468
        %v477 = vsel %vm460, %v450, %v469
        %478 = vst [vmem:[%s289] sm:$0xff] %v470
        %479 = vst [vmem:[%s289 + $0x8] sm:$0xff] %v471
        %480 = vst [vmem:[%s289 + $0x10] sm:$0xff] %v472
        %481 = vst [vmem:[%s289 + $0x18] sm:$0xff] %v473
        %482 = vst [vmem:[%s289 + $0x20] sm:$0xff] %v474
        %483 = vst [vmem:[%s289 + $0x28] sm:$0xff] %v475
        %484 = vst [vmem:[%s289 + $0x30] sm:$0xff] %v476
        %485 = vst [vmem:[%s289 + $0x38] sm:$0xff] %v477
        %s486 = sand.u32 %s115, 1
        %s487 = sand.u32 %s115, 1
        %s488 = smul.addr %s487, 64
        %s489 = scalar_lea.vmem [#allocation8], %s488
        // Predicated region
        $region83: #{_lambda_.13} parent=69 // pred_check
          %p490 = pneg %p125
        $region84: #{_lambda_.13} parent=69 // pred_check_branch
          %492 = sbr.rel (%p490) target = $region86
        $region85: #{_lambda_.13} parent=69 // pred_region
          %s493 = smul.u32 2, %s18
          %s494 = smul.addr %s493, 8
          %s495 = scalar_lea.vmem %s4, %s494
          // Predicated region
          $region87: #{_lambda_.13} parent=85 // pred_check
            _
          $region88: #{_lambda_.13} parent=85 // pred_check_branch
            %497 = sbr.rel (0) target = $region90
          $region89: #{_lambda_.13} parent=85 // pred_region
            // Predicated region
            $region91: #{_lambda_.13} parent=89 // pred_check
              _
            $region92: #{_lambda_.13} parent=89 // pred_check_branch
              %499 = sbr.rel (0) target = $region94
            $region93: #{_lambda_.13} parent=89 // pred_region
              loop: start=0, step=1, limit=1
              $region95: #{_lambda_.13} parent=93 // loop_pre_header
                _
              $region96: #{_lambda_.13} parent=93 // loop_header
                %s501 = sphi 0, %s505
                %p502 = scmp.ge.s32.totalorder %s501, 1
                %s506 = sphi %s489, %s489
                %s507 = sphi %s495, %s495
              $region97: #{_lambda_.13} parent=93 // loop_header_branch
                %504 = sbr.rel (%p502) target = $region101
              $region98: #{_lambda_.13} parent=93 // loop_body
                %v508 = vld [vmem:[%s506] sm:$0xff]
                %509 = vst [vmem:[%s507] sm:$0xff] %v508
                %v510 = vld [vmem:[%s506 + $0x8] sm:$0xff]
                %511 = vst [vmem:[%s507 + $0x8] sm:$0xff] %v510
                %v512 = vld [vmem:[%s506 + $0x10] sm:$0xff]
                %513 = vst [vmem:[%s507 + $0x20] sm:$0xff] %v512
                %v514 = vld [vmem:[%s506 + $0x18] sm:$0xff]
                %515 = vst [vmem:[%s507 + $0x28] sm:$0xff] %v514
                %v516 = vld [vmem:[%s506 + $0x20] sm:$0xff]
                %517 = vst [vmem:[%s507 + $0x40] sm:$0xff] %v516
                %v518 = vld [vmem:[%s506 + $0x28] sm:$0xff]
                %519 = vst [vmem:[%s507 + $0x48] sm:$0xff] %v518
                %v520 = vld [vmem:[%s506 + $0x30] sm:$0xff]
                %521 = vst [vmem:[%s507 + $0x60] sm:$0xff] %v520
                %v522 = vld [vmem:[%s506 + $0x38] sm:$0xff]
                %523 = vst [vmem:[%s507 + $0x68] sm:$0xff] %v522
              $region99: #{_lambda_.13} parent=93 // loop_footer
                %s505 = sadd.s32 1, %s501
              $region100: #{_lambda_.13} parent=93 // loop_footer_branch
                %500 = sbr.rel target = $region96
              $region101: #{_lambda_.13} parent=93 // loop_exit
                _
            $region94: #{_lambda_.13} parent=89 // pred_fallthru
              _
            // Predicated region
            $region102: #{_lambda_.13} parent=89 // pred_check
              _
            $region103: #{_lambda_.13} parent=89 // pred_check_branch
              %525 = sbr.rel target = $region105
            $region104: #{_lambda_.13} parent=89 // pred_region
              _
            $region105: #{_lambda_.13} parent=89 // pred_fallthru
              _
          $region90: #{_lambda_.13} parent=85 // pred_fallthru
            _
          %526 = vnop
        $region86: #{_lambda_.13} parent=69 // pred_fallthru
          _
      $region70: #{_lambda_.13} parent=5 // pred_fallthru
        _
      %p527 = scmp.le.s32.totalorder 2, %s13
      // Predicated region
      $region106: #{_lambda_.13} parent=5 // pred_check
        %p528 = pneg %p527
      $region107: #{_lambda_.13} parent=5 // pred_check_branch
        %530 = sbr.rel (%p528) target = $region109
      $region108: #{_lambda_.13} parent=5 // pred_region
        %s531 = ssub.s32 %s13, 2
        // Predicated region
        $region110: #{_lambda_.13} parent=108 // pred_check
          %p532 = pneg %p131
        $region111: #{_lambda_.13} parent=108 // pred_check_branch
          %534 = sbr.rel (%p532) target = $region113
        $region112: #{_lambda_.13} parent=108 // pred_region
          %s535 = sand.u32 %s116, 1
          %s536 = sand.u32 %s116, 1
          %s537 = smul.addr %s536, 64
          %s538 = scalar_lea.vmem [#allocation8], %s537
        $region113: #{_lambda_.13} parent=108 // pred_fallthru
          _
      $region109: #{_lambda_.13} parent=5 // pred_fallthru
        _
    $region6: #{_lambda_.13} parent=1 // loop_footer
      %s17 = sadd.s32 1, %s13
    $region7: #{_lambda_.13} parent=1 // loop_footer_branch
      %12 = sbr.rel target = $region3
    $region8: #{_lambda_.13} parent=1 // loop_exit
      _
    %539 = vsyncpa [#allocation4], 1
    %s540 = scalar_lea.sflag [#allocation4], 1
    %541 = vsyncpa %s540, 1
    %542 = vsyncpa [#allocation7], 1

// kernel: _lambda_.14
$region0: #{_lambda_.14}
  #allocation0 [shape = 'u32[]', space=smem, size = 0x4, offset = 0x4, fixed_abs, tag = 'smem constant byte address 0x4 - core index']
  #allocation1 [shape = 'u32[144,128]{1,0:T(1,128)}', space=vmem, size = 0x12000, scoped, tag = 'internal scratch']
  #allocation2 [shape = 'f32[1]{0:T(128)S(6)}', space=smem, size = 0x200, scoped, tag = 'scoped memory for _lambda_.14']
  %s0 = inlined_call_operand.vmem [shape: bf16[8,288], index: 0, kind: input, shape index: {}]
  %s1 = inlined_call_operand.vmem [shape: bf16[288,512], index: 1, kind: input, shape index: {}]
  %s2 = inlined_call_operand.vmem [shape: f32[8,1], index: 2, kind: input, shape index: {}]
  %s3 = inlined_call_operand.<no memory space> [shape: f32[1], index: 3, kind: input, shape index: {}]
  %s4 = inlined_call_operand.vmem [shape: f32[8,512], index: 4, kind: output, shape index: {}]
  %s5 = sld [smem:[#allocation0]]
  $region87: #{_lambda_.14} parent=0
    _
  %s7 = ssub.s32 1, %s5
  %s8 = scalar_select 0, %s7, %s5
  %9 = sst [smem:[#allocation2]] %s3
  $region1: #{_lambda_.14} parent=0
    #allocation3 [shape = 'u8[294912]{0}', space=vmem, size = 0x48000, scoped, tag = 'input window, operand 1']
    loop: start=0, step=1, limit=4
    $region2: #{_lambda_.14} parent=1 // loop_pre_header
      _
    $region3: #{_lambda_.14} parent=1 // loop_header
      %s11 = sphi 0, %s15
      %p12 = scmp.ge.s32.totalorder %s11, 4
      %s19 = sphi 0, %s19
      %s21 = sphi 0, %s19
      %s22 = sphi 0, %s21
      %s36 = sphi 0, %s22
      %s42 = sphi 0, %s44
      %s45 = sphi 0, %s42
      %s46 = sphi 0, %s45
      %s62 = sphi 0, %s46
      %s66 = sphi 0, %s66
      %s68 = sphi 0, %s66
      %s69 = sphi 0, %s68
      %s83 = sphi 0, %s69
      %s87 = sphi 0, %s87
      %s89 = sphi 0, %s87
      %s90 = sphi 0, %s89
      %s104 = sphi 0, %s90
      %s110 = sphi 0, %s112
      %s113 = sphi 0, %s110
      %s114 = sphi 0, %s113
      %s130 = sphi 0, %s114
    $region4: #{_lambda_.14} parent=1 // loop_header_branch
      %14 = sbr.rel (%p12) target = $region8
    $region5: #{_lambda_.14} parent=1 // loop_body
      %s16 = ssub.s32 %s11, 1
      %s17 = ssub.s32 %s11, 2
      %s18 = sadd.s32 %s11, 1
      %s20 = sadd.s32 %s19, 1
      %p23 = scmp.eq.s32.totalorder %s11, 1
      %p24 = scmp.ne.s32.totalorder %s19, %s21
      %p25 = scmp.eq.s32.totalorder %s11, 0
      %p26 = por %p24, %p25
      %p27 = scmp.ne.s32.totalorder %s19, %s21
      %p28 = scmp.eq.s32.totalorder %s16, 1
      %p29 = por %p27, %p28
      %p30 = scmp.ne.s32.totalorder %s21, %s22
      %p31 = scmp.eq.s32.totalorder %s16, 0
      %p32 = por %p30, %p31
      %p33 = scmp.ne.s32.totalorder %s21, %s22
      %p34 = scmp.eq.s32.totalorder %s17, 1
      %p35 = por %p33, %p34
      %p37 = scmp.ne.s32.totalorder %s22, %s36
      %p38 = scmp.eq.s32.totalorder %s17, 0
      %p39 = por %p37, %p38
      %s40 = ssub.s32 %s11, %s18
      %p41 = scmp.eq.s32.totalorder %s40, 0
      %s43 = sadd.s32 %s42, 1
      %s44 = scalar_select %p41, %s42, %s43
      %p47 = pneg %p41
      %p48 = scmp.eq.s32.totalorder %s11, 1
      %p49 = por %p47, %p48
      %p50 = scmp.ne.s32.totalorder %s42, %s45
      %p51 = scmp.eq.s32.totalorder %s11, 0
      %p52 = por %p50, %p51
      %p53 = scmp.ne.s32.totalorder %s42, %s45
      %p54 = scmp.eq.s32.totalorder %s16, 1
      %p55 = por %p53, %p54
      %p56 = scmp.ne.s32.totalorder %s45, %s46
      %p57 = scmp.eq.s32.totalorder %s16, 0
      %p58 = por %p56, %p57
      %p59 = scmp.ne.s32.totalorder %s45, %s46
      %p60 = scmp.eq.s32.totalorder %s17, 1
      %p61 = por %p59, %p60
      %p63 = scmp.ne.s32.totalorder %s46, %s62
      %p64 = scmp.eq.s32.totalorder %s17, 0
      %p65 = por %p63, %p64
      %s67 = sadd.s32 %s66, 1
      %p70 = scmp.eq.s32.totalorder %s11, 1
      %p71 = scmp.ne.s32.totalorder %s66, %s68
      %p72 = scmp.eq.s32.totalorder %s11, 0
      %p73 = por %p71, %p72
      %p74 = scmp.ne.s32.totalorder %s66, %s68
      %p75 = scmp.eq.s32.totalorder %s16, 1
      %p76 = por %p74, %p75
      %p77 = scmp.ne.s32.totalorder %s68, %s69
      %p78 = scmp.eq.s32.totalorder %s16, 0
      %p79 = por %p77, %p78
      %p80 = scmp.ne.s32.totalorder %s68, %s69
      %p81 = scmp.eq.s32.totalorder %s17, 1
      %p82 = por %p80, %p81
      %p84 = scmp.ne.s32.totalorder %s69, %s83
      %p85 = scmp.eq.s32.totalorder %s17, 0
      %p86 = por %p84, %p85
      %s88 = sadd.s32 %s87, 1
      %p91 = scmp.eq.s32.totalorder %s11, 1
      %p92 = scmp.ne.s32.totalorder %s87, %s89
      %p93 = scmp.eq.s32.totalorder %s11, 0
      %p94 = por %p92, %p93
      %p95 = scmp.ne.s32.totalorder %s87, %s89
      %p96 = scmp.eq.s32.totalorder %s16, 1
      %p97 = por %p95, %p96
      %p98 = scmp.ne.s32.totalorder %s89, %s90
      %p99 = scmp.eq.s32.totalorder %s16, 0
      %p100 = por %p98, %p99
      %p101 = scmp.ne.s32.totalorder %s89, %s90
      %p102 = scmp.eq.s32.totalorder %s17, 1
      %p103 = por %p101, %p102
      %p105 = scmp.ne.s32.totalorder %s90, %s104
      %p106 = scmp.eq.s32.totalorder %s17, 0
      %p107 = por %p105, %p106
      %s108 = ssub.s32 %s11, %s18
      %p109 = scmp.eq.s32.totalorder %s108, 0
      %s111 = sadd.s32 %s110, 1
      %s112 = scalar_select %p109, %s110, %s111
      %p115 = pneg %p109
      %p116 = scmp.eq.s32.totalorder %s11, 1
      %p117 = por %p115, %p116
      %p118 = scmp.ne.s32.totalorder %s110, %s113
      %p119 = scmp.eq.s32.totalorder %s11, 0
      %p120 = por %p118, %p119
      %p121 = scmp.ne.s32.totalorder %s110, %s113
      %p122 = scmp.eq.s32.totalorder %s16, 1
      %p123 = por %p121, %p122
      %p124 = scmp.ne.s32.totalorder %s113, %s114
      %p125 = scmp.eq.s32.totalorder %s16, 0
      %p126 = por %p124, %p125
      %p127 = scmp.ne.s32.totalorder %s113, %s114
      %p128 = scmp.eq.s32.totalorder %s17, 1
      %p129 = por %p127, %p128
      %p131 = scmp.ne.s32.totalorder %s114, %s130
      %p132 = scmp.eq.s32.totalorder %s17, 0
      %p133 = por %p131, %p132
      %p134 = scmp.le.s32.totalorder 1, %s11
      %p135 = scmp.lt.s32.totalorder %s11, 3
      %p136 = pnand %p134, %p135
      %p137 = pneg %p136
      // Predicated region
      $region9: #{_lambda_.14} parent=5 // pred_check
        _
      $region10: #{_lambda_.14} parent=5 // pred_check_branch
        %139 = sbr.rel (%p136) target = $region12
      $region11: #{_lambda_.14} parent=5 // pred_region
        %s140 = ssub.s32 %s11, 1
        // Predicated region
        $region13: #{_lambda_.14} parent=11 // pred_check
          %p141 = pneg %p32
        $region14: #{_lambda_.14} parent=11 // pred_check_branch
          %143 = sbr.rel (%p141) target = $region16
        $region15: #{_lambda_.14} parent=11 // pred_region
          _
        $region16: #{_lambda_.14} parent=11 // pred_fallthru
          _
        // Predicated region
        $region17: #{_lambda_.14} parent=11 // pred_check
          %p144 = pneg %p79
        $region18: #{_lambda_.14} parent=11 // pred_check_branch
          %146 = sbr.rel (%p144) target = $region20
        $region19: #{_lambda_.14} parent=11 // pred_region
          _
        $region20: #{_lambda_.14} parent=11 // pred_fallthru
          _
        // Predicated region
        $region21: #{_lambda_.14} parent=11 // pred_check
          %p147 = pneg %p100
        $region22: #{_lambda_.14} parent=11 // pred_check_branch
          %149 = sbr.rel (%p147) target = $region24
        $region23: #{_lambda_.14} parent=11 // pred_region
          _
        $region24: #{_lambda_.14} parent=11 // pred_fallthru
          _
      $region12: #{_lambda_.14} parent=5 // pred_fallthru
        _
      %p150 = scmp.lt.s32.totalorder %s11, 2
      // Predicated region
      $region25: #{_lambda_.14} parent=5 // pred_check
        %p151 = pneg %p150
      $region26: #{_lambda_.14} parent=5 // pred_check_branch
        %153 = sbr.rel (%p151) target = $region28
      $region27: #{_lambda_.14} parent=5 // pred_region
        // Predicated region
        $region29: #{_lambda_.14} parent=27 // pred_check
          %p154 = pneg %p52
        $region30: #{_lambda_.14} parent=27 // pred_check_branch
          %156 = sbr.rel (%p154) target = $region32
        $region31: #{_lambda_.14} parent=27 // pred_region
          %s157 = sand.u32 %s42, 1
          %s158 = sand.u32 %s42, 1
          %s159 = smul.addr %s158, 288
          %s160 = scalar_lea.vmem [#allocation3], %s159
          %s161 = smul.u32 2, %s11
          %s162 = smul.addr %s161, 4
          %s163 = scalar_lea.vmem %s1, %s162
          // Predicated region
          $region33: #{_lambda_.14} parent=31 // pred_check
            _
          $region34: #{_lambda_.14} parent=31 // pred_check_branch
            %165 = sbr.rel (0) target = $region36
          $region35: #{_lambda_.14} parent=31 // pred_region
            // Predicated region
            $region37: #{_lambda_.14} parent=35 // pred_check
              _
            $region38: #{_lambda_.14} parent=35 // pred_check_branch
              %167 = sbr.rel (0) target = $region40
            $region39: #{_lambda_.14} parent=35 // pred_region
              // Predicated region
              $region52: #{_lambda_.14} parent=39 // pred_check
                _
              $region53: #{_lambda_.14} parent=39 // pred_check_branch
                %252 = sbr.rel (0) target = $region55
              $region54: #{_lambda_.14} parent=39 // pred_region
                loop: start=0, step=1, limit=1
                $region56: #{_lambda_.14} parent=54 // loop_pre_header
                  _
                $region57: #{_lambda_.14} parent=54 // loop_header
                  %s254 = sphi 0, %s258
                  %p255 = scmp.ge.s32.totalorder %s254, 1
                  %s259 = sphi %s163, %s163
                  %s260 = sphi %s160, %s160
                $region58: #{_lambda_.14} parent=54 // loop_header_branch
                  %257 = sbr.rel (%p255) target = $region62
                $region59: #{_lambda_.14} parent=54 // loop_body
                  %v261 = vld [vmem:[%s259] sm:$0xff]
                  %262 = vst [vmem:[%s260] sm:$0xff] %v261
                  %v263 = vld [vmem:[%s259 + $0x10] sm:$0xff]
                  %264 = vst [vmem:[%s260 + $0x8] sm:$0xff] %v263
                  %v265 = vld [vmem:[%s259 + $0x20] sm:$0xff]
                  %266 = vst [vmem:[%s260 + $0x10] sm:$0xff] %v265
                  %v267 = vld [vmem:[%s259 + $0x30] sm:$0xff]
                  %268 = vst [vmem:[%s260 + $0x18] sm:$0xff] %v267
                  %v269 = vld [vmem:[%s259 + $0x40] sm:$0xff]
                  %270 = vst [vmem:[%s260 + $0x20] sm:$0xff] %v269
                  %v271 = vld [vmem:[%s259 + $0x50] sm:$0xff]
                  %272 = vst [vmem:[%s260 + $0x28] sm:$0xff] %v271
                  %v273 = vld [vmem:[%s259 + $0x60] sm:$0xff]
                  %274 = vst [vmem:[%s260 + $0x30] sm:$0xff] %v273
                  %v275 = vld [vmem:[%s259 + $0x70] sm:$0xff]
                  %276 = vst [vmem:[%s260 + $0x38] sm:$0xff] %v275
                  %v277 = vld [vmem:[%s259 + $0x80] sm:$0xff]
                  %278 = vst [vmem:[%s260 + $0x40] sm:$0xff] %v277
                  %v279 = vld [vmem:[%s259 + $0x90] sm:$0xff]
                  %280 = vst [vmem:[%s260 + $0x48] sm:$0xff] %v279
                  %v281 = vld [vmem:[%s259 + $0xa0] sm:$0xff]
                  %282 = vst [vmem:[%s260 + $0x50] sm:$0xff] %v281
                  %v283 = vld [vmem:[%s259 + $0xb0] sm:$0xff]
                  %284 = vst [vmem:[%s260 + $0x58] sm:$0xff] %v283
                  %v285 = vld [vmem:[%s259 + $0xc0] sm:$0xff]
                  %286 = vst [vmem:[%s260 + $0x60] sm:$0xff] %v285
                  %v287 = vld [vmem:[%s259 + $0xd0] sm:$0xff]
                  %288 = vst [vmem:[%s260 + $0x68] sm:$0xff] %v287
                  %v289 = vld [vmem:[%s259 + $0xe0] sm:$0xff]
                  %290 = vst [vmem:[%s260 + $0x70] sm:$0xff] %v289
                  %v291 = vld [vmem:[%s259 + $0xf0] sm:$0xff]
                  %292 = vst [vmem:[%s260 + $0x78] sm:$0xff] %v291
                  %v293 = vld [vmem:[%s259 + $0x100] sm:$0xff]
                  %294 = vst [vmem:[%s260 + $0x80] sm:$0xff] %v293
                  %v295 = vld [vmem:[%s259 + $0x110] sm:$0xff]
                  %296 = vst [vmem:[%s260 + $0x88] sm:$0xff] %v295
                  %v297 = vld [vmem:[%s259 + $0x120] sm:$0xff]
                  %298 = vst [vmem:[%s260 + $0x90] sm:$0xff] %v297
                  %v299 = vld [vmem:[%s259 + $0x130] sm:$0xff]
                  %300 = vst [vmem:[%s260 + $0x98] sm:$0xff] %v299
                  %v301 = vld [vmem:[%s259 + $0x140] sm:$0xff]
                  %302 = vst [vmem:[%s260 + $0xa0] sm:$0xff] %v301
                  %v303 = vld [vmem:[%s259 + $0x150] sm:$0xff]
                  %304 = vst [vmem:[%s260 + $0xa8] sm:$0xff] %v303
                  %v305 = vld [vmem:[%s259 + $0x160] sm:$0xff]
                  %306 = vst [vmem:[%s260 + $0xb0] sm:$0xff] %v305
                  %v307 = vld [vmem:[%s259 + $0x170] sm:$0xff]
                  %308 = vst [vmem:[%s260 + $0xb8] sm:$0xff] %v307
                  %v309 = vld [vmem:[%s259 + $0x180] sm:$0xff]
                  %310 = vst [vmem:[%s260 + $0xc0] sm:$0xff] %v309
                  %v311 = vld [vmem:[%s259 + $0x190] sm:$0xff]
                  %312 = vst [vmem:[%s260 + $0xc8] sm:$0xff] %v311
                  %v313 = vld [vmem:[%s259 + $0x1a0] sm:$0xff]
                  %314 = vst [vmem:[%s260 + $0xd0] sm:$0xff] %v313
                  %v315 = vld [vmem:[%s259 + $0x1b0] sm:$0xff]
                  %316 = vst [vmem:[%s260 + $0xd8] sm:$0xff] %v315
                  %v317 = vld [vmem:[%s259 + $0x1c0] sm:$0xff]
                  %318 = vst [vmem:[%s260 + $0xe0] sm:$0xff] %v317
                  %v319 = vld [vmem:[%s259 + $0x1d0] sm:$0xff]
                  %320 = vst [vmem:[%s260 + $0xe8] sm:$0xff] %v319
                  %v321 = vld [vmem:[%s259 + $0x1e0] sm:$0xff]
                  %322 = vst [vmem:[%s260 + $0xf0] sm:$0xff] %v321
                  %v323 = vld [vmem:[%s259 + $0x1f0] sm:$0xff]
                  %324 = vst [vmem:[%s260 + $0xf8] sm:$0xff] %v323
                  %v325 = vld [vmem:[%s259 + $0x200] sm:$0xff]
                  %326 = vst [vmem:[%s260 + $0x100] sm:$0xff] %v325
                  %v327 = vld [vmem:[%s259 + $0x210] sm:$0xff]
                  %328 = vst [vmem:[%s260 + $0x108] sm:$0xff] %v327
                  %v329 = vld [vmem:[%s259 + $0x220] sm:$0xff]
                  %330 = vst [vmem:[%s260 + $0x110] sm:$0xff] %v329
                  %v331 = vld [vmem:[%s259 + $0x230] sm:$0xff]
                  %332 = vst [vmem:[%s260 + $0x118] sm:$0xff] %v331
                $region60: #{_lambda_.14} parent=54 // loop_footer
                  %s258 = sadd.s32 1, %s254
                $region61: #{_lambda_.14} parent=54 // loop_footer_branch
                  %253 = sbr.rel target = $region57
                $region62: #{_lambda_.14} parent=54 // loop_exit
                  _
              $region55: #{_lambda_.14} parent=39 // pred_fallthru
                _
              // Predicated region
              $region63: #{_lambda_.14} parent=39 // pred_check
                _
              $region64: #{_lambda_.14} parent=39 // pred_check_branch
                %334 = sbr.rel target = $region66
              $region65: #{_lambda_.14} parent=39 // pred_region
                _
              $region66: #{_lambda_.14} parent=39 // pred_fallthru
                _
            $region40: #{_lambda_.14} parent=35 // pred_fallthru
              _
            // Predicated region
            $region41: #{_lambda_.14} parent=35 // pred_check
              _
            $region42: #{_lambda_.14} parent=35 // pred_check_branch
              %169 = sbr.rel target = $region44
            $region43: #{_lambda_.14} parent=35 // pred_region
              loop: start=0, step=1, limit=1
              $region45: #{_lambda_.14} parent=43 // loop_pre_header
                _
              $region46: #{_lambda_.14} parent=43 // loop_header
                %s172 = sphi 0, %s176
                %p173 = scmp.ge.s32.totalorder %s172, 1
                %s177 = sphi %s163, %s163
                %s178 = sphi %s160, %s160
              $region47: #{_lambda_.14} parent=43 // loop_header_branch
                %175 = sbr.rel (%p173) target = $region51
              $region48: #{_lambda_.14} parent=43 // loop_body
                %v179 = vld [vmem:[%s177] sm:$0xff]
                %180 = vst [vmem:[%s178] sm:$0xff] %v179
                %v181 = vld [vmem:[%s177 + $0x10] sm:$0xff]
                %182 = vst [vmem:[%s178 + $0x8] sm:$0xff] %v181
                %v183 = vld [vmem:[%s177 + $0x20] sm:$0xff]
                %184 = vst [vmem:[%s178 + $0x10] sm:$0xff] %v183
                %v185 = vld [vmem:[%s177 + $0x30] sm:$0xff]
                %186 = vst [vmem:[%s178 + $0x18] sm:$0xff] %v185
                %v187 = vld [vmem:[%s177 + $0x40] sm:$0xff]
                %188 = vst [vmem:[%s178 + $0x20] sm:$0xff] %v187
                %v189 = vld [vmem:[%s177 + $0x50] sm:$0xff]
                %190 = vst [vmem:[%s178 + $0x28] sm:$0xff] %v189
                %v191 = vld [vmem:[%s177 + $0x60] sm:$0xff]
                %192 = vst [vmem:[%s178 + $0x30] sm:$0xff] %v191
                %v193 = vld [vmem:[%s177 + $0x70] sm:$0xff]
                %194 = vst [vmem:[%s178 + $0x38] sm:$0xff] %v193
                %v195 = vld [vmem:[%s177 + $0x80] sm:$0xff]
                %196 = vst [vmem:[%s178 + $0x40] sm:$0xff] %v195
                %v197 = vld [vmem:[%s177 + $0x90] sm:$0xff]
                %198 = vst [vmem:[%s178 + $0x48] sm:$0xff] %v197
                %v199 = vld [vmem:[%s177 + $0xa0] sm:$0xff]
                %200 = vst [vmem:[%s178 + $0x50] sm:$0xff] %v199
                %v201 = vld [vmem:[%s177 + $0xb0] sm:$0xff]
                %202 = vst [vmem:[%s178 + $0x58] sm:$0xff] %v201
                %v203 = vld [vmem:[%s177 + $0xc0] sm:$0xff]
                %204 = vst [vmem:[%s178 + $0x60] sm:$0xff] %v203
                %v205 = vld [vmem:[%s177 + $0xd0] sm:$0xff]
                %206 = vst [vmem:[%s178 + $0x68] sm:$0xff] %v205
                %v207 = vld [vmem:[%s177 + $0xe0] sm:$0xff]
                %208 = vst [vmem:[%s178 + $0x70] sm:$0xff] %v207
                %v209 = vld [vmem:[%s177 + $0xf0] sm:$0xff]
                %210 = vst [vmem:[%s178 + $0x78] sm:$0xff] %v209
                %v211 = vld [vmem:[%s177 + $0x100] sm:$0xff]
                %212 = vst [vmem:[%s178 + $0x80] sm:$0xff] %v211
                %v213 = vld [vmem:[%s177 + $0x110] sm:$0xff]
                %214 = vst [vmem:[%s178 + $0x88] sm:$0xff] %v213
                %v215 = vld [vmem:[%s177 + $0x120] sm:$0xff]
                %216 = vst [vmem:[%s178 + $0x90] sm:$0xff] %v215
                %v217 = vld [vmem:[%s177 + $0x130] sm:$0xff]
                %218 = vst [vmem:[%s178 + $0x98] sm:$0xff] %v217
                %v219 = vld [vmem:[%s177 + $0x140] sm:$0xff]
                %220 = vst [vmem:[%s178 + $0xa0] sm:$0xff] %v219
                %v221 = vld [vmem:[%s177 + $0x150] sm:$0xff]
                %222 = vst [vmem:[%s178 + $0xa8] sm:$0xff] %v221
                %v223 = vld [vmem:[%s177 + $0x160] sm:$0xff]
                %224 = vst [vmem:[%s178 + $0xb0] sm:$0xff] %v223
                %v225 = vld [vmem:[%s177 + $0x170] sm:$0xff]
                %226 = vst [vmem:[%s178 + $0xb8] sm:$0xff] %v225
                %v227 = vld [vmem:[%s177 + $0x180] sm:$0xff]
                %228 = vst [vmem:[%s178 + $0xc0] sm:$0xff] %v227
                %v229 = vld [vmem:[%s177 + $0x190] sm:$0xff]
                %230 = vst [vmem:[%s178 + $0xc8] sm:$0xff] %v229
                %v231 = vld [vmem:[%s177 + $0x1a0] sm:$0xff]
                %232 = vst [vmem:[%s178 + $0xd0] sm:$0xff] %v231
                %v233 = vld [vmem:[%s177 + $0x1b0] sm:$0xff]
                %234 = vst [vmem:[%s178 + $0xd8] sm:$0xff] %v233
                %v235 = vld [vmem:[%s177 + $0x1c0] sm:$0xff]
                %236 = vst [vmem:[%s178 + $0xe0] sm:$0xff] %v235
                %v237 = vld [vmem:[%s177 + $0x1d0] sm:$0xff]
                %238 = vst [vmem:[%s178 + $0xe8] sm:$0xff] %v237
                %v239 = vld [vmem:[%s177 + $0x1e0] sm:$0xff]
                %240 = vst [vmem:[%s178 + $0xf0] sm:$0xff] %v239
                %v241 = vld [vmem:[%s177 + $0x1f0] sm:$0xff]
                %242 = vst [vmem:[%s178 + $0xf8] sm:$0xff] %v241
                %v243 = vld [vmem:[%s177 + $0x200] sm:$0xff]
                %244 = vst [vmem:[%s178 + $0x100] sm:$0xff] %v243
                %v245 = vld [vmem:[%s177 + $0x210] sm:$0xff]
                %246 = vst [vmem:[%s178 + $0x108] sm:$0xff] %v245
                %v247 = vld [vmem:[%s177 + $0x220] sm:$0xff]
                %248 = vst [vmem:[%s178 + $0x110] sm:$0xff] %v247
                %v249 = vld [vmem:[%s177 + $0x230] sm:$0xff]
                %250 = vst [vmem:[%s178 + $0x118] sm:$0xff] %v249
              $region49: #{_lambda_.14} parent=43 // loop_footer
                %s176 = sadd.s32 1, %s172
              $region50: #{_lambda_.14} parent=43 // loop_footer_branch
                %171 = sbr.rel target = $region46
              $region51: #{_lambda_.14} parent=43 // loop_exit
                _
            $region44: #{_lambda_.14} parent=35 // pred_fallthru
              _
          $region36: #{_lambda_.14} parent=31 // pred_fallthru
            _
          %335 = vnop
        $region32: #{_lambda_.14} parent=27 // pred_fallthru
          _
      $region28: #{_lambda_.14} parent=5 // pred_fallthru
        _
      %p336 = scmp.le.s32.totalorder 1, %s11
      %p337 = scmp.lt.s32.totalorder %s11, 3
      %p338 = pnand %p336, %p337
      %p339 = pneg %p338
      // Predicated region
      $region67: #{_lambda_.14} parent=5 // pred_check
        _
      $region68: #{_lambda_.14} parent=5 // pred_check_branch
        %341 = sbr.rel (%p338) target = $region70
      $region69: #{_lambda_.14} parent=5 // pred_region
        %s342 = ssub.s32 %s11, 1
        %s343 = sand.u32 %s45, 1
        %s344 = sand.u32 %s45, 1
        %s345 = smul.addr %s344, 288
        %s346 = scalar_lea.vmem [#allocation3], %s345
        // Predicated region
        $region71: #{_lambda_.14} parent=69 // pred_check
          %p347 = pneg %p58
        $region72: #{_lambda_.14} parent=69 // pred_check_branch
          %349 = sbr.rel (%p347) target = $region74
        $region73: #{_lambda_.14} parent=69 // pred_region
          _
        $region74: #{_lambda_.14} parent=69 // pred_fallthru
          _
        %p350 = pneg %p32
        %p351 = pneg %p29
        %s352 = sand.u32 %s45, 1
        %s353 = sand.u32 %s45, 1
        %s354 = smul.addr %s353, 288
        %s355 = scalar_lea.vmem [#allocation3], %s354
        %p356 = pneg %p58
        %p357 = pneg %p55
        %p358 = pneg %p79
        %p359 = pneg %p76
        %p360 = pneg %p100
        %p361 = pneg %p97
        %p362 = pneg %p126
        %p363 = pneg %p123
        %s364 = smul.u32 2, %s16
        %p365 = scmp.lt.s32.totalorder %s364, 3
        %s366 = scalar_select %p365, %s364, 3
        %s367 = smul.addr %s366, 8
        %s368 = scalar_lea.vmem %s4, %s367
        %s369 = smul.u32 2, %s16
        %s370 = smul.u32 2, %s16
        %p371 = scmp.lt.s32.totalorder %s370, 3
        %s372 = scalar_select %p371, %s370, 3
        %s373 = smul.addr %s372, 8
        %s374 = scalar_lea.vmem %s4, %s373
        %s375 = smul.u32 2, %s16
        %v377 = vld [vmem:[%s0] sm:$0xff]
        %v378 = vld [vmem:[%s0 + $0x8] sm:$0xf]
        %v379 = vld [vmem:[%s346] sm:$0xff]
        %v380 = vld [vmem:[%s346 + $0x8] sm:$0xff]
        %v381 = vld [vmem:[%s346 + $0x10] sm:$0xff]
        %v382 = vld [vmem:[%s346 + $0x18] sm:$0xff]
        %v383 = vld [vmem:[%s346 + $0x20] sm:$0xff]
        %v384 = vld [vmem:[%s346 + $0x28] sm:$0xff]
        %v385 = vld [vmem:[%s346 + $0x30] sm:$0xff]
        %v386 = vld [vmem:[%s346 + $0x38] sm:$0xff]
        %v387 = vld [vmem:[%s346 + $0x40] sm:$0xff]
        %v388 = vld [vmem:[%s346 + $0x48] sm:$0xff]
        %v389 = vld [vmem:[%s346 + $0x50] sm:$0xff]
        %v390 = vld [vmem:[%s346 + $0x58] sm:$0xff]
        %v391 = vld [vmem:[%s346 + $0x60] sm:$0xff]
        %v392 = vld [vmem:[%s346 + $0x68] sm:$0xff]
        %v393 = vld [vmem:[%s346 + $0x70] sm:$0xff]
        %v394 = vld [vmem:[%s346 + $0x78] sm:$0xff]
        %v395 = vld [vmem:[%s346 + $0x80] sm:$0xff]
        %v396 = vld [vmem:[%s346 + $0x88] sm:$0xff]
        %v397 = vld [vmem:[%s346 + $0x90] sm:$0xff]
        %v398 = vld [vmem:[%s346 + $0x98] sm:$0xff]
        %v399 = vld [vmem:[%s346 + $0xa0] sm:$0xff]
        %v400 = vld [vmem:[%s346 + $0xa8] sm:$0xff]
        %v401 = vld [vmem:[%s346 + $0xb0] sm:$0xff]
        %v402 = vld [vmem:[%s346 + $0xb8] sm:$0xff]
        %v403 = vld [vmem:[%s346 + $0xc0] sm:$0xff]
        %v404 = vld [vmem:[%s346 + $0xc8] sm:$0xff]
        %v405 = vld [vmem:[%s346 + $0xd0] sm:$0xff]
        %v406 = vld [vmem:[%s346 + $0xd8] sm:$0xff]
        %v407 = vld [vmem:[%s346 + $0xe0] sm:$0xff]
        %v408 = vld [vmem:[%s346 + $0xe8] sm:$0xff]
        %v409 = vld [vmem:[%s346 + $0xf0] sm:$0xff]
        %v410 = vld [vmem:[%s346 + $0xf8] sm:$0xff]
        %v411 = vld [vmem:[%s346 + $0x100] sm:$0xff]
        %v412 = vld [vmem:[%s346 + $0x108] sm:$0xff]
        %v413 = vld [vmem:[%s346 + $0x110] sm:$0xff]
        %v414 = vld [vmem:[%s346 + $0x118] sm:$0xff]
        %v415 = vld [vmem:[%s2] sm:$0xff]
        %417 = vset.pattern.permute.xlu0 0
        %418 = vperm.xlu0 %417, %v415
        %v419 = vpop.permute.xlu0 %418
        %v423 = vunpack.c.l.b16 %v377
        %v424 = vunpack.c.h.b16 %v377
        %v425 = vunpack.c.l.b16 %v378
        %v426 = vpack.c.b16 %v423, %v423
        %v427 = vpack.c.b16 %v424, %v424
        %v428 = vpack.c.b16 %v425, %v425
        %v467 = vunpack.c.l.b16 %v379
        %v468 = vunpack.c.h.b16 %v379
        %v469 = vunpack.c.l.b16 %v380
        %v470 = vunpack.c.h.b16 %v380
        %v471 = vunpack.c.l.b16 %v381
        %v472 = vunpack.c.h.b16 %v381
        %v473 = vunpack.c.l.b16 %v382
        %v474 = vunpack.c.h.b16 %v382
        %v475 = vunpack.c.l.b16 %v383
        %v476 = vunpack.c.h.b16 %v383
        %v477 = vunpack.c.l.b16 %v384
        %v478 = vunpack.c.h.b16 %v384
        %v479 = vunpack.c.l.b16 %v385
        %v480 = vunpack.c.h.b16 %v385
        %v481 = vunpack.c.l.b16 %v386
        %v482 = vunpack.c.h.b16 %v386
        %v483 = vunpack.c.l.b16 %v387
        %v484 = vunpack.c.h.b16 %v387
        %v485 = vunpack.c.l.b16 %v388
        %v486 = vunpack.c.h.b16 %v388
        %v487 = vunpack.c.l.b16 %v389
        %v488 = vunpack.c.h.b16 %v389
        %v489 = vunpack.c.l.b16 %v390
        %v490 = vunpack.c.h.b16 %v390
        %v491 = vunpack.c.l.b16 %v391
        %v492 = vunpack.c.h.b16 %v391
        %v493 = vunpack.c.l.b16 %v392
        %v494 = vunpack.c.h.b16 %v392
        %v495 = vunpack.c.l.b16 %v393
        %v496 = vunpack.c.h.b16 %v393
        %v497 = vunpack.c.l.b16 %v394
        %v498 = vunpack.c.h.b16 %v394
        %v499 = vunpack.c.l.b16 %v395
        %v500 = vunpack.c.h.b16 %v395
        %v501 = vunpack.c.l.b16 %v396
        %v502 = vunpack.c.h.b16 %v396
        %v503 = vunpack.c.l.b16 %v397
        %v504 = vunpack.c.h.b16 %v397
        %v505 = vunpack.c.l.b16 %v398
        %v506 = vunpack.c.h.b16 %v398
        %v507 = vunpack.c.l.b16 %v399
        %v508 = vunpack.c.h.b16 %v399
        %v509 = vunpack.c.l.b16 %v400
        %v510 = vunpack.c.h.b16 %v400
        %v511 = vunpack.c.l.b16 %v401
        %v512 = vunpack.c.h.b16 %v401
        %v513 = vunpack.c.l.b16 %v402
        %v514 = vunpack.c.h.b16 %v402
        %v515 = vunpack.c.l.b16 %v403
        %v516 = vunpack.c.h.b16 %v403
        %v517 = vunpack.c.l.b16 %v404
        %v518 = vunpack.c.h.b16 %v404
        %v519 = vunpack.c.l.b16 %v405
        %v520 = vunpack.c.h.b16 %v405
        %v521 = vunpack.c.l.b16 %v406
        %v522 = vunpack.c.h.b16 %v406
        %v523 = vunpack.c.l.b16 %v407
        %v524 = vunpack.c.h.b16 %v407
        %v525 = vunpack.c.l.b16 %v408
        %v526 = vunpack.c.h.b16 %v408
        %v527 = vunpack.c.l.b16 %v409
        %v528 = vunpack.c.h.b16 %v409
        %v529 = vunpack.c.l.b16 %v410
        %v530 = vunpack.c.h.b16 %v410
        %v531 = vunpack.c.l.b16 %v411
        %v532 = vunpack.c.h.b16 %v411
        %v533 = vunpack.c.l.b16 %v412
        %v534 = vunpack.c.h.b16 %v412
        %v535 = vunpack.c.l.b16 %v413
        %v536 = vunpack.c.h.b16 %v413
        %v537 = vunpack.c.l.b16 %v414
        %v538 = vunpack.c.h.b16 %v414
        %v539 = vpack.c.b16 %v469, %v467
        %v540 = vpack.c.b16 %v470, %v468
        %v541 = vpack.c.b16 %v473, %v471
        %v542 = vpack.c.b16 %v474, %v472
        %v543 = vpack.c.b16 %v477, %v475
        %v544 = vpack.c.b16 %v478, %v476
        %v545 = vpack.c.b16 %v481, %v479
        %v546 = vpack.c.b16 %v482, %v480
        %v547 = vpack.c.b16 %v485, %v483
        %v548 = vpack.c.b16 %v486, %v484
        %v549 = vpack.c.b16 %v489, %v487
        %v550 = vpack.c.b16 %v490, %v488
        %v551 = vpack.c.b16 %v493, %v491
        %v552 = vpack.c.b16 %v494, %v492
        %v553 = vpack.c.b16 %v497, %v495
        %v554 = vpack.c.b16 %v498, %v496
        %v555 = vpack.c.b16 %v501, %v499
        %v556 = vpack.c.b16 %v502, %v500
        %v557 = vpack.c.b16 %v505, %v503
        %v558 = vpack.c.b16 %v506, %v504
        %v559 = vpack.c.b16 %v509, %v507
        %v560 = vpack.c.b16 %v510, %v508
        %v561 = vpack.c.b16 %v513, %v511
        %v562 = vpack.c.b16 %v514, %v512
        %v563 = vpack.c.b16 %v517, %v515
        %v564 = vpack.c.b16 %v518, %v516
        %v565 = vpack.c.b16 %v521, %v519
        %v566 = vpack.c.b16 %v522, %v520
        %v567 = vpack.c.b16 %v525, %v523
        %v568 = vpack.c.b16 %v526, %v524
        %v569 = vpack.c.b16 %v529, %v527
        %v570 = vpack.c.b16 %v530, %v528
        %v571 = vpack.c.b16 %v533, %v531
        %v572 = vpack.c.b16 %v534, %v532
        %v573 = vpack.c.b16 %v537, %v535
        %v574 = vpack.c.b16 %v538, %v536
        %vm611 = vcmask 261120
        %v613 = vsel %vm611, %v428, 0
        %615 = vmatprep.subr.bf16.mxu0 %v540
        %616 = vmatpush1.bf16.msra.mxu0 %v539
        %617 = vmatprep.subr.bf16.mxu0 %v542
        %618 = vmatpush1.bf16.msra.mxu0 %v541
        %619 = vmatprep.subr.bf16.mxu0 %v544
        %620 = vmatpush1.bf16.msra.mxu0 %v543
        %621 = vmatprep.subr.bf16.mxu0 %v546
        %622 = vmatpush1.bf16.msra.mxu0 %v545
        %623 = vmatprep.subr.bf16.mxu0 %v548
        %624 = vmatpush1.bf16.msra.mxu0 %v547
        %625 = vmatprep.subr.bf16.mxu0 %v550
        %626 = vmatpush1.bf16.msra.mxu0 %v549
        %627 = vmatprep.subr.bf16.mxu0 %v552
        %628 = vmatpush1.bf16.msra.mxu0 %v551
        %629 = vmatprep.subr.bf16.mxu0 %v554
        %630 = vmatpush1.bf16.msra.mxu0 %v553
        %631 = vmatprep.subr.bf16.mxu0 %v556
        %632 = vmatpush1.bf16.msra.mxu0 %v555
        %633 = vmatprep.subr.bf16.mxu0 %v558
        %634 = vmatpush1.bf16.msra.mxu0 %v557
        %635 = vmatprep.subr.bf16.mxu0 %v560
        %636 = vmatpush1.bf16.msra.mxu0 %v559
        %637 = vmatprep.subr.bf16.mxu0 %v562
        %638 = vmatpush1.bf16.msra.mxu0 %v561
        %639 = vmatprep.subr.bf16.mxu0 %v564
        %640 = vmatpush1.bf16.msra.mxu0 %v563
        %641 = vmatprep.subr.bf16.mxu0 %v566
        %642 = vmatpush1.bf16.msra.mxu0 %v565
        %643 = vmatprep.subr.bf16.mxu0 %v568
        %644 = vmatpush1.bf16.msra.mxu0 %v567
        %645 = vmatprep.subr.bf16.mxu0 %v570
        %646 = vmatpush1.bf16.msra.mxu0 %v569
        %647 = vmatprep.mubr.bf16.mxu0 %v427
        %648 = vmatmul.mubr.bf16.gmra.mrb[0].mxu0 %v426
        %v649 = vpop.f32.mrb[0].mxu0
        %v650 = vadd.f32 %v419, %v649
        %v651 = vpop.f32.mrb[0].mxu0
        %v652 = vadd.f32 %v419, %v651
        %v653 = vpop.f32.mrb[0].mxu0
        %v654 = vpop.f32.mrb[0].mxu0
        %655 = vdwg.mxu0
        %656 = vmatprep.subr.bf16.mxu0 %v572
        %657 = vmatpush1.bf16.msra.mxu0 %v571
        %658 = vmatprep.subr.bf16.mxu0 %v574
        %659 = vmatpush1.bf16.msra.mxu0 %v573
        %660 = vmatprep.subr.bf16.mxu0 0
        %661 = vmatpush1.bf16.msra.mxu0 0
        %662 = vmatprep.subr.bf16.mxu0 0
        %663 = vmatpush1.bf16.msra.mxu0 0
        %664 = vmatprep.subr.bf16.mxu0 0
        %665 = vmatpush1.bf16.msra.mxu0 0
        %666 = vmatprep.subr.bf16.mxu0 0
        %667 = vmatpush1.bf16.msra.mxu0 0
        %668 = vmatprep.subr.bf16.mxu0 0
        %669 = vmatpush1.bf16.msra.mxu0 0
        %670 = vmatprep.subr.bf16.mxu0 0
        %671 = vmatpush1.bf16.msra.mxu0 0
        %672 = vmatprep.subr.bf16.mxu0 0
        %673 = vmatpush1.bf16.msra.mxu0 0
        %674 = vmatprep.subr.bf16.mxu0 0
        %675 = vmatpush1.bf16.msra.mxu0 0
        %676 = vmatprep.subr.bf16.mxu0 0
        %677 = vmatpush1.bf16.msra.mxu0 0
        %678 = vmatprep.subr.bf16.mxu0 0
        %679 = vmatpush1.bf16.msra.mxu0 0
        %680 = vmatprep.subr.bf16.mxu0 0
        %681 = vmatpush1.bf16.msra.mxu0 0
        %682 = vmatprep.subr.bf16.mxu0 0
        %683 = vmatpush1.bf16.msra.mxu0 0
        %684 = vmatprep.subr.bf16.mxu0 0
        %685 = vmatpush1.bf16.msra.mxu0 0
        %686 = vmatprep.subr.bf16.mxu0 0
        %687 = vmatpush1.bf16.msra.mxu0 0
        %688 = vmatprep.mubr.bf16.mxu0 0
        %689 = vmatmul.mubr.bf16.gmra.mrb[0].mxu0 %v613
        %v690 = vpop.f32.mrb[0].mxu0
        %v691 = vadd.f32 %v650, %v690
        %v692 = vpop.f32.mrb[0].mxu0
        %v693 = vadd.f32 %v652, %v692
        %v694 = vpop.f32.mrb[0].mxu0
        %v695 = vpop.f32.mrb[0].mxu0
        %696 = vdwg.mxu0
        %s697 = sld [smem:[#allocation2]]
        %vm698 = vcmp.ge.f32.partialorder %v691, 0.0
        %vm699 = vcmp.ge.f32.partialorder %v693, 0.0
        %v700 = vstv %s697
        %v701 = vmul.f32 %v700, %v691
        %v702 = vmul.f32 %v700, %v693
        %v703 = vsel %vm698, %v691, %v701
        %v704 = vsel %vm699, %v693, %v702
        %705 = vst [vmem:[%s374] sm:$0xff] %v703
        %706 = vst [vmem:[%s374 + $0x8] sm:$0xff] %v704
        %s707 = smul.u32 2, %s16
        %p708 = scmp.lt.s32.totalorder %s707, 3
        %s709 = scalar_select %p708, %s707, 3
        %s710 = smul.addr %s709, 8
        %s711 = scalar_lea.vmem %s4, %s710
        // Predicated region
        $region75: #{_lambda_.14} parent=69 // pred_check
          %p712 = pneg %p123
        $region76: #{_lambda_.14} parent=69 // pred_check_branch
          %714 = sbr.rel (%p712) target = $region78
        $region77: #{_lambda_.14} parent=69 // pred_region
          %s715 = smul.u32 2, %s16
        $region78: #{_lambda_.14} parent=69 // pred_fallthru
          _
      $region70: #{_lambda_.14} parent=5 // pred_fallthru
        _
      %p716 = scmp.le.s32.totalorder 2, %s11
      // Predicated region
      $region79: #{_lambda_.14} parent=5 // pred_check
        %p717 = pneg %p716
      $region80: #{_lambda_.14} parent=5 // pred_check_branch
        %719 = sbr.rel (%p717) target = $region82
      $region81: #{_lambda_.14} parent=5 // pred_region
        %s720 = ssub.s32 %s11, 2
        // Predicated region
        $region83: #{_lambda_.14} parent=81 // pred_check
          %p721 = pneg %p129
        $region84: #{_lambda_.14} parent=81 // pred_check_branch
          %723 = sbr.rel (%p721) target = $region86
        $region85: #{_lambda_.14} parent=81 // pred_region
          %s724 = smul.u32 2, %s17
          %p725 = scmp.lt.s32.totalorder %s724, 3
          %s726 = scalar_select %p725, %s724, 3
          %s727 = smul.addr %s726, 8
          %s728 = scalar_lea.vmem %s4, %s727
        $region86: #{_lambda_.14} parent=81 // pred_fallthru
          _
      $region82: #{_lambda_.14} parent=5 // pred_fallthru
        _
    $region6: #{_lambda_.14} parent=1 // loop_footer
      %s15 = sadd.s32 1, %s11
    $region7: #{_lambda_.14} parent=1 // loop_footer_branch
      %10 = sbr.rel target = $region3
    $region8: #{_lambda_.14} parent=1 // loop_exit
      _

// kernel: _lambda_.15
$region0: #{_lambda_.15}
  #allocation0 [shape = 'u32[]', space=smem, size = 0x4, offset = 0x4, fixed_abs, tag = 'smem constant byte address 0x4 - core index']
  #allocation1 [shape = 'u32[144,128]{1,0:T(1,128)}', space=vmem, size = 0x12000, scoped, tag = 'internal scratch']
  #allocation2 [shape = 'f32[1]{0:T(128)S(6)}', space=smem, size = 0x200, scoped, tag = 'scoped memory for _lambda_.15']
  %s0 = inlined_call_operand.vmem [shape: bf16[32,72], index: 0, kind: input, shape index: {}]
  %s1 = inlined_call_operand.vmem [shape: bf16[72,512], index: 1, kind: input, shape index: {}]
  %s2 = inlined_call_operand.vmem [shape: f32[32,1], index: 2, kind: input, shape index: {}]
  %s3 = inlined_call_operand.<no memory space> [shape: f32[1], index: 3, kind: input, shape index: {}]
  %s4 = inlined_call_operand.vmem [shape: f32[32,512], index: 4, kind: output, shape index: {}]
  %s5 = sld [smem:[#allocation0]]
  $region106: #{_lambda_.15} parent=0
    _
  %s7 = ssub.s32 1, %s5
  %s8 = scalar_select 0, %s7, %s5
  %9 = sst [smem:[#allocation2]] %s3
  $region1: #{_lambda_.15} parent=0
    #allocation3 [shape = 'u8[73728]{0}', space=vmem, size = 0x12000, scoped, tag = 'input window, operand 1']
    #allocation4 [shape = 'u8[65536]{0}', space=vmem, size = 0x10000, scoped, tag = 'output window, operand 0']
    loop: start=0, step=1, limit=4
    $region2: #{_lambda_.15} parent=1 // loop_pre_header
      _
    $region3: #{_lambda_.15} parent=1 // loop_header
      %s11 = sphi 0, %s15
      %p12 = scmp.ge.s32.totalorder %s11, 4
      %s19 = sphi 0, %s19
      %s21 = sphi 0, %s19
      %s22 = sphi 0, %s21
      %s36 = sphi 0, %s22
      %s42 = sphi 0, %s44
      %s45 = sphi 0, %s42
      %s46 = sphi 0, %s45
      %s62 = sphi 0, %s46
      %s66 = sphi 0, %s66
      %s68 = sphi 0, %s66
      %s69 = sphi 0, %s68
      %s83 = sphi 0, %s69
      %s87 = sphi 0, %s87
      %s89 = sphi 0, %s87
      %s90 = sphi 0, %s89
      %s104 = sphi 0, %s90
      %s110 = sphi 0, %s112
      %s113 = sphi 0, %s110
      %s114 = sphi 0, %s113
      %s130 = sphi 0, %s114
    $region4: #{_lambda_.15} parent=1 // loop_header_branch
      %14 = sbr.rel (%p12) target = $region8
    $region5: #{_lambda_.15} parent=1 // loop_body
      %s16 = ssub.s32 %s11, 1
      %s17 = ssub.s32 %s11, 2
      %s18 = sadd.s32 %s11, 1
      %s20 = sadd.s32 %s19, 1
      %p23 = scmp.eq.s32.totalorder %s11, 1
      %p24 = scmp.ne.s32.totalorder %s19, %s21
      %p25 = scmp.eq.s32.totalorder %s11, 0
      %p26 = por %p24, %p25
      %p27 = scmp.ne.s32.totalorder %s19, %s21
      %p28 = scmp.eq.s32.totalorder %s16, 1
      %p29 = por %p27, %p28
      %p30 = scmp.ne.s32.totalorder %s21, %s22
      %p31 = scmp.eq.s32.totalorder %s16, 0
      %p32 = por %p30, %p31
      %p33 = scmp.ne.s32.totalorder %s21, %s22
      %p34 = scmp.eq.s32.totalorder %s17, 1
      %p35 = por %p33, %p34
      %p37 = scmp.ne.s32.totalorder %s22, %s36
      %p38 = scmp.eq.s32.totalorder %s17, 0
      %p39 = por %p37, %p38
      %s40 = ssub.s32 %s11, %s18
      %p41 = scmp.eq.s32.totalorder %s40, 0
      %s43 = sadd.s32 %s42, 1
      %s44 = scalar_select %p41, %s42, %s43
      %p47 = pneg %p41
      %p48 = scmp.eq.s32.totalorder %s11, 1
      %p49 = por %p47, %p48
      %p50 = scmp.ne.s32.totalorder %s42, %s45
      %p51 = scmp.eq.s32.totalorder %s11, 0
      %p52 = por %p50, %p51
      %p53 = scmp.ne.s32.totalorder %s42, %s45
      %p54 = scmp.eq.s32.totalorder %s16, 1
      %p55 = por %p53, %p54
      %p56 = scmp.ne.s32.totalorder %s45, %s46
      %p57 = scmp.eq.s32.totalorder %s16, 0
      %p58 = por %p56, %p57
      %p59 = scmp.ne.s32.totalorder %s45, %s46
      %p60 = scmp.eq.s32.totalorder %s17, 1
      %p61 = por %p59, %p60
      %p63 = scmp.ne.s32.totalorder %s46, %s62
      %p64 = scmp.eq.s32.totalorder %s17, 0
      %p65 = por %p63, %p64
      %s67 = sadd.s32 %s66, 1
      %p70 = scmp.eq.s32.totalorder %s11, 1
      %p71 = scmp.ne.s32.totalorder %s66, %s68
      %p72 = scmp.eq.s32.totalorder %s11, 0
      %p73 = por %p71, %p72
      %p74 = scmp.ne.s32.totalorder %s66, %s68
      %p75 = scmp.eq.s32.totalorder %s16, 1
      %p76 = por %p74, %p75
      %p77 = scmp.ne.s32.totalorder %s68, %s69
      %p78 = scmp.eq.s32.totalorder %s16, 0
      %p79 = por %p77, %p78
      %p80 = scmp.ne.s32.totalorder %s68, %s69
      %p81 = scmp.eq.s32.totalorder %s17, 1
      %p82 = por %p80, %p81
      %p84 = scmp.ne.s32.totalorder %s69, %s83
      %p85 = scmp.eq.s32.totalorder %s17, 0
      %p86 = por %p84, %p85
      %s88 = sadd.s32 %s87, 1
      %p91 = scmp.eq.s32.totalorder %s11, 1
      %p92 = scmp.ne.s32.totalorder %s87, %s89
      %p93 = scmp.eq.s32.totalorder %s11, 0
      %p94 = por %p92, %p93
      %p95 = scmp.ne.s32.totalorder %s87, %s89
      %p96 = scmp.eq.s32.totalorder %s16, 1
      %p97 = por %p95, %p96
      %p98 = scmp.ne.s32.totalorder %s89, %s90
      %p99 = scmp.eq.s32.totalorder %s16, 0
      %p100 = por %p98, %p99
      %p101 = scmp.ne.s32.totalorder %s89, %s90
      %p102 = scmp.eq.s32.totalorder %s17, 1
      %p103 = por %p101, %p102
      %p105 = scmp.ne.s32.totalorder %s90, %s104
      %p106 = scmp.eq.s32.totalorder %s17, 0
      %p107 = por %p105, %p106
      %s108 = ssub.s32 %s11, %s18
      %p109 = scmp.eq.s32.totalorder %s108, 0
      %s111 = sadd.s32 %s110, 1
      %s112 = scalar_select %p109, %s110, %s111
      %p115 = pneg %p109
      %p116 = scmp.eq.s32.totalorder %s11, 1
      %p117 = por %p115, %p116
      %p118 = scmp.ne.s32.totalorder %s110, %s113
      %p119 = scmp.eq.s32.totalorder %s11, 0
      %p120 = por %p118, %p119
      %p121 = scmp.ne.s32.totalorder %s110, %s113
      %p122 = scmp.eq.s32.totalorder %s16, 1
      %p123 = por %p121, %p122
      %p124 = scmp.ne.s32.totalorder %s113, %s114
      %p125 = scmp.eq.s32.totalorder %s16, 0
      %p126 = por %p124, %p125
      %p127 = scmp.ne.s32.totalorder %s113, %s114
      %p128 = scmp.eq.s32.totalorder %s17, 1
      %p129 = por %p127, %p128
      %p131 = scmp.ne.s32.totalorder %s114, %s130
      %p132 = scmp.eq.s32.totalorder %s17, 0
      %p133 = por %p131, %p132
      %p134 = scmp.le.s32.totalorder 1, %s11
      %p135 = scmp.lt.s32.totalorder %s11, 3
      %p136 = pnand %p134, %p135
      %p137 = pneg %p136
      // Predicated region
      $region9: #{_lambda_.15} parent=5 // pred_check
        _
      $region10: #{_lambda_.15} parent=5 // pred_check_branch
        %139 = sbr.rel (%p136) target = $region12
      $region11: #{_lambda_.15} parent=5 // pred_region
        %s140 = ssub.s32 %s11, 1
        // Predicated region
        $region13: #{_lambda_.15} parent=11 // pred_check
          %p141 = pneg %p32
        $region14: #{_lambda_.15} parent=11 // pred_check_branch
          %143 = sbr.rel (%p141) target = $region16
        $region15: #{_lambda_.15} parent=11 // pred_region
          _
        $region16: #{_lambda_.15} parent=11 // pred_fallthru
          _
        // Predicated region
        $region17: #{_lambda_.15} parent=11 // pred_check
          %p144 = pneg %p79
        $region18: #{_lambda_.15} parent=11 // pred_check_branch
          %146 = sbr.rel (%p144) target = $region20
        $region19: #{_lambda_.15} parent=11 // pred_region
          _
        $region20: #{_lambda_.15} parent=11 // pred_fallthru
          _
        // Predicated region
        $region21: #{_lambda_.15} parent=11 // pred_check
          %p147 = pneg %p100
        $region22: #{_lambda_.15} parent=11 // pred_check_branch
          %149 = sbr.rel (%p147) target = $region24
        $region23: #{_lambda_.15} parent=11 // pred_region
          _
        $region24: #{_lambda_.15} parent=11 // pred_fallthru
          _
      $region12: #{_lambda_.15} parent=5 // pred_fallthru
        _
      %p150 = scmp.lt.s32.totalorder %s11, 2
      // Predicated region
      $region25: #{_lambda_.15} parent=5 // pred_check
        %p151 = pneg %p150
      $region26: #{_lambda_.15} parent=5 // pred_check_branch
        %153 = sbr.rel (%p151) target = $region28
      $region27: #{_lambda_.15} parent=5 // pred_region
        // Predicated region
        $region29: #{_lambda_.15} parent=27 // pred_check
          %p154 = pneg %p52
        $region30: #{_lambda_.15} parent=27 // pred_check_branch
          %156 = sbr.rel (%p154) target = $region32
        $region31: #{_lambda_.15} parent=27 // pred_region
          %s157 = sand.u32 %s42, 1
          %s158 = sand.u32 %s42, 1
          %s159 = smul.addr %s158, 72
          %s160 = scalar_lea.vmem [#allocation3], %s159
          %s161 = smul.u32 2, %s11
          %s162 = smul.addr %s161, 4
          %s163 = scalar_lea.vmem %s1, %s162
          // Predicated region
          $region33: #{_lambda_.15} parent=31 // pred_check
            _
          $region34: #{_lambda_.15} parent=31 // pred_check_branch
            %165 = sbr.rel (0) target = $region36
          $region35: #{_lambda_.15} parent=31 // pred_region
            // Predicated region
            $region37: #{_lambda_.15} parent=35 // pred_check
              _
            $region38: #{_lambda_.15} parent=35 // pred_check_branch
              %167 = sbr.rel (0) target = $region40
            $region39: #{_lambda_.15} parent=35 // pred_region
              // Predicated region
              $region52: #{_lambda_.15} parent=39 // pred_check
                _
              $region53: #{_lambda_.15} parent=39 // pred_check_branch
                %198 = sbr.rel (0) target = $region55
              $region54: #{_lambda_.15} parent=39 // pred_region
                loop: start=0, step=1, limit=1
                $region56: #{_lambda_.15} parent=54 // loop_pre_header
                  _
                $region57: #{_lambda_.15} parent=54 // loop_header
                  %s200 = sphi 0, %s204
                  %p201 = scmp.ge.s32.totalorder %s200, 1
                  %s205 = sphi %s163, %s163
                  %s206 = sphi %s160, %s160
                $region58: #{_lambda_.15} parent=54 // loop_header_branch
                  %203 = sbr.rel (%p201) target = $region62
                $region59: #{_lambda_.15} parent=54 // loop_body
                  %v207 = vld [vmem:[%s205] sm:$0xff]
                  %208 = vst [vmem:[%s206] sm:$0xff] %v207
                  %v209 = vld [vmem:[%s205 + $0x10] sm:$0xff]
                  %210 = vst [vmem:[%s206 + $0x8] sm:$0xff] %v209
                  %v211 = vld [vmem:[%s205 + $0x20] sm:$0xff]
                  %212 = vst [vmem:[%s206 + $0x10] sm:$0xff] %v211
                  %v213 = vld [vmem:[%s205 + $0x30] sm:$0xff]
                  %214 = vst [vmem:[%s206 + $0x18] sm:$0xff] %v213
                  %v215 = vld [vmem:[%s205 + $0x40] sm:$0xff]
                  %216 = vst [vmem:[%s206 + $0x20] sm:$0xff] %v215
                  %v217 = vld [vmem:[%s205 + $0x50] sm:$0xff]
                  %218 = vst [vmem:[%s206 + $0x28] sm:$0xff] %v217
                  %v219 = vld [vmem:[%s205 + $0x60] sm:$0xff]
                  %220 = vst [vmem:[%s206 + $0x30] sm:$0xff] %v219
                  %v221 = vld [vmem:[%s205 + $0x70] sm:$0xff]
                  %222 = vst [vmem:[%s206 + $0x38] sm:$0xff] %v221
                  %v223 = vld [vmem:[%s205 + $0x80] sm:$0xff]
                  %224 = vst [vmem:[%s206 + $0x40] sm:$0xff] %v223
                $region60: #{_lambda_.15} parent=54 // loop_footer
                  %s204 = sadd.s32 1, %s200
                $region61: #{_lambda_.15} parent=54 // loop_footer_branch
                  %199 = sbr.rel target = $region57
                $region62: #{_lambda_.15} parent=54 // loop_exit
                  _
              $region55: #{_lambda_.15} parent=39 // pred_fallthru
                _
              // Predicated region
              $region63: #{_lambda_.15} parent=39 // pred_check
                _
              $region64: #{_lambda_.15} parent=39 // pred_check_branch
                %226 = sbr.rel target = $region66
              $region65: #{_lambda_.15} parent=39 // pred_region
                _
              $region66: #{_lambda_.15} parent=39 // pred_fallthru
                _
            $region40: #{_lambda_.15} parent=35 // pred_fallthru
              _
            // Predicated region
            $region41: #{_lambda_.15} parent=35 // pred_check
              _
            $region42: #{_lambda_.15} parent=35 // pred_check_branch
              %169 = sbr.rel target = $region44
            $region43: #{_lambda_.15} parent=35 // pred_region
              loop: start=0, step=1, limit=1
              $region45: #{_lambda_.15} parent=43 // loop_pre_header
                _
              $region46: #{_lambda_.15} parent=43 // loop_header
                %s172 = sphi 0, %s176
                %p173 = scmp.ge.s32.totalorder %s172, 1
                %s177 = sphi %s163, %s163
                %s178 = sphi %s160, %s160
              $region47: #{_lambda_.15} parent=43 // loop_header_branch
                %175 = sbr.rel (%p173) target = $region51
              $region48: #{_lambda_.15} parent=43 // loop_body
                %v179 = vld [vmem:[%s177] sm:$0xff]
                %180 = vst [vmem:[%s178] sm:$0xff] %v179
                %v181 = vld [vmem:[%s177 + $0x10] sm:$0xff]
                %182 = vst [vmem:[%s178 + $0x8] sm:$0xff] %v181
                %v183 = vld [vmem:[%s177 + $0x20] sm:$0xff]
                %184 = vst [vmem:[%s178 + $0x10] sm:$0xff] %v183
                %v185 = vld [vmem:[%s177 + $0x30] sm:$0xff]
                %186 = vst [vmem:[%s178 + $0x18] sm:$0xff] %v185
                %v187 = vld [vmem:[%s177 + $0x40] sm:$0xff]
                %188 = vst [vmem:[%s178 + $0x20] sm:$0xff] %v187
                %v189 = vld [vmem:[%s177 + $0x50] sm:$0xff]
                %190 = vst [vmem:[%s178 + $0x28] sm:$0xff] %v189
                %v191 = vld [vmem:[%s177 + $0x60] sm:$0xff]
                %192 = vst [vmem:[%s178 + $0x30] sm:$0xff] %v191
                %v193 = vld [vmem:[%s177 + $0x70] sm:$0xff]
                %194 = vst [vmem:[%s178 + $0x38] sm:$0xff] %v193
                %v195 = vld [vmem:[%s177 + $0x80] sm:$0xff]
                %196 = vst [vmem:[%s178 + $0x40] sm:$0xff] %v195
              $region49: #{_lambda_.15} parent=43 // loop_footer
                %s176 = sadd.s32 1, %s172
              $region50: #{_lambda_.15} parent=43 // loop_footer_branch
                %171 = sbr.rel target = $region46
              $region51: #{_lambda_.15} parent=43 // loop_exit
                _
            $region44: #{_lambda_.15} parent=35 // pred_fallthru
              _
          $region36: #{_lambda_.15} parent=31 // pred_fallthru
            _
          %227 = vnop
        $region32: #{_lambda_.15} parent=27 // pred_fallthru
          _
      $region28: #{_lambda_.15} parent=5 // pred_fallthru
        _
      %p228 = scmp.le.s32.totalorder 1, %s11
      %p229 = scmp.lt.s32.totalorder %s11, 3
      %p230 = pnand %p228, %p229
      %p231 = pneg %p230
      // Predicated region
      $region67: #{_lambda_.15} parent=5 // pred_check
        _
      $region68: #{_lambda_.15} parent=5 // pred_check_branch
        %233 = sbr.rel (%p230) target = $region70
      $region69: #{_lambda_.15} parent=5 // pred_region
        %s234 = ssub.s32 %s11, 1
        %s235 = sand.u32 %s45, 1
        %s236 = sand.u32 %s45, 1
        %s237 = smul.addr %s236, 72
        %s238 = scalar_lea.vmem [#allocation3], %s237
        // Predicated region
        $region71: #{_lambda_.15} parent=69 // pred_check
          %p239 = pneg %p58
        $region72: #{_lambda_.15} parent=69 // pred_check_branch
          %241 = sbr.rel (%p239) target = $region74
        $region73: #{_lambda_.15} parent=69 // pred_region
          _
        $region74: #{_lambda_.15} parent=69 // pred_fallthru
          _
        %p242 = pneg %p32
        %p243 = pneg %p29
        %s244 = sand.u32 %s45, 1
        %s245 = sand.u32 %s45, 1
        %s246 = smul.addr %s245, 72
        %s247 = scalar_lea.vmem [#allocation3], %s246
        %p248 = pneg %p58
        %p249 = pneg %p55
        %p250 = pneg %p79
        %p251 = pneg %p76
        %p252 = pneg %p100
        %p253 = pneg %p97
        %p254 = pneg %p126
        %p255 = pneg %p123
        %s256 = sand.u32 %s113, 1
        %s257 = sand.u32 %s113, 1
        %s258 = smul.addr %s257, 64
        %s259 = scalar_lea.vmem [#allocation4], %s258
        %s260 = smul.u32 2, %s16
        %s261 = smul.u32 2, %s16
        %v263 = vld [vmem:[%s0] sm:$0xf]
        %v264 = vld [vmem:[%s0 + $0x4] sm:$0xf]
        %v265 = vld [vmem:[%s0 + $0x8] sm:$0xf]
        %v266 = vld [vmem:[%s0 + $0xc] sm:$0xf]
        %v267 = vld [vmem:[%s238] sm:$0xff]
        %v268 = vld [vmem:[%s238 + $0x8] sm:$0xff]
        %v269 = vld [vmem:[%s238 + $0x10] sm:$0xff]
        %v270 = vld [vmem:[%s238 + $0x18] sm:$0xff]
        %v271 = vld [vmem:[%s238 + $0x20] sm:$0xff]
        %v272 = vld [vmem:[%s238 + $0x28] sm:$0xff]
        %v273 = vld [vmem:[%s238 + $0x30] sm:$0xff]
        %v274 = vld [vmem:[%s238 + $0x38] sm:$0xff]
        %v275 = vld [vmem:[%s238 + $0x40] sm:$0xff]
        %v276 = vld [vmem:[%s2] sm:$0xff]
        %v277 = vld [vmem:[%s2 + $0x8] sm:$0xff]
        %v278 = vld [vmem:[%s2 + $0x10] sm:$0xff]
        %v279 = vld [vmem:[%s2 + $0x18] sm:$0xff]
        %281 = vset.pattern.permute.xlu0 0
        %282 = vperm.xlu0 %281, %v276
        %v283 = vpop.permute.xlu0 %282
        %286 = vset.pattern.permute.xlu0 0
        %287 = vperm.xlu0 %286, %v277
        %v288 = vpop.permute.xlu0 %287
        %291 = vset.pattern.permute.xlu0 0
        %292 = vperm.xlu0 %291, %v278
        %v293 = vpop.permute.xlu0 %292
        %296 = vset.pattern.permute.xlu0 0
        %297 = vperm.xlu0 %296, %v279
        %v298 = vpop.permute.xlu0 %297
        %v304 = vunpack.c.l.b16 %v263
        %v305 = vunpack.c.l.b16 %v264
        %v306 = vunpack.c.l.b16 %v265
        %v307 = vunpack.c.l.b16 %v266
        %v308 = vpack.c.b16 %v305, %v304
        %v309 = vpack.c.b16 %v307, %v306
        %v319 = vunpack.c.l.b16 %v267
        %v320 = vunpack.c.h.b16 %v267
        %v321 = vunpack.c.l.b16 %v268
        %v322 = vunpack.c.h.b16 %v268
        %v323 = vunpack.c.l.b16 %v269
        %v324 = vunpack.c.h.b16 %v269
        %v325 = vunpack.c.l.b16 %v270
        %v326 = vunpack.c.h.b16 %v270
        %v327 = vunpack.c.l.b16 %v271
        %v328 = vunpack.c.h.b16 %v271
        %v329 = vunpack.c.l.b16 %v272
        %v330 = vunpack.c.h.b16 %v272
        %v331 = vunpack.c.l.b16 %v273
        %v332 = vunpack.c.h.b16 %v273
        %v333 = vunpack.c.l.b16 %v274
        %v334 = vunpack.c.h.b16 %v274
        %v335 = vunpack.c.l.b16 %v275
        %v336 = vunpack.c.h.b16 %v275
        %v337 = vpack.c.b16 %v321, %v319
        %v338 = vpack.c.b16 %v322, %v320
        %v339 = vpack.c.b16 %v325, %v323
        %v340 = vpack.c.b16 %v326, %v324
        %v341 = vpack.c.b16 %v329, %v327
        %v342 = vpack.c.b16 %v330, %v328
        %v343 = vpack.c.b16 %v333, %v331
        %v344 = vpack.c.b16 %v334, %v332
        %v345 = vpack.c.b16 %v335, %v335
        %v346 = vpack.c.b16 %v336, %v336
        %vm355 = vcmask 588800
        %v357 = vsel %vm355, %v308, 0
        %v360 = vsel %vm355, %v309, 0
        %vm362 = vcmask 1043456
        %v364 = vsel %vm362, %v345, 0
        %v367 = vsel %vm362, %v346, 0
        %369 = vmatprep.subr.bf16.mxu0 %v338
        %370 = vmatpush1.bf16.msra.mxu0 %v337
        %371 = vmatprep.subr.bf16.mxu0 %v340
        %372 = vmatpush1.bf16.msra.mxu0 %v339
        %373 = vmatprep.subr.bf16.mxu0 %v342
        %374 = vmatpush1.bf16.msra.mxu0 %v341
        %375 = vmatprep.subr.bf16.mxu0 %v344
        %376 = vmatpush1.bf16.msra.mxu0 %v343
        %377 = vmatprep.subr.bf16.mxu0 %v367
        %378 = vmatpush1.bf16.msra.mxu0 %v364
        %379 = vmatprep.subr.bf16.mxu0 0
        %380 = vmatpush1.bf16.msra.mxu0 0
        %381 = vmatprep.subr.bf16.mxu0 0
        %382 = vmatpush1.bf16.msra.mxu0 0
        %383 = vmatprep.subr.bf16.mxu0 0
        %384 = vmatpush1.bf16.msra.mxu0 0
        %385 = vmatprep.subr.bf16.mxu0 0
        %386 = vmatpush1.bf16.msra.mxu0 0
        %387 = vmatprep.subr.bf16.mxu0 0
        %388 = vmatpush1.bf16.msra.mxu0 0
        %389 = vmatprep.subr.bf16.mxu0 0
        %390 = vmatpush1.bf16.msra.mxu0 0
        %391 = vmatprep.subr.bf16.mxu0 0
        %392 = vmatpush1.bf16.msra.mxu0 0
        %393 = vmatprep.subr.bf16.mxu0 0
        %394 = vmatpush1.bf16.msra.mxu0 0
        %395 = vmatprep.subr.bf16.mxu0 0
        %396 = vmatpush1.bf16.msra.mxu0 0
        %397 = vmatprep.subr.bf16.mxu0 0
        %398 = vmatpush1.bf16.msra.mxu0 0
        %399 = vmatprep.subr.bf16.mxu0 0
        %400 = vmatpush1.bf16.msra.mxu0 0
        %401 = vmatprep.mubr.bf16.mxu0 0
        %402 = vmatmul.mubr.bf16.gmra.mrb[0].mxu0 %v357
        %v403 = vpop.f32.mrb[0].mxu0
        %v404 = vadd.f32 %v283, %v403
        %v405 = vpop.f32.mrb[0].mxu0
        %v406 = vadd.f32 %v283, %v405
        %v407 = vpop.f32.mrb[0].mxu0
        %v408 = vadd.f32 %v288, %v407
        %v409 = vpop.f32.mrb[0].mxu0
        %v410 = vadd.f32 %v288, %v409
        %411 = vmatprep.mubr.bf16.mxu0 0
        %412 = vmatmul.mubr.bf16.gmra.mrb[0].mxu0 %v360
        %v413 = vpop.f32.mrb[0].mxu0
        %v414 = vadd.f32 %v293, %v413
        %v415 = vpop.f32.mrb[0].mxu0
        %v416 = vadd.f32 %v293, %v415
        %v417 = vpop.f32.mrb[0].mxu0
        %v418 = vadd.f32 %v298, %v417
        %v419 = vpop.f32.mrb[0].mxu0
        %v420 = vadd.f32 %v298, %v419
        %421 = vdwg.mxu0
        %s422 = sld [smem:[#allocation2]]
        %vm423 = vcmp.ge.f32.partialorder %v404, 0.0
        %vm424 = vcmp.ge.f32.partialorder %v406, 0.0
        %vm425 = vcmp.ge.f32.partialorder %v408, 0.0
        %vm426 = vcmp.ge.f32.partialorder %v410, 0.0
        %vm427 = vcmp.ge.f32.partialorder %v414, 0.0
        %vm428 = vcmp.ge.f32.partialorder %v416, 0.0
        %vm429 = vcmp.ge.f32.partialorder %v418, 0.0
        %vm430 = vcmp.ge.f32.partialorder %v420, 0.0
        %v431 = vstv %s422
        %v432 = vmul.f32 %v431, %v404
        %v433 = vmul.f32 %v431, %v406
        %v434 = vmul.f32 %v431, %v408
        %v435 = vmul.f32 %v431, %v410
        %v436 = vmul.f32 %v431, %v414
        %v437 = vmul.f32 %v431, %v416
        %v438 = vmul.f32 %v431, %v418
        %v439 = vmul.f32 %v431, %v420
        %v440 = vsel %vm423, %v404, %v432
        %v441 = vsel %vm424, %v406, %v433
        %v442 = vsel %vm425, %v408, %v434
        %v443 = vsel %vm426, %v410, %v435
        %v444 = vsel %vm427, %v414, %v436
        %v445 = vsel %vm428, %v416, %v437
        %v446 = vsel %vm429, %v418, %v438
        %v447 = vsel %vm430, %v420, %v439
        %448 = vst [vmem:[%s259] sm:$0xff] %v440
        %449 = vst [vmem:[%s259 + $0x8] sm:$0xff] %v441
        %450 = vst [vmem:[%s259 + $0x10] sm:$0xff] %v442
        %451 = vst [vmem:[%s259 + $0x18] sm:$0xff] %v443
        %452 = vst [vmem:[%s259 + $0x20] sm:$0xff] %v444
        %453 = vst [vmem:[%s259 + $0x28] sm:$0xff] %v445
        %454 = vst [vmem:[%s259 + $0x30] sm:$0xff] %v446
        %455 = vst [vmem:[%s259 + $0x38] sm:$0xff] %v447
        %s456 = sand.u32 %s113, 1
        %s457 = sand.u32 %s113, 1
        %s458 = smul.addr %s457, 64
        %s459 = scalar_lea.vmem [#allocation4], %s458
        // Predicated region
        $region75: #{_lambda_.15} parent=69 // pred_check
          %p460 = pneg %p123
        $region76: #{_lambda_.15} parent=69 // pred_check_branch
          %462 = sbr.rel (%p460) target = $region78
        $region77: #{_lambda_.15} parent=69 // pred_region
          %s463 = smul.u32 2, %s16
          %s464 = smul.addr %s463, 8
          %s465 = scalar_lea.vmem %s4, %s464
          // Predicated region
          $region79: #{_lambda_.15} parent=77 // pred_check
            _
          $region80: #{_lambda_.15} parent=77 // pred_check_branch
            %467 = sbr.rel (0) target = $region82
          $region81: #{_lambda_.15} parent=77 // pred_region
            // Predicated region
            $region83: #{_lambda_.15} parent=81 // pred_check
              _
            $region84: #{_lambda_.15} parent=81 // pred_check_branch
              %469 = sbr.rel (0) target = $region86
            $region85: #{_lambda_.15} parent=81 // pred_region
              loop: start=0, step=1, limit=1
              $region87: #{_lambda_.15} parent=85 // loop_pre_header
                _
              $region88: #{_lambda_.15} parent=85 // loop_header
                %s471 = sphi 0, %s475
                %p472 = scmp.ge.s32.totalorder %s471, 1
                %s476 = sphi %s459, %s459
                %s477 = sphi %s465, %s465
              $region89: #{_lambda_.15} parent=85 // loop_header_branch
                %474 = sbr.rel (%p472) target = $region93
              $region90: #{_lambda_.15} parent=85 // loop_body
                %v478 = vld [vmem:[%s476] sm:$0xff]
                %479 = vst [vmem:[%s477] sm:$0xff] %v478
                %v480 = vld [vmem:[%s476 + $0x8] sm:$0xff]
                %481 = vst [vmem:[%s477 + $0x8] sm:$0xff] %v480
                %v482 = vld [vmem:[%s476 + $0x10] sm:$0xff]
                %483 = vst [vmem:[%s477 + $0x20] sm:$0xff] %v482
                %v484 = vld [vmem:[%s476 + $0x18] sm:$0xff]
                %485 = vst [vmem:[%s477 + $0x28] sm:$0xff] %v484
                %v486 = vld [vmem:[%s476 + $0x20] sm:$0xff]
                %487 = vst [vmem:[%s477 + $0x40] sm:$0xff] %v486
                %v488 = vld [vmem:[%s476 + $0x28] sm:$0xff]
                %489 = vst [vmem:[%s477 + $0x48] sm:$0xff] %v488
                %v490 = vld [vmem:[%s476 + $0x30] sm:$0xff]
                %491 = vst [vmem:[%s477 + $0x60] sm:$0xff] %v490
                %v492 = vld [vmem:[%s476 + $0x38] sm:$0xff]
                %493 = vst [vmem:[%s477 + $0x68] sm:$0xff] %v492
              $region91: #{_lambda_.15} parent=85 // loop_footer
                %s475 = sadd.s32 1, %s471
              $region92: #{_lambda_.15} parent=85 // loop_footer_branch
                %470 = sbr.rel target = $region88
              $region93: #{_lambda_.15} parent=85 // loop_exit
                _
            $region86: #{_lambda_.15} parent=81 // pred_fallthru
              _
            // Predicated region
            $region94: #{_lambda_.15} parent=81 // pred_check
              _
            $region95: #{_lambda_.15} parent=81 // pred_check_branch
              %495 = sbr.rel target = $region97
            $region96: #{_lambda_.15} parent=81 // pred_region
              _
            $region97: #{_lambda_.15} parent=81 // pred_fallthru
              _
          $region82: #{_lambda_.15} parent=77 // pred_fallthru
            _
          %496 = vnop
        $region78: #{_lambda_.15} parent=69 // pred_fallthru
          _
      $region70: #{_lambda_.15} parent=5 // pred_fallthru
        _
      %p497 = scmp.le.s32.totalorder 2, %s11
      // Predicated region
      $region98: #{_lambda_.15} parent=5 // pred_check
        %p498 = pneg %p497
      $region99: #{_lambda_.15} parent=5 // pred_check_branch
        %500 = sbr.rel (%p498) target = $region101
      $region100: #{_lambda_.15} parent=5 // pred_region
        %s501 = ssub.s32 %s11, 2
        // Predicated region
        $region102: #{_lambda_.15} parent=100 // pred_check
          %p502 = pneg %p129
        $region103: #{_lambda_.15} parent=100 // pred_check_branch
          %504 = sbr.rel (%p502) target = $region105
        $region104: #{_lambda_.15} parent=100 // pred_region
          %s505 = sand.u32 %s114, 1
          %s506 = sand.u32 %s114, 1
          %s507 = smul.addr %s506, 64
          %s508 = scalar_lea.vmem [#allocation4], %s507
        $region105: #{_lambda_.15} parent=100 // pred_fallthru
          _
      $region101: #{_lambda_.15} parent=5 // pred_fallthru
        _
    $region6: #{_lambda_.15} parent=1 // loop_footer
      %s15 = sadd.s32 1, %s11
    $region7: #{_lambda_.15} parent=1 // loop_footer_branch
      %10 = sbr.rel target = $region3
    $region8: #{_lambda_.15} parent=1 // loop_exit
      _

// kernel: _lambda_.16
$region0: #{_lambda_.16}
  #allocation0 [shape = 'u32[]', space=smem, size = 0x4, offset = 0x4, fixed_abs, tag = 'smem constant byte address 0x4 - core index']
  #allocation1 [shape = 'u32[144,128]{1,0:T(1,128)}', space=vmem, size = 0x12000, scoped, tag = 'internal scratch']
  #allocation2 [shape = 'f32[1]{0:T(128)S(6)}', space=smem, size = 0x200, scoped, tag = 'scoped memory for _lambda_.16']
  %s0 = inlined_call_operand.vmem [shape: bf16[32,72], index: 0, kind: input, shape index: {}]
  %s1 = inlined_call_operand.vmem [shape: bf16[72,2048], index: 1, kind: input, shape index: {}]
  %s2 = inlined_call_operand.vmem [shape: f32[32,1], index: 2, kind: input, shape index: {}]
  %s3 = inlined_call_operand.<no memory space> [shape: f32[1], index: 3, kind: input, shape index: {}]
  %s4 = inlined_call_operand.vmem [shape: f32[32,2048], index: 4, kind: output, shape index: {}]
  %s5 = sld [smem:[#allocation0]]
  $region91: #{_lambda_.16} parent=0
    _
  %s7 = ssub.s32 1, %s5
  %s8 = scalar_select 0, %s7, %s5
  %9 = sst [smem:[#allocation2]] %s3
  $region1: #{_lambda_.16} parent=0
    #allocation3 [shape = 'u8[294912]{0}', space=vmem, size = 0x48000, scoped, tag = 'input window, operand 1']
    #allocation4 [shape = 'u8[262144]{0}', space=vmem, size = 0x40000, scoped, tag = 'output window, operand 0']
    loop: start=0, step=1, limit=4
    $region2: #{_lambda_.16} parent=1 // loop_pre_header
      _
    $region3: #{_lambda_.16} parent=1 // loop_header
      %s11 = sphi 0, %s15
      %p12 = scmp.ge.s32.totalorder %s11, 4
      %s19 = sphi 0, %s19
      %s21 = sphi 0, %s19
      %s22 = sphi 0, %s21
      %s36 = sphi 0, %s22
      %s42 = sphi 0, %s44
      %s45 = sphi 0, %s42
      %s46 = sphi 0, %s45
      %s62 = sphi 0, %s46
      %s66 = sphi 0, %s66
      %s68 = sphi 0, %s66
      %s69 = sphi 0, %s68
      %s83 = sphi 0, %s69
      %s87 = sphi 0, %s87
      %s89 = sphi 0, %s87
      %s90 = sphi 0, %s89
      %s104 = sphi 0, %s90
      %s110 = sphi 0, %s112
      %s113 = sphi 0, %s110
      %s114 = sphi 0, %s113
      %s130 = sphi 0, %s114
    $region4: #{_lambda_.16} parent=1 // loop_header_branch
      %14 = sbr.rel (%p12) target = $region8
    $region5: #{_lambda_.16} parent=1 // loop_body
      %s16 = ssub.s32 %s11, 1
      %s17 = ssub.s32 %s11, 2
      %s18 = sadd.s32 %s11, 1
      %s20 = sadd.s32 %s19, 1
      %p23 = scmp.eq.s32.totalorder %s11, 1
      %p24 = scmp.ne.s32.totalorder %s19, %s21
      %p25 = scmp.eq.s32.totalorder %s11, 0
      %p26 = por %p24, %p25
      %p27 = scmp.ne.s32.totalorder %s19, %s21
      %p28 = scmp.eq.s32.totalorder %s16, 1
      %p29 = por %p27, %p28
      %p30 = scmp.ne.s32.totalorder %s21, %s22
      %p31 = scmp.eq.s32.totalorder %s16, 0
      %p32 = por %p30, %p31
      %p33 = scmp.ne.s32.totalorder %s21, %s22
      %p34 = scmp.eq.s32.totalorder %s17, 1
      %p35 = por %p33, %p34
      %p37 = scmp.ne.s32.totalorder %s22, %s36
      %p38 = scmp.eq.s32.totalorder %s17, 0
      %p39 = por %p37, %p38
      %s40 = ssub.s32 %s11, %s18
      %p41 = scmp.eq.s32.totalorder %s40, 0
      %s43 = sadd.s32 %s42, 1
      %s44 = scalar_select %p41, %s42, %s43
      %p47 = pneg %p41
      %p48 = scmp.eq.s32.totalorder %s11, 1
      %p49 = por %p47, %p48
      %p50 = scmp.ne.s32.totalorder %s42, %s45
      %p51 = scmp.eq.s32.totalorder %s11, 0
      %p52 = por %p50, %p51
      %p53 = scmp.ne.s32.totalorder %s42, %s45
      %p54 = scmp.eq.s32.totalorder %s16, 1
      %p55 = por %p53, %p54
      %p56 = scmp.ne.s32.totalorder %s45, %s46
      %p57 = scmp.eq.s32.totalorder %s16, 0
      %p58 = por %p56, %p57
      %p59 = scmp.ne.s32.totalorder %s45, %s46
      %p60 = scmp.eq.s32.totalorder %s17, 1
      %p61 = por %p59, %p60
      %p63 = scmp.ne.s32.totalorder %s46, %s62
      %p64 = scmp.eq.s32.totalorder %s17, 0
      %p65 = por %p63, %p64
      %s67 = sadd.s32 %s66, 1
      %p70 = scmp.eq.s32.totalorder %s11, 1
      %p71 = scmp.ne.s32.totalorder %s66, %s68
      %p72 = scmp.eq.s32.totalorder %s11, 0
      %p73 = por %p71, %p72
      %p74 = scmp.ne.s32.totalorder %s66, %s68
      %p75 = scmp.eq.s32.totalorder %s16, 1
      %p76 = por %p74, %p75
      %p77 = scmp.ne.s32.totalorder %s68, %s69
      %p78 = scmp.eq.s32.totalorder %s16, 0
      %p79 = por %p77, %p78
      %p80 = scmp.ne.s32.totalorder %s68, %s69
      %p81 = scmp.eq.s32.totalorder %s17, 1
      %p82 = por %p80, %p81
      %p84 = scmp.ne.s32.totalorder %s69, %s83
      %p85 = scmp.eq.s32.totalorder %s17, 0
      %p86 = por %p84, %p85
      %s88 = sadd.s32 %s87, 1
      %p91 = scmp.eq.s32.totalorder %s11, 1
      %p92 = scmp.ne.s32.totalorder %s87, %s89
      %p93 = scmp.eq.s32.totalorder %s11, 0
      %p94 = por %p92, %p93
      %p95 = scmp.ne.s32.totalorder %s87, %s89
      %p96 = scmp.eq.s32.totalorder %s16, 1
      %p97 = por %p95, %p96
      %p98 = scmp.ne.s32.totalorder %s89, %s90
      %p99 = scmp.eq.s32.totalorder %s16, 0
      %p100 = por %p98, %p99
      %p101 = scmp.ne.s32.totalorder %s89, %s90
      %p102 = scmp.eq.s32.totalorder %s17, 1
      %p103 = por %p101, %p102
      %p105 = scmp.ne.s32.totalorder %s90, %s104
      %p106 = scmp.eq.s32.totalorder %s17, 0
      %p107 = por %p105, %p106
      %s108 = ssub.s32 %s11, %s18
      %p109 = scmp.eq.s32.totalorder %s108, 0
      %s111 = sadd.s32 %s110, 1
      %s112 = scalar_select %p109, %s110, %s111
      %p115 = pneg %p109
      %p116 = scmp.eq.s32.totalorder %s11, 1
      %p117 = por %p115, %p116
      %p118 = scmp.ne.s32.totalorder %s110, %s113
      %p119 = scmp.eq.s32.totalorder %s11, 0
      %p120 = por %p118, %p119
      %p121 = scmp.ne.s32.totalorder %s110, %s113
      %p122 = scmp.eq.s32.totalorder %s16, 1
      %p123 = por %p121, %p122
      %p124 = scmp.ne.s32.totalorder %s113, %s114
      %p125 = scmp.eq.s32.totalorder %s16, 0
      %p126 = por %p124, %p125
      %p127 = scmp.ne.s32.totalorder %s113, %s114
      %p128 = scmp.eq.s32.totalorder %s17, 1
      %p129 = por %p127, %p128
      %p131 = scmp.ne.s32.totalorder %s114, %s130
      %p132 = scmp.eq.s32.totalorder %s17, 0
      %p133 = por %p131, %p132
      %p134 = scmp.le.s32.totalorder 1, %s11
      %p135 = scmp.lt.s32.totalorder %s11, 3
      %p136 = pnand %p134, %p135
      %p137 = pneg %p136
      // Predicated region
      $region9: #{_lambda_.16} parent=5 // pred_check
        _
      $region10: #{_lambda_.16} parent=5 // pred_check_branch
        %139 = sbr.rel (%p136) target = $region12
      $region11: #{_lambda_.16} parent=5 // pred_region
        %s140 = ssub.s32 %s11, 1
        // Predicated region
        $region13: #{_lambda_.16} parent=11 // pred_check
          %p141 = pneg %p32
        $region14: #{_lambda_.16} parent=11 // pred_check_branch
          %143 = sbr.rel (%p141) target = $region16
        $region15: #{_lambda_.16} parent=11 // pred_region
          _
        $region16: #{_lambda_.16} parent=11 // pred_fallthru
          _
        // Predicated region
        $region17: #{_lambda_.16} parent=11 // pred_check
          %p144 = pneg %p79
        $region18: #{_lambda_.16} parent=11 // pred_check_branch
          %146 = sbr.rel (%p144) target = $region20
        $region19: #{_lambda_.16} parent=11 // pred_region
          _
        $region20: #{_lambda_.16} parent=11 // pred_fallthru
          _
        // Predicated region
        $region21: #{_lambda_.16} parent=11 // pred_check
          %p147 = pneg %p100
        $region22: #{_lambda_.16} parent=11 // pred_check_branch
          %149 = sbr.rel (%p147) target = $region24
        $region23: #{_lambda_.16} parent=11 // pred_region
          _
        $region24: #{_lambda_.16} parent=11 // pred_fallthru
          _
      $region12: #{_lambda_.16} parent=5 // pred_fallthru
        _
      %p150 = scmp.lt.s32.totalorder %s11, 2
      // Predicated region
      $region25: #{_lambda_.16} parent=5 // pred_check
        %p151 = pneg %p150
      $region26: #{_lambda_.16} parent=5 // pred_check_branch
        %153 = sbr.rel (%p151) target = $region28
      $region27: #{_lambda_.16} parent=5 // pred_region
        // Predicated region
        $region29: #{_lambda_.16} parent=27 // pred_check
          %p154 = pneg %p52
        $region30: #{_lambda_.16} parent=27 // pred_check_branch
          %156 = sbr.rel (%p154) target = $region32
        $region31: #{_lambda_.16} parent=27 // pred_region
          %s157 = sand.u32 %s42, 1
          %s158 = sand.u32 %s42, 1
          %s159 = smul.addr %s158, 288
          %s160 = scalar_lea.vmem [#allocation3], %s159
          %s161 = smul.u32 8, %s11
          %s162 = smul.addr %s161, 4
          %s163 = scalar_lea.vmem %s1, %s162
          // Predicated region
          $region33: #{_lambda_.16} parent=31 // pred_check
            _
          $region34: #{_lambda_.16} parent=31 // pred_check_branch
            %165 = sbr.rel (0) target = $region36
          $region35: #{_lambda_.16} parent=31 // pred_region
            // Predicated region
            $region37: #{_lambda_.16} parent=35 // pred_check
              _
            $region38: #{_lambda_.16} parent=35 // pred_check_branch
              %167 = sbr.rel (0) target = $region40
            $region39: #{_lambda_.16} parent=35 // pred_region
              loop: start=0, step=1, limit=1
              $region41: #{_lambda_.16} parent=39 // loop_pre_header
                _
              $region42: #{_lambda_.16} parent=39 // loop_header
                %s169 = sphi 0, %s173
                %p170 = scmp.ge.s32.totalorder %s169, 1
                %s174 = sphi %s163, %s163
                %s175 = sphi %s160, %s160
              $region43: #{_lambda_.16} parent=39 // loop_header_branch
                %172 = sbr.rel (%p170) target = $region47
              $region44: #{_lambda_.16} parent=39 // loop_body
                %v176 = vld [vmem:[%s174] sm:$0xff]
                %177 = vst [vmem:[%s175] sm:$0xff] %v176
                %v178 = vld [vmem:[%s174 + $0x8] sm:$0xff]
                %179 = vst [vmem:[%s175 + $0x8] sm:$0xff] %v178
                %v180 = vld [vmem:[%s174 + $0x10] sm:$0xff]
                %181 = vst [vmem:[%s175 + $0x10] sm:$0xff] %v180
                %v182 = vld [vmem:[%s174 + $0x18] sm:$0xff]
                %183 = vst [vmem:[%s175 + $0x18] sm:$0xff] %v182
                %v184 = vld [vmem:[%s174 + $0x40] sm:$0xff]
                %185 = vst [vmem:[%s175 + $0x20] sm:$0xff] %v184
                %v186 = vld [vmem:[%s174 + $0x48] sm:$0xff]
                %187 = vst [vmem:[%s175 + $0x28] sm:$0xff] %v186
                %v188 = vld [vmem:[%s174 + $0x50] sm:$0xff]
                %189 = vst [vmem:[%s175 + $0x30] sm:$0xff] %v188
                %v190 = vld [vmem:[%s174 + $0x58] sm:$0xff]
                %191 = vst [vmem:[%s175 + $0x38] sm:$0xff] %v190
                %v192 = vld [vmem:[%s174 + $0x80] sm:$0xff]
                %193 = vst [vmem:[%s175 + $0x40] sm:$0xff] %v192
                %v194 = vld [vmem:[%s174 + $0x88] sm:$0xff]
                %195 = vst [vmem:[%s175 + $0x48] sm:$0xff] %v194
                %v196 = vld [vmem:[%s174 + $0x90] sm:$0xff]
                %197 = vst [vmem:[%s175 + $0x50] sm:$0xff] %v196
                %v198 = vld [vmem:[%s174 + $0x98] sm:$0xff]
                %199 = vst [vmem:[%s175 + $0x58] sm:$0xff] %v198
                %v200 = vld [vmem:[%s174 + $0xc0] sm:$0xff]
                %201 = vst [vmem:[%s175 + $0x60] sm:$0xff] %v200
                %v202 = vld [vmem:[%s174 + $0xc8] sm:$0xff]
                %203 = vst [vmem:[%s175 + $0x68] sm:$0xff] %v202
                %v204 = vld [vmem:[%s174 + $0xd0] sm:$0xff]
                %205 = vst [vmem:[%s175 + $0x70] sm:$0xff] %v204
                %v206 = vld [vmem:[%s174 + $0xd8] sm:$0xff]
                %207 = vst [vmem:[%s175 + $0x78] sm:$0xff] %v206
                %v208 = vld [vmem:[%s174 + $0x100] sm:$0xff]
                %209 = vst [vmem:[%s175 + $0x80] sm:$0xff] %v208
                %v210 = vld [vmem:[%s174 + $0x108] sm:$0xff]
                %211 = vst [vmem:[%s175 + $0x88] sm:$0xff] %v210
                %v212 = vld [vmem:[%s174 + $0x110] sm:$0xff]
                %213 = vst [vmem:[%s175 + $0x90] sm:$0xff] %v212
                %v214 = vld [vmem:[%s174 + $0x118] sm:$0xff]
                %215 = vst [vmem:[%s175 + $0x98] sm:$0xff] %v214
                %v216 = vld [vmem:[%s174 + $0x140] sm:$0xff]
                %217 = vst [vmem:[%s175 + $0xa0] sm:$0xff] %v216
                %v218 = vld [vmem:[%s174 + $0x148] sm:$0xff]
                %219 = vst [vmem:[%s175 + $0xa8] sm:$0xff] %v218
                %v220 = vld [vmem:[%s174 + $0x150] sm:$0xff]
                %221 = vst [vmem:[%s175 + $0xb0] sm:$0xff] %v220
                %v222 = vld [vmem:[%s174 + $0x158] sm:$0xff]
                %223 = vst [vmem:[%s175 + $0xb8] sm:$0xff] %v222
                %v224 = vld [vmem:[%s174 + $0x180] sm:$0xff]
                %225 = vst [vmem:[%s175 + $0xc0] sm:$0xff] %v224
                %v226 = vld [vmem:[%s174 + $0x188] sm:$0xff]
                %227 = vst [vmem:[%s175 + $0xc8] sm:$0xff] %v226
                %v228 = vld [vmem:[%s174 + $0x190] sm:$0xff]
                %229 = vst [vmem:[%s175 + $0xd0] sm:$0xff] %v228
                %v230 = vld [vmem:[%s174 + $0x198] sm:$0xff]
                %231 = vst [vmem:[%s175 + $0xd8] sm:$0xff] %v230
                %v232 = vld [vmem:[%s174 + $0x1c0] sm:$0xff]
                %233 = vst [vmem:[%s175 + $0xe0] sm:$0xff] %v232
                %v234 = vld [vmem:[%s174 + $0x1c8] sm:$0xff]
                %235 = vst [vmem:[%s175 + $0xe8] sm:$0xff] %v234
                %v236 = vld [vmem:[%s174 + $0x1d0] sm:$0xff]
                %237 = vst [vmem:[%s175 + $0xf0] sm:$0xff] %v236
                %v238 = vld [vmem:[%s174 + $0x1d8] sm:$0xff]
                %239 = vst [vmem:[%s175 + $0xf8] sm:$0xff] %v238
                %v240 = vld [vmem:[%s174 + $0x200] sm:$0xff]
                %241 = vst [vmem:[%s175 + $0x100] sm:$0xff] %v240
                %v242 = vld [vmem:[%s174 + $0x208] sm:$0xff]
                %243 = vst [vmem:[%s175 + $0x108] sm:$0xff] %v242
                %v244 = vld [vmem:[%s174 + $0x210] sm:$0xff]
                %245 = vst [vmem:[%s175 + $0x110] sm:$0xff] %v244
                %v246 = vld [vmem:[%s174 + $0x218] sm:$0xff]
                %247 = vst [vmem:[%s175 + $0x118] sm:$0xff] %v246
              $region45: #{_lambda_.16} parent=39 // loop_footer
                %s173 = sadd.s32 1, %s169
              $region46: #{_lambda_.16} parent=39 // loop_footer_branch
                %168 = sbr.rel target = $region42
              $region47: #{_lambda_.16} parent=39 // loop_exit
                _
            $region40: #{_lambda_.16} parent=35 // pred_fallthru
              _
            // Predicated region
            $region48: #{_lambda_.16} parent=35 // pred_check
              _
            $region49: #{_lambda_.16} parent=35 // pred_check_branch
              %249 = sbr.rel target = $region51
            $region50: #{_lambda_.16} parent=35 // pred_region
              _
            $region51: #{_lambda_.16} parent=35 // pred_fallthru
              _
          $region36: #{_lambda_.16} parent=31 // pred_fallthru
            _
          %250 = vnop
        $region32: #{_lambda_.16} parent=27 // pred_fallthru
          _
      $region28: #{_lambda_.16} parent=5 // pred_fallthru
        _
      %p251 = scmp.le.s32.totalorder 1, %s11
      %p252 = scmp.lt.s32.totalorder %s11, 3
      %p253 = pnand %p251, %p252
      %p254 = pneg %p253
      // Predicated region
      $region52: #{_lambda_.16} parent=5 // pred_check
        _
      $region53: #{_lambda_.16} parent=5 // pred_check_branch
        %256 = sbr.rel (%p253) target = $region55
      $region54: #{_lambda_.16} parent=5 // pred_region
        %s257 = ssub.s32 %s11, 1
        %s258 = sand.u32 %s45, 1
        %s259 = sand.u32 %s45, 1
        %s260 = smul.addr %s259, 288
        %s261 = scalar_lea.vmem [#allocation3], %s260
        // Predicated region
        $region56: #{_lambda_.16} parent=54 // pred_check
          %p262 = pneg %p58
        $region57: #{_lambda_.16} parent=54 // pred_check_branch
          %264 = sbr.rel (%p262) target = $region59
        $region58: #{_lambda_.16} parent=54 // pred_region
          _
        $region59: #{_lambda_.16} parent=54 // pred_fallthru
          _
        %p265 = pneg %p32
        %p266 = pneg %p29
        %s267 = sand.u32 %s45, 1
        %s268 = sand.u32 %s45, 1
        %s269 = smul.addr %s268, 288
        %s270 = scalar_lea.vmem [#allocation3], %s269
        %p271 = pneg %p58
        %p272 = pneg %p55
        %p273 = pneg %p79
        %p274 = pneg %p76
        %p275 = pneg %p100
        %p276 = pneg %p97
        %p277 = pneg %p126
        %p278 = pneg %p123
        %s279 = sand.u32 %s113, 1
        %s280 = sand.u32 %s113, 1
        %s281 = smul.addr %s280, 256
        %s282 = scalar_lea.vmem [#allocation4], %s281
        %s283 = smul.u32 8, %s16
        %s284 = smul.u32 8, %s16
        %v286 = vld [vmem:[%s0] sm:$0xf]
        %v287 = vld [vmem:[%s0 + $0x4] sm:$0xf]
        %v288 = vld [vmem:[%s0 + $0x8] sm:$0xf]
        %v289 = vld [vmem:[%s0 + $0xc] sm:$0xf]
        %v290 = vld [vmem:[%s261] sm:$0xff]
        %v291 = vld [vmem:[%s261 + $0x8] sm:$0xff]
        %v292 = vld [vmem:[%s261 + $0x10] sm:$0xff]
        %v293 = vld [vmem:[%s261 + $0x18] sm:$0xff]
        %v294 = vld [vmem:[%s261 + $0x20] sm:$0xff]
        %v295 = vld [vmem:[%s261 + $0x28] sm:$0xff]
        %v296 = vld [vmem:[%s261 + $0x30] sm:$0xff]
        %v297 = vld [vmem:[%s261 + $0x38] sm:$0xff]
        %v298 = vld [vmem:[%s261 + $0x40] sm:$0xff]
        %v299 = vld [vmem:[%s261 + $0x48] sm:$0xff]
        %v300 = vld [vmem:[%s261 + $0x50] sm:$0xff]
        %v301 = vld [vmem:[%s261 + $0x58] sm:$0xff]
        %v302 = vld [vmem:[%s261 + $0x60] sm:$0xff]
        %v303 = vld [vmem:[%s261 + $0x68] sm:$0xff]
        %v304 = vld [vmem:[%s261 + $0x70] sm:$0xff]
        %v305 = vld [vmem:[%s261 + $0x78] sm:$0xff]
        %v306 = vld [vmem:[%s261 + $0x80] sm:$0xff]
        %v307 = vld [vmem:[%s261 + $0x88] sm:$0xff]
        %v308 = vld [vmem:[%s261 + $0x90] sm:$0xff]
        %v309 = vld [vmem:[%s261 + $0x98] sm:$0xff]
        %v310 = vld [vmem:[%s261 + $0xa0] sm:$0xff]
        %v311 = vld [vmem:[%s261 + $0xa8] sm:$0xff]
        %v312 = vld [vmem:[%s261 + $0xb0] sm:$0xff]
        %v313 = vld [vmem:[%s261 + $0xb8] sm:$0xff]
        %v314 = vld [vmem:[%s261 + $0xc0] sm:$0xff]
        %v315 = vld [vmem:[%s261 + $0xc8] sm:$0xff]
        %v316 = vld [vmem:[%s261 + $0xd0] sm:$0xff]
        %v317 = vld [vmem:[%s261 + $0xd8] sm:$0xff]
        %v318 = vld [vmem:[%s261 + $0xe0] sm:$0xff]
        %v319 = vld [vmem:[%s261 + $0xe8] sm:$0xff]
        %v320 = vld [vmem:[%s261 + $0xf0] sm:$0xff]
        %v321 = vld [vmem:[%s261 + $0xf8] sm:$0xff]
        %v322 = vld [vmem:[%s261 + $0x100] sm:$0xff]
        %v323 = vld [vmem:[%s261 + $0x108] sm:$0xff]
        %v324 = vld [vmem:[%s261 + $0x110] sm:$0xff]
        %v325 = vld [vmem:[%s261 + $0x118] sm:$0xff]
        %v326 = vld [vmem:[%s2] sm:$0xff]
        %v327 = vld [vmem:[%s2 + $0x8] sm:$0xff]
        %v328 = vld [vmem:[%s2 + $0x10] sm:$0xff]
        %v329 = vld [vmem:[%s2 + $0x18] sm:$0xff]
        %331 = vset.pattern.permute.xlu0 0
        %332 = vperm.xlu0 %331, %v326
        %v333 = vpop.permute.xlu0 %332
        %336 = vset.pattern.permute.xlu0 0
        %337 = vperm.xlu0 %336, %v327
        %v338 = vpop.permute.xlu0 %337
        %341 = vset.pattern.permute.xlu0 0
        %342 = vperm.xlu0 %341, %v328
        %v343 = vpop.permute.xlu0 %342
        %346 = vset.pattern.permute.xlu0 0
        %347 = vperm.xlu0 %346, %v329
        %v348 = vpop.permute.xlu0 %347
        %v354 = vunpack.c.l.b16 %v286
        %v355 = vunpack.c.l.b16 %v287
        %v356 = vunpack.c.l.b16 %v288
        %v357 = vunpack.c.l.b16 %v289
        %v358 = vpack.c.b16 %v355, %v354
        %v359 = vpack.c.b16 %v357, %v356
        %v396 = vunpack.c.l.b16 %v290
        %v397 = vunpack.c.h.b16 %v290
        %v398 = vunpack.c.l.b16 %v291
        %v399 = vunpack.c.h.b16 %v291
        %v400 = vunpack.c.l.b16 %v292
        %v401 = vunpack.c.h.b16 %v292
        %v402 = vunpack.c.l.b16 %v293
        %v403 = vunpack.c.h.b16 %v293
        %v404 = vunpack.c.l.b16 %v294
        %v405 = vunpack.c.h.b16 %v294
        %v406 = vunpack.c.l.b16 %v295
        %v407 = vunpack.c.h.b16 %v295
        %v408 = vunpack.c.l.b16 %v296
        %v409 = vunpack.c.h.b16 %v296
        %v410 = vunpack.c.l.b16 %v297
        %v411 = vunpack.c.h.b16 %v297
        %v412 = vunpack.c.l.b16 %v298
        %v413 = vunpack.c.h.b16 %v298
        %v414 = vunpack.c.l.b16 %v299
        %v415 = vunpack.c.h.b16 %v299
        %v416 = vunpack.c.l.b16 %v300
        %v417 = vunpack.c.h.b16 %v300
        %v418 = vunpack.c.l.b16 %v301
        %v419 = vunpack.c.h.b16 %v301
        %v420 = vunpack.c.l.b16 %v302
        %v421 = vunpack.c.h.b16 %v302
        %v422 = vunpack.c.l.b16 %v303
        %v423 = vunpack.c.h.b16 %v303
        %v424 = vunpack.c.l.b16 %v304
        %v425 = vunpack.c.h.b16 %v304
        %v426 = vunpack.c.l.b16 %v305
        %v427 = vunpack.c.h.b16 %v305
        %v428 = vunpack.c.l.b16 %v306
        %v429 = vunpack.c.h.b16 %v306
        %v430 = vunpack.c.l.b16 %v307
        %v431 = vunpack.c.h.b16 %v307
        %v432 = vunpack.c.l.b16 %v308
        %v433 = vunpack.c.h.b16 %v308
        %v434 = vunpack.c.l.b16 %v309
        %v435 = vunpack.c.h.b16 %v309
        %v436 = vunpack.c.l.b16 %v310
        %v437 = vunpack.c.h.b16 %v310
        %v438 = vunpack.c.l.b16 %v311
        %v439 = vunpack.c.h.b16 %v311
        %v440 = vunpack.c.l.b16 %v312
        %v441 = vunpack.c.h.b16 %v312
        %v442 = vunpack.c.l.b16 %v313
        %v443 = vunpack.c.h.b16 %v313
        %v444 = vunpack.c.l.b16 %v314
        %v445 = vunpack.c.h.b16 %v314
        %v446 = vunpack.c.l.b16 %v315
        %v447 = vunpack.c.h.b16 %v315
        %v448 = vunpack.c.l.b16 %v316
        %v449 = vunpack.c.h.b16 %v316
        %v450 = vunpack.c.l.b16 %v317
        %v451 = vunpack.c.h.b16 %v317
        %v452 = vunpack.c.l.b16 %v318
        %v453 = vunpack.c.h.b16 %v318
        %v454 = vunpack.c.l.b16 %v319
        %v455 = vunpack.c.h.b16 %v319
        %v456 = vunpack.c.l.b16 %v320
        %v457 = vunpack.c.h.b16 %v320
        %v458 = vunpack.c.l.b16 %v321
        %v459 = vunpack.c.h.b16 %v321
        %v460 = vunpack.c.l.b16 %v322
        %v461 = vunpack.c.h.b16 %v322
        %v462 = vunpack.c.l.b16 %v323
        %v463 = vunpack.c.h.b16 %v323
        %v464 = vunpack.c.l.b16 %v324
        %v465 = vunpack.c.h.b16 %v324
        %v466 = vunpack.c.l.b16 %v325
        %v467 = vunpack.c.h.b16 %v325
        %v468 = vpack.c.b16 %v404, %v396
        %v469 = vpack.c.b16 %v405, %v397
        %v470 = vpack.c.b16 %v406, %v398
        %v471 = vpack.c.b16 %v407, %v399
        %v472 = vpack.c.b16 %v408, %v400
        %v473 = vpack.c.b16 %v409, %v401
        %v474 = vpack.c.b16 %v410, %v402
        %v475 = vpack.c.b16 %v411, %v403
        %v476 = vpack.c.b16 %v420, %v412
        %v477 = vpack.c.b16 %v421, %v413
        %v478 = vpack.c.b16 %v422, %v414
        %v479 = vpack.c.b16 %v423, %v415
        %v480 = vpack.c.b16 %v424, %v416
        %v481 = vpack.c.b16 %v425, %v417
        %v482 = vpack.c.b16 %v426, %v418
        %v483 = vpack.c.b16 %v427, %v419
        %v484 = vpack.c.b16 %v436, %v428
        %v485 = vpack.c.b16 %v437, %v429
        %v486 = vpack.c.b16 %v438, %v430
        %v487 = vpack.c.b16 %v439, %v431
        %v488 = vpack.c.b16 %v440, %v432
        %v489 = vpack.c.b16 %v441, %v433
        %v490 = vpack.c.b16 %v442, %v434
        %v491 = vpack.c.b16 %v443, %v435
        %v492 = vpack.c.b16 %v452, %v444
        %v493 = vpack.c.b16 %v453, %v445
        %v494 = vpack.c.b16 %v454, %v446
        %v495 = vpack.c.b16 %v455, %v447
        %v496 = vpack.c.b16 %v456, %v448
        %v497 = vpack.c.b16 %v457, %v449
        %v498 = vpack.c.b16 %v458, %v450
        %v499 = vpack.c.b16 %v459, %v451
        %v500 = vpack.c.b16 %v460, %v460
        %v501 = vpack.c.b16 %v461, %v461
        %v502 = vpack.c.b16 %v462, %v462
        %v503 = vpack.c.b16 %v463, %v463
        %v504 = vpack.c.b16 %v464, %v464
        %v505 = vpack.c.b16 %v465, %v465
        %v506 = vpack.c.b16 %v466, %v466
        %v507 = vpack.c.b16 %v467, %v467
        %vm540 = vcmask 588800
        %v542 = vsel %vm540, %v358, 0
        %v545 = vsel %vm540, %v359, 0
        %vm547 = vcmask 1043456
        %v549 = vsel %vm547, %v500, 0
        %v552 = vsel %vm547, %v501, 0
        %v555 = vsel %vm547, %v502, 0
        %v558 = vsel %vm547, %v503, 0
        %v561 = vsel %vm547, %v504, 0
        %v564 = vsel %vm547, %v505, 0
        %v567 = vsel %vm547, %v506, 0
        %v570 = vsel %vm547, %v507, 0
        %572 = vmatprep.subr.bf16.mxu0 %v469
        %573 = vmatpush1.bf16.msra.mxu0 %v468
        %574 = vmatprep.subr.bf16.mxu0 %v477
        %575 = vmatpush1.bf16.msra.mxu0 %v476
        %576 = vmatprep.subr.bf16.mxu0 %v485
        %577 = vmatpush1.bf16.msra.mxu0 %v484
        %578 = vmatprep.subr.bf16.mxu0 %v493
        %579 = vmatpush1.bf16.msra.mxu0 %v492
        %580 = vmatprep.subr.bf16.mxu0 %v552
        %581 = vmatpush1.bf16.msra.mxu0 %v549
        %582 = vmatprep.subr.bf16.mxu0 0
        %583 = vmatpush1.bf16.msra.mxu0 0
        %584 = vmatprep.subr.bf16.mxu0 0
        %585 = vmatpush1.bf16.msra.mxu0 0
        %586 = vmatprep.subr.bf16.mxu0 0
        %587 = vmatpush1.bf16.msra.mxu0 0
        %588 = vmatprep.subr.bf16.mxu0 0
        %589 = vmatpush1.bf16.msra.mxu0 0
        %590 = vmatprep.subr.bf16.mxu0 0
        %591 = vmatpush1.bf16.msra.mxu0 0
        %592 = vmatprep.subr.bf16.mxu0 0
        %593 = vmatpush1.bf16.msra.mxu0 0
        %594 = vmatprep.subr.bf16.mxu0 0
        %595 = vmatpush1.bf16.msra.mxu0 0
        %596 = vmatprep.subr.bf16.mxu0 0
        %597 = vmatpush1.bf16.msra.mxu0 0
        %598 = vmatprep.subr.bf16.mxu0 0
        %599 = vmatpush1.bf16.msra.mxu0 0
        %600 = vmatprep.subr.bf16.mxu0 0
        %601 = vmatpush1.bf16.msra.mxu0 0
        %602 = vmatprep.subr.bf16.mxu0 0
        %603 = vmatpush1.bf16.msra.mxu0 0
        %604 = vmatprep.mubr.bf16.mxu0 0
        %605 = vmatmul.mubr.bf16.gmra.mrb[0].mxu0 %v542
        %v606 = vpop.f32.mrb[0].mxu0
        %v607 = vadd.f32 %v333, %v606
        %v608 = vpop.f32.mrb[0].mxu0
        %v609 = vadd.f32 %v333, %v608
        %v610 = vpop.f32.mrb[0].mxu0
        %v611 = vadd.f32 %v338, %v610
        %v612 = vpop.f32.mrb[0].mxu0
        %v613 = vadd.f32 %v338, %v612
        %614 = vmatprep.mubr.bf16.mxu0 0
        %615 = vmatmul.mubr.bf16.gmra.mrb[0].mxu0 %v545
        %v616 = vpop.f32.mrb[0].mxu0
        %v617 = vadd.f32 %v343, %v616
        %v618 = vpop.f32.mrb[0].mxu0
        %v619 = vadd.f32 %v343, %v618
        %v620 = vpop.f32.mrb[0].mxu0
        %v621 = vadd.f32 %v348, %v620
        %v622 = vpop.f32.mrb[0].mxu0
        %v623 = vadd.f32 %v348, %v622
        %624 = vdwg.mxu0
        %625 = vmatprep.subr.bf16.mxu0 %v471
        %626 = vmatpush1.bf16.msra.mxu0 %v470
        %627 = vmatprep.subr.bf16.mxu0 %v479
        %628 = vmatpush1.bf16.msra.mxu0 %v478
        %629 = vmatprep.subr.bf16.mxu0 %v487
        %630 = vmatpush1.bf16.msra.mxu0 %v486
        %631 = vmatprep.subr.bf16.mxu0 %v495
        %632 = vmatpush1.bf16.msra.mxu0 %v494
        %633 = vmatprep.subr.bf16.mxu0 %v558
        %634 = vmatpush1.bf16.msra.mxu0 %v555
        %635 = vmatprep.subr.bf16.mxu0 0
        %636 = vmatpush1.bf16.msra.mxu0 0
        %637 = vmatprep.subr.bf16.mxu0 0
        %638 = vmatpush1.bf16.msra.mxu0 0
        %639 = vmatprep.subr.bf16.mxu0 0
        %640 = vmatpush1.bf16.msra.mxu0 0
        %641 = vmatprep.subr.bf16.mxu0 0
        %642 = vmatpush1.bf16.msra.mxu0 0
        %643 = vmatprep.subr.bf16.mxu0 0
        %644 = vmatpush1.bf16.msra.mxu0 0
        %645 = vmatprep.subr.bf16.mxu0 0
        %646 = vmatpush1.bf16.msra.mxu0 0
        %647 = vmatprep.subr.bf16.mxu0 0
        %648 = vmatpush1.bf16.msra.mxu0 0
        %649 = vmatprep.subr.bf16.mxu0 0
        %650 = vmatpush1.bf16.msra.mxu0 0
        %651 = vmatprep.subr.bf16.mxu0 0
        %652 = vmatpush1.bf16.msra.mxu0 0
        %653 = vmatprep.subr.bf16.mxu0 0
        %654 = vmatpush1.bf16.msra.mxu0 0
        %655 = vmatprep.subr.bf16.mxu0 0
        %656 = vmatpush1.bf16.msra.mxu0 0
        %657 = vmatprep.mubr.bf16.mxu0 0
        %658 = vmatmul.mubr.bf16.gmra.mrb[0].mxu0 %v542
        %v659 = vpop.f32.mrb[0].mxu0
        %v660 = vadd.f32 %v333, %v659
        %v661 = vpop.f32.mrb[0].mxu0
        %v662 = vadd.f32 %v333, %v661
        %v663 = vpop.f32.mrb[0].mxu0
        %v664 = vadd.f32 %v338, %v663
        %v665 = vpop.f32.mrb[0].mxu0
        %v666 = vadd.f32 %v338, %v665
        %667 = vmatprep.mubr.bf16.mxu0 0
        %668 = vmatmul.mubr.bf16.gmra.mrb[0].mxu0 %v545
        %v669 = vpop.f32.mrb[0].mxu0
        %v670 = vadd.f32 %v343, %v669
        %v671 = vpop.f32.mrb[0].mxu0
        %v672 = vadd.f32 %v343, %v671
        %v673 = vpop.f32.mrb[0].mxu0
        %v674 = vadd.f32 %v348, %v673
        %v675 = vpop.f32.mrb[0].mxu0
        %v676 = vadd.f32 %v348, %v675
        %677 = vdwg.mxu0
        %678 = vmatprep.subr.bf16.mxu0 %v473
        %679 = vmatpush1.bf16.msra.mxu0 %v472
        %680 = vmatprep.subr.bf16.mxu0 %v481
        %681 = vmatpush1.bf16.msra.mxu0 %v480
        %682 = vmatprep.subr.bf16.mxu0 %v489
        %683 = vmatpush1.bf16.msra.mxu0 %v488
        %684 = vmatprep.subr.bf16.mxu0 %v497
        %685 = vmatpush1.bf16.msra.mxu0 %v496
        %686 = vmatprep.subr.bf16.mxu0 %v564
        %687 = vmatpush1.bf16.msra.mxu0 %v561
        %688 = vmatprep.subr.bf16.mxu0 0
        %689 = vmatpush1.bf16.msra.mxu0 0
        %690 = vmatprep.subr.bf16.mxu0 0
        %691 = vmatpush1.bf16.msra.mxu0 0
        %692 = vmatprep.subr.bf16.mxu0 0
        %693 = vmatpush1.bf16.msra.mxu0 0
        %694 = vmatprep.subr.bf16.mxu0 0
        %695 = vmatpush1.bf16.msra.mxu0 0
        %696 = vmatprep.subr.bf16.mxu0 0
        %697 = vmatpush1.bf16.msra.mxu0 0
        %698 = vmatprep.subr.bf16.mxu0 0
        %699 = vmatpush1.bf16.msra.mxu0 0
        %700 = vmatprep.subr.bf16.mxu0 0
        %701 = vmatpush1.bf16.msra.mxu0 0
        %702 = vmatprep.subr.bf16.mxu0 0
        %703 = vmatpush1.bf16.msra.mxu0 0
        %704 = vmatprep.subr.bf16.mxu0 0
        %705 = vmatpush1.bf16.msra.mxu0 0
        %706 = vmatprep.subr.bf16.mxu0 0
        %707 = vmatpush1.bf16.msra.mxu0 0
        %708 = vmatprep.subr.bf16.mxu0 0
        %709 = vmatpush1.bf16.msra.mxu0 0
        %710 = vmatprep.mubr.bf16.mxu0 0
        %711 = vmatmul.mubr.bf16.gmra.mrb[0].mxu0 %v542
        %v712 = vpop.f32.mrb[0].mxu0
        %v713 = vadd.f32 %v333, %v712
        %v714 = vpop.f32.mrb[0].mxu0
        %v715 = vadd.f32 %v333, %v714
        %v716 = vpop.f32.mrb[0].mxu0
        %v717 = vadd.f32 %v338, %v716
        %v718 = vpop.f32.mrb[0].mxu0
        %v719 = vadd.f32 %v338, %v718
        %720 = vmatprep.mubr.bf16.mxu0 0
        %721 = vmatmul.mubr.bf16.gmra.mrb[0].mxu0 %v545
        %v722 = vpop.f32.mrb[0].mxu0
        %v723 = vadd.f32 %v343, %v722
        %v724 = vpop.f32.mrb[0].mxu0
        %v725 = vadd.f32 %v343, %v724
        %v726 = vpop.f32.mrb[0].mxu0
        %v727 = vadd.f32 %v348, %v726
        %v728 = vpop.f32.mrb[0].mxu0
        %v729 = vadd.f32 %v348, %v728
        %730 = vdwg.mxu0
        %731 = vmatprep.subr.bf16.mxu0 %v475
        %732 = vmatpush1.bf16.msra.mxu0 %v474
        %733 = vmatprep.subr.bf16.mxu0 %v483
        %734 = vmatpush1.bf16.msra.mxu0 %v482
        %735 = vmatprep.subr.bf16.mxu0 %v491
        %736 = vmatpush1.bf16.msra.mxu0 %v490
        %737 = vmatprep.subr.bf16.mxu0 %v499
        %738 = vmatpush1.bf16.msra.mxu0 %v498
        %739 = vmatprep.subr.bf16.mxu0 %v570
        %740 = vmatpush1.bf16.msra.mxu0 %v567
        %741 = vmatprep.subr.bf16.mxu0 0
        %742 = vmatpush1.bf16.msra.mxu0 0
        %743 = vmatprep.subr.bf16.mxu0 0
        %744 = vmatpush1.bf16.msra.mxu0 0
        %745 = vmatprep.subr.bf16.mxu0 0
        %746 = vmatpush1.bf16.msra.mxu0 0
        %747 = vmatprep.subr.bf16.mxu0 0
        %748 = vmatpush1.bf16.msra.mxu0 0
        %749 = vmatprep.subr.bf16.mxu0 0
        %750 = vmatpush1.bf16.msra.mxu0 0
        %751 = vmatprep.subr.bf16.mxu0 0
        %752 = vmatpush1.bf16.msra.mxu0 0
        %753 = vmatprep.subr.bf16.mxu0 0
        %754 = vmatpush1.bf16.msra.mxu0 0
        %755 = vmatprep.subr.bf16.mxu0 0
        %756 = vmatpush1.bf16.msra.mxu0 0
        %757 = vmatprep.subr.bf16.mxu0 0
        %758 = vmatpush1.bf16.msra.mxu0 0
        %759 = vmatprep.subr.bf16.mxu0 0
        %760 = vmatpush1.bf16.msra.mxu0 0
        %761 = vmatprep.subr.bf16.mxu0 0
        %762 = vmatpush1.bf16.msra.mxu0 0
        %763 = vmatprep.mubr.bf16.mxu0 0
        %764 = vmatmul.mubr.bf16.gmra.mrb[0].mxu0 %v542
        %v765 = vpop.f32.mrb[0].mxu0
        %v766 = vadd.f32 %v333, %v765
        %v767 = vpop.f32.mrb[0].mxu0
        %v768 = vadd.f32 %v333, %v767
        %v769 = vpop.f32.mrb[0].mxu0
        %v770 = vadd.f32 %v338, %v769
        %v771 = vpop.f32.mrb[0].mxu0
        %v772 = vadd.f32 %v338, %v771
        %773 = vmatprep.mubr.bf16.mxu0 0
        %774 = vmatmul.mubr.bf16.gmra.mrb[0].mxu0 %v545
        %v775 = vpop.f32.mrb[0].mxu0
        %v776 = vadd.f32 %v343, %v775
        %v777 = vpop.f32.mrb[0].mxu0
        %v778 = vadd.f32 %v343, %v777
        %v779 = vpop.f32.mrb[0].mxu0
        %v780 = vadd.f32 %v348, %v779
        %v781 = vpop.f32.mrb[0].mxu0
        %v782 = vadd.f32 %v348, %v781
        %783 = vdwg.mxu0
        %s784 = sld [smem:[#allocation2]]
        %vm785 = vcmp.ge.f32.partialorder %v607, 0.0
        %vm786 = vcmp.ge.f32.partialorder %v609, 0.0
        %vm787 = vcmp.ge.f32.partialorder %v660, 0.0
        %vm788 = vcmp.ge.f32.partialorder %v662, 0.0
        %vm789 = vcmp.ge.f32.partialorder %v713, 0.0
        %vm790 = vcmp.ge.f32.partialorder %v715, 0.0
        %vm791 = vcmp.ge.f32.partialorder %v766, 0.0
        %vm792 = vcmp.ge.f32.partialorder %v768, 0.0
        %vm793 = vcmp.ge.f32.partialorder %v611, 0.0
        %vm794 = vcmp.ge.f32.partialorder %v613, 0.0
        %vm795 = vcmp.ge.f32.partialorder %v664, 0.0
        %vm796 = vcmp.ge.f32.partialorder %v666, 0.0
        %vm797 = vcmp.ge.f32.partialorder %v717, 0.0
        %vm798 = vcmp.ge.f32.partialorder %v719, 0.0
        %vm799 = vcmp.ge.f32.partialorder %v770, 0.0
        %vm800 = vcmp.ge.f32.partialorder %v772, 0.0
        %vm801 = vcmp.ge.f32.partialorder %v617, 0.0
        %vm802 = vcmp.ge.f32.partialorder %v619, 0.0
        %vm803 = vcmp.ge.f32.partialorder %v670, 0.0
        %vm804 = vcmp.ge.f32.partialorder %v672, 0.0
        %vm805 = vcmp.ge.f32.partialorder %v723, 0.0
        %vm806 = vcmp.ge.f32.partialorder %v725, 0.0
        %vm807 = vcmp.ge.f32.partialorder %v776, 0.0
        %vm808 = vcmp.ge.f32.partialorder %v778, 0.0
        %vm809 = vcmp.ge.f32.partialorder %v621, 0.0
        %vm810 = vcmp.ge.f32.partialorder %v623, 0.0
        %vm811 = vcmp.ge.f32.partialorder %v674, 0.0
        %vm812 = vcmp.ge.f32.partialorder %v676, 0.0
        %vm813 = vcmp.ge.f32.partialorder %v727, 0.0
        %vm814 = vcmp.ge.f32.partialorder %v729, 0.0
        %vm815 = vcmp.ge.f32.partialorder %v780, 0.0
        %vm816 = vcmp.ge.f32.partialorder %v782, 0.0
        %v817 = vstv %s784
        %v818 = vmul.f32 %v817, %v607
        %v819 = vmul.f32 %v817, %v609
        %v820 = vmul.f32 %v817, %v660
        %v821 = vmul.f32 %v817, %v662
        %v822 = vmul.f32 %v817, %v713
        %v823 = vmul.f32 %v817, %v715
        %v824 = vmul.f32 %v817, %v766
        %v825 = vmul.f32 %v817, %v768
        %v826 = vmul.f32 %v817, %v611
        %v827 = vmul.f32 %v817, %v613
        %v828 = vmul.f32 %v817, %v664
        %v829 = vmul.f32 %v817, %v666
        %v830 = vmul.f32 %v817, %v717
        %v831 = vmul.f32 %v817, %v719
        %v832 = vmul.f32 %v817, %v770
        %v833 = vmul.f32 %v817, %v772
        %v834 = vmul.f32 %v817, %v617
        %v835 = vmul.f32 %v817, %v619
        %v836 = vmul.f32 %v817, %v670
        %v837 = vmul.f32 %v817, %v672
        %v838 = vmul.f32 %v817, %v723
        %v839 = vmul.f32 %v817, %v725
        %v840 = vmul.f32 %v817, %v776
        %v841 = vmul.f32 %v817, %v778
        %v842 = vmul.f32 %v817, %v621
        %v843 = vmul.f32 %v817, %v623
        %v844 = vmul.f32 %v817, %v674
        %v845 = vmul.f32 %v817, %v676
        %v846 = vmul.f32 %v817, %v727
        %v847 = vmul.f32 %v817, %v729
        %v848 = vmul.f32 %v817, %v780
        %v849 = vmul.f32 %v817, %v782
        %v850 = vsel %vm785, %v607, %v818
        %v851 = vsel %vm786, %v609, %v819
        %v852 = vsel %vm787, %v660, %v820
        %v853 = vsel %vm788, %v662, %v821
        %v854 = vsel %vm789, %v713, %v822
        %v855 = vsel %vm790, %v715, %v823
        %v856 = vsel %vm791, %v766, %v824
        %v857 = vsel %vm792, %v768, %v825
        %v858 = vsel %vm793, %v611, %v826
        %v859 = vsel %vm794, %v613, %v827
        %v860 = vsel %vm795, %v664, %v828
        %v861 = vsel %vm796, %v666, %v829
        %v862 = vsel %vm797, %v717, %v830
        %v863 = vsel %vm798, %v719, %v831
        %v864 = vsel %vm799, %v770, %v832
        %v865 = vsel %vm800, %v772, %v833
        %v866 = vsel %vm801, %v617, %v834
        %v867 = vsel %vm802, %v619, %v835
        %v868 = vsel %vm803, %v670, %v836
        %v869 = vsel %vm804, %v672, %v837
        %v870 = vsel %vm805, %v723, %v838
        %v871 = vsel %vm806, %v725, %v839
        %v872 = vsel %vm807, %v776, %v840
        %v873 = vsel %vm808, %v778, %v841
        %v874 = vsel %vm809, %v621, %v842
        %v875 = vsel %vm810, %v623, %v843
        %v876 = vsel %vm811, %v674, %v844
        %v877 = vsel %vm812, %v676, %v845
        %v878 = vsel %vm813, %v727, %v846
        %v879 = vsel %vm814, %v729, %v847
        %v880 = vsel %vm815, %v780, %v848
        %v881 = vsel %vm816, %v782, %v849
        %882 = vst [vmem:[%s282] sm:$0xff] %v850
        %883 = vst [vmem:[%s282 + $0x8] sm:$0xff] %v851
        %884 = vst [vmem:[%s282 + $0x10] sm:$0xff] %v852
        %885 = vst [vmem:[%s282 + $0x18] sm:$0xff] %v853
        %886 = vst [vmem:[%s282 + $0x20] sm:$0xff] %v854
        %887 = vst [vmem:[%s282 + $0x28] sm:$0xff] %v855
        %888 = vst [vmem:[%s282 + $0x30] sm:$0xff] %v856
        %889 = vst [vmem:[%s282 + $0x38] sm:$0xff] %v857
        %890 = vst [vmem:[%s282 + $0x40] sm:$0xff] %v858
        %891 = vst [vmem:[%s282 + $0x48] sm:$0xff] %v859
        %892 = vst [vmem:[%s282 + $0x50] sm:$0xff] %v860
        %893 = vst [vmem:[%s282 + $0x58] sm:$0xff] %v861
        %894 = vst [vmem:[%s282 + $0x60] sm:$0xff] %v862
        %895 = vst [vmem:[%s282 + $0x68] sm:$0xff] %v863
        %896 = vst [vmem:[%s282 + $0x70] sm:$0xff] %v864
        %897 = vst [vmem:[%s282 + $0x78] sm:$0xff] %v865
        %898 = vst [vmem:[%s282 + $0x80] sm:$0xff] %v866
        %899 = vst [vmem:[%s282 + $0x88] sm:$0xff] %v867
        %900 = vst [vmem:[%s282 + $0x90] sm:$0xff] %v868
        %901 = vst [vmem:[%s282 + $0x98] sm:$0xff] %v869
        %902 = vst [vmem:[%s282 + $0xa0] sm:$0xff] %v870
        %903 = vst [vmem:[%s282 + $0xa8] sm:$0xff] %v871
        %904 = vst [vmem:[%s282 + $0xb0] sm:$0xff] %v872
        %905 = vst [vmem:[%s282 + $0xb8] sm:$0xff] %v873
        %906 = vst [vmem:[%s282 + $0xc0] sm:$0xff] %v874
        %907 = vst [vmem:[%s282 + $0xc8] sm:$0xff] %v875
        %908 = vst [vmem:[%s282 + $0xd0] sm:$0xff] %v876
        %909 = vst [vmem:[%s282 + $0xd8] sm:$0xff] %v877
        %910 = vst [vmem:[%s282 + $0xe0] sm:$0xff] %v878
        %911 = vst [vmem:[%s282 + $0xe8] sm:$0xff] %v879
        %912 = vst [vmem:[%s282 + $0xf0] sm:$0xff] %v880
        %913 = vst [vmem:[%s282 + $0xf8] sm:$0xff] %v881
        %s914 = sand.u32 %s113, 1
        %s915 = sand.u32 %s113, 1
        %s916 = smul.addr %s915, 256
        %s917 = scalar_lea.vmem [#allocation4], %s916
        // Predicated region
        $region60: #{_lambda_.16} parent=54 // pred_check
          %p918 = pneg %p123
        $region61: #{_lambda_.16} parent=54 // pred_check_branch
          %920 = sbr.rel (%p918) target = $region63
        $region62: #{_lambda_.16} parent=54 // pred_region
          %s921 = smul.u32 8, %s16
          %s922 = smul.addr %s921, 8
          %s923 = scalar_lea.vmem %s4, %s922
          // Predicated region
          $region64: #{_lambda_.16} parent=62 // pred_check
            _
          $region65: #{_lambda_.16} parent=62 // pred_check_branch
            %925 = sbr.rel (0) target = $region67
          $region66: #{_lambda_.16} parent=62 // pred_region
            // Predicated region
            $region68: #{_lambda_.16} parent=66 // pred_check
              _
            $region69: #{_lambda_.16} parent=66 // pred_check_branch
              %927 = sbr.rel (0) target = $region71
            $region70: #{_lambda_.16} parent=66 // pred_region
              loop: start=0, step=1, limit=1
              $region72: #{_lambda_.16} parent=70 // loop_pre_header
                _
              $region73: #{_lambda_.16} parent=70 // loop_header
                %s929 = sphi 0, %s933
                %p930 = scmp.ge.s32.totalorder %s929, 1
                %s934 = sphi %s917, %s917
                %s935 = sphi %s923, %s923
              $region74: #{_lambda_.16} parent=70 // loop_header_branch
                %932 = sbr.rel (%p930) target = $region78
              $region75: #{_lambda_.16} parent=70 // loop_body
                %v936 = vld [vmem:[%s934] sm:$0xff]
                %937 = vst [vmem:[%s935] sm:$0xff] %v936
                %v938 = vld [vmem:[%s934 + $0x8] sm:$0xff]
                %939 = vst [vmem:[%s935 + $0x8] sm:$0xff] %v938
                %v940 = vld [vmem:[%s934 + $0x10] sm:$0xff]
                %941 = vst [vmem:[%s935 + $0x10] sm:$0xff] %v940
                %v942 = vld [vmem:[%s934 + $0x18] sm:$0xff]
                %943 = vst [vmem:[%s935 + $0x18] sm:$0xff] %v942
                %v944 = vld [vmem:[%s934 + $0x20] sm:$0xff]
                %945 = vst [vmem:[%s935 + $0x20] sm:$0xff] %v944
                %v946 = vld [vmem:[%s934 + $0x28] sm:$0xff]
                %947 = vst [vmem:[%s935 + $0x28] sm:$0xff] %v946
                %v948 = vld [vmem:[%s934 + $0x30] sm:$0xff]
                %949 = vst [vmem:[%s935 + $0x30] sm:$0xff] %v948
                %v950 = vld [vmem:[%s934 + $0x38] sm:$0xff]
                %951 = vst [vmem:[%s935 + $0x38] sm:$0xff] %v950
                %v952 = vld [vmem:[%s934 + $0x40] sm:$0xff]
                %953 = vst [vmem:[%s935 + $0x80] sm:$0xff] %v952
                %v954 = vld [vmem:[%s934 + $0x48] sm:$0xff]
                %955 = vst [vmem:[%s935 + $0x88] sm:$0xff] %v954
                %v956 = vld [vmem:[%s934 + $0x50] sm:$0xff]
                %957 = vst [vmem:[%s935 + $0x90] sm:$0xff] %v956
                %v958 = vld [vmem:[%s934 + $0x58] sm:$0xff]
                %959 = vst [vmem:[%s935 + $0x98] sm:$0xff] %v958
                %v960 = vld [vmem:[%s934 + $0x60] sm:$0xff]
                %961 = vst [vmem:[%s935 + $0xa0] sm:$0xff] %v960
                %v962 = vld [vmem:[%s934 + $0x68] sm:$0xff]
                %963 = vst [vmem:[%s935 + $0xa8] sm:$0xff] %v962
                %v964 = vld [vmem:[%s934 + $0x70] sm:$0xff]
                %965 = vst [vmem:[%s935 + $0xb0] sm:$0xff] %v964
                %v966 = vld [vmem:[%s934 + $0x78] sm:$0xff]
                %967 = vst [vmem:[%s935 + $0xb8] sm:$0xff] %v966
                %v968 = vld [vmem:[%s934 + $0x80] sm:$0xff]
                %969 = vst [vmem:[%s935 + $0x100] sm:$0xff] %v968
                %v970 = vld [vmem:[%s934 + $0x88] sm:$0xff]
                %971 = vst [vmem:[%s935 + $0x108] sm:$0xff] %v970
                %v972 = vld [vmem:[%s934 + $0x90] sm:$0xff]
                %973 = vst [vmem:[%s935 + $0x110] sm:$0xff] %v972
                %v974 = vld [vmem:[%s934 + $0x98] sm:$0xff]
                %975 = vst [vmem:[%s935 + $0x118] sm:$0xff] %v974
                %v976 = vld [vmem:[%s934 + $0xa0] sm:$0xff]
                %977 = vst [vmem:[%s935 + $0x120] sm:$0xff] %v976
                %v978 = vld [vmem:[%s934 + $0xa8] sm:$0xff]
                %979 = vst [vmem:[%s935 + $0x128] sm:$0xff] %v978
                %v980 = vld [vmem:[%s934 + $0xb0] sm:$0xff]
                %981 = vst [vmem:[%s935 + $0x130] sm:$0xff] %v980
                %v982 = vld [vmem:[%s934 + $0xb8] sm:$0xff]
                %983 = vst [vmem:[%s935 + $0x138] sm:$0xff] %v982
                %v984 = vld [vmem:[%s934 + $0xc0] sm:$0xff]
                %985 = vst [vmem:[%s935 + $0x180] sm:$0xff] %v984
                %v986 = vld [vmem:[%s934 + $0xc8] sm:$0xff]
                %987 = vst [vmem:[%s935 + $0x188] sm:$0xff] %v986
                %v988 = vld [vmem:[%s934 + $0xd0] sm:$0xff]
                %989 = vst [vmem:[%s935 + $0x190] sm:$0xff] %v988
                %v990 = vld [vmem:[%s934 + $0xd8] sm:$0xff]
                %991 = vst [vmem:[%s935 + $0x198] sm:$0xff] %v990
                %v992 = vld [vmem:[%s934 + $0xe0] sm:$0xff]
                %993 = vst [vmem:[%s935 + $0x1a0] sm:$0xff] %v992
                %v994 = vld [vmem:[%s934 + $0xe8] sm:$0xff]
                %995 = vst [vmem:[%s935 + $0x1a8] sm:$0xff] %v994
                %v996 = vld [vmem:[%s934 + $0xf0] sm:$0xff]
                %997 = vst [vmem:[%s935 + $0x1b0] sm:$0xff] %v996
                %v998 = vld [vmem:[%s934 + $0xf8] sm:$0xff]
                %999 = vst [vmem:[%s935 + $0x1b8] sm:$0xff] %v998
              $region76: #{_lambda_.16} parent=70 // loop_footer
                %s933 = sadd.s32 1, %s929
              $region77: #{_lambda_.16} parent=70 // loop_footer_branch
                %928 = sbr.rel target = $region73
              $region78: #{_lambda_.16} parent=70 // loop_exit
                _
            $region71: #{_lambda_.16} parent=66 // pred_fallthru
              _
            // Predicated region
            $region79: #{_lambda_.16} parent=66 // pred_check
              _
            $region80: #{_lambda_.16} parent=66 // pred_check_branch
              %1001 = sbr.rel target = $region82
            $region81: #{_lambda_.16} parent=66 // pred_region
              _
            $region82: #{_lambda_.16} parent=66 // pred_fallthru
              _
          $region67: #{_lambda_.16} parent=62 // pred_fallthru
            _
          %1002 = vnop
        $region63: #{_lambda_.16} parent=54 // pred_fallthru
          _
      $region55: #{_lambda_.16} parent=5 // pred_fallthru
        _
      %p1003 = scmp.le.s32.totalorder 2, %s11
      // Predicated region
      $region83: #{_lambda_.16} parent=5 // pred_check
        %p1004 = pneg %p1003
      $region84: #{_lambda_.16} parent=5 // pred_check_branch
        %1006 = sbr.rel (%p1004) target = $region86
      $region85: #{_lambda_.16} parent=5 // pred_region
        %s1007 = ssub.s32 %s11, 2
        // Predicated region
        $region87: #{_lambda_.16} parent=85 // pred_check
          %p1008 = pneg %p129
        $region88: #{_lambda_.16} parent=85 // pred_check_branch
          %1010 = sbr.rel (%p1008) target = $region90
        $region89: #{_lambda_.16} parent=85 // pred_region
          %s1011 = sand.u32 %s114, 1
          %s1012 = sand.u32 %s114, 1
          %s1013 = smul.addr %s1012, 256
          %s1014 = scalar_lea.vmem [#allocation4], %s1013
        $region90: #{_lambda_.16} parent=85 // pred_fallthru
          _
      $region86: #{_lambda_.16} parent=5 // pred_fallthru
        _
    $region6: #{_lambda_.16} parent=1 // loop_footer
      %s15 = sadd.s32 1, %s11
    $region7: #{_lambda_.16} parent=1 // loop_footer_branch
      %10 = sbr.rel target = $region3
    $region8: #{_lambda_.16} parent=1 // loop_exit
      _

// kernel: _lambda_.17
$region0: #{_lambda_.17}
  #allocation0 [shape = 'u32[]', space=smem, size = 0x4, offset = 0x4, fixed_abs, tag = 'smem constant byte address 0x4 - core index']
  #allocation1 [shape = 'u32[144,128]{1,0:T(1,128)}', space=vmem, size = 0x12000, scoped, tag = 'internal scratch']
  #allocation2 [shape = 'f32[1]{0:T(128)S(6)}', space=smem, size = 0x200, scoped, tag = 'scoped memory for _lambda_.17']
  %s0 = inlined_call_operand.vmem [shape: bf16[8,288], index: 0, kind: input, shape index: {}]
  %s1 = inlined_call_operand.vmem [shape: bf16[288,2048], index: 1, kind: input, shape index: {}]
  %s2 = inlined_call_operand.vmem [shape: f32[8,1], index: 2, kind: input, shape index: {}]
  %s3 = inlined_call_operand.<no memory space> [shape: f32[1], index: 3, kind: input, shape index: {}]
  %s4 = inlined_call_operand.vmem [shape: f32[8,2048], index: 4, kind: output, shape index: {}]
  %s5 = sld [smem:[#allocation0]]
  $region72: #{_lambda_.17} parent=0
    _
  %s7 = ssub.s32 1, %s5
  %s8 = scalar_select 0, %s7, %s5
  %9 = sst [smem:[#allocation2]] %s3
  $region1: #{_lambda_.17} parent=0
    #allocation3 [shape = 'u8[1179648]{0}', space=vmem, size = 0x120000, scoped, tag = 'input window, operand 1']
    loop: start=0, step=1, limit=4
    $region2: #{_lambda_.17} parent=1 // loop_pre_header
      _
    $region3: #{_lambda_.17} parent=1 // loop_header
      %s11 = sphi 0, %s15
      %p12 = scmp.ge.s32.totalorder %s11, 4
      %s19 = sphi 0, %s19
      %s21 = sphi 0, %s19
      %s22 = sphi 0, %s21
      %s36 = sphi 0, %s22
      %s42 = sphi 0, %s44
      %s45 = sphi 0, %s42
      %s46 = sphi 0, %s45
      %s62 = sphi 0, %s46
      %s66 = sphi 0, %s66
      %s68 = sphi 0, %s66
      %s69 = sphi 0, %s68
      %s83 = sphi 0, %s69
      %s87 = sphi 0, %s87
      %s89 = sphi 0, %s87
      %s90 = sphi 0, %s89
      %s104 = sphi 0, %s90
      %s110 = sphi 0, %s112
      %s113 = sphi 0, %s110
      %s114 = sphi 0, %s113
      %s130 = sphi 0, %s114
    $region4: #{_lambda_.17} parent=1 // loop_header_branch
      %14 = sbr.rel (%p12) target = $region8
    $region5: #{_lambda_.17} parent=1 // loop_body
      %s16 = ssub.s32 %s11, 1
      %s17 = ssub.s32 %s11, 2
      %s18 = sadd.s32 %s11, 1
      %s20 = sadd.s32 %s19, 1
      %p23 = scmp.eq.s32.totalorder %s11, 1
      %p24 = scmp.ne.s32.totalorder %s19, %s21
      %p25 = scmp.eq.s32.totalorder %s11, 0
      %p26 = por %p24, %p25
      %p27 = scmp.ne.s32.totalorder %s19, %s21
      %p28 = scmp.eq.s32.totalorder %s16, 1
      %p29 = por %p27, %p28
      %p30 = scmp.ne.s32.totalorder %s21, %s22
      %p31 = scmp.eq.s32.totalorder %s16, 0
      %p32 = por %p30, %p31
      %p33 = scmp.ne.s32.totalorder %s21, %s22
      %p34 = scmp.eq.s32.totalorder %s17, 1
      %p35 = por %p33, %p34
      %p37 = scmp.ne.s32.totalorder %s22, %s36
      %p38 = scmp.eq.s32.totalorder %s17, 0
      %p39 = por %p37, %p38
      %s40 = ssub.s32 %s11, %s18
      %p41 = scmp.eq.s32.totalorder %s40, 0
      %s43 = sadd.s32 %s42, 1
      %s44 = scalar_select %p41, %s42, %s43
      %p47 = pneg %p41
      %p48 = scmp.eq.s32.totalorder %s11, 1
      %p49 = por %p47, %p48
      %p50 = scmp.ne.s32.totalorder %s42, %s45
      %p51 = scmp.eq.s32.totalorder %s11, 0
      %p52 = por %p50, %p51
      %p53 = scmp.ne.s32.totalorder %s42, %s45
      %p54 = scmp.eq.s32.totalorder %s16, 1
      %p55 = por %p53, %p54
      %p56 = scmp.ne.s32.totalorder %s45, %s46
      %p57 = scmp.eq.s32.totalorder %s16, 0
      %p58 = por %p56, %p57
      %p59 = scmp.ne.s32.totalorder %s45, %s46
      %p60 = scmp.eq.s32.totalorder %s17, 1
      %p61 = por %p59, %p60
      %p63 = scmp.ne.s32.totalorder %s46, %s62
      %p64 = scmp.eq.s32.totalorder %s17, 0
      %p65 = por %p63, %p64
      %s67 = sadd.s32 %s66, 1
      %p70 = scmp.eq.s32.totalorder %s11, 1
      %p71 = scmp.ne.s32.totalorder %s66, %s68
      %p72 = scmp.eq.s32.totalorder %s11, 0
      %p73 = por %p71, %p72
      %p74 = scmp.ne.s32.totalorder %s66, %s68
      %p75 = scmp.eq.s32.totalorder %s16, 1
      %p76 = por %p74, %p75
      %p77 = scmp.ne.s32.totalorder %s68, %s69
      %p78 = scmp.eq.s32.totalorder %s16, 0
      %p79 = por %p77, %p78
      %p80 = scmp.ne.s32.totalorder %s68, %s69
      %p81 = scmp.eq.s32.totalorder %s17, 1
      %p82 = por %p80, %p81
      %p84 = scmp.ne.s32.totalorder %s69, %s83
      %p85 = scmp.eq.s32.totalorder %s17, 0
      %p86 = por %p84, %p85
      %s88 = sadd.s32 %s87, 1
      %p91 = scmp.eq.s32.totalorder %s11, 1
      %p92 = scmp.ne.s32.totalorder %s87, %s89
      %p93 = scmp.eq.s32.totalorder %s11, 0
      %p94 = por %p92, %p93
      %p95 = scmp.ne.s32.totalorder %s87, %s89
      %p96 = scmp.eq.s32.totalorder %s16, 1
      %p97 = por %p95, %p96
      %p98 = scmp.ne.s32.totalorder %s89, %s90
      %p99 = scmp.eq.s32.totalorder %s16, 0
      %p100 = por %p98, %p99
      %p101 = scmp.ne.s32.totalorder %s89, %s90
      %p102 = scmp.eq.s32.totalorder %s17, 1
      %p103 = por %p101, %p102
      %p105 = scmp.ne.s32.totalorder %s90, %s104
      %p106 = scmp.eq.s32.totalorder %s17, 0
      %p107 = por %p105, %p106
      %s108 = ssub.s32 %s11, %s18
      %p109 = scmp.eq.s32.totalorder %s108, 0
      %s111 = sadd.s32 %s110, 1
      %s112 = scalar_select %p109, %s110, %s111
      %p115 = pneg %p109
      %p116 = scmp.eq.s32.totalorder %s11, 1
      %p117 = por %p115, %p116
      %p118 = scmp.ne.s32.totalorder %s110, %s113
      %p119 = scmp.eq.s32.totalorder %s11, 0
      %p120 = por %p118, %p119
      %p121 = scmp.ne.s32.totalorder %s110, %s113
      %p122 = scmp.eq.s32.totalorder %s16, 1
      %p123 = por %p121, %p122
      %p124 = scmp.ne.s32.totalorder %s113, %s114
      %p125 = scmp.eq.s32.totalorder %s16, 0
      %p126 = por %p124, %p125
      %p127 = scmp.ne.s32.totalorder %s113, %s114
      %p128 = scmp.eq.s32.totalorder %s17, 1
      %p129 = por %p127, %p128
      %p131 = scmp.ne.s32.totalorder %s114, %s130
      %p132 = scmp.eq.s32.totalorder %s17, 0
      %p133 = por %p131, %p132
      %p134 = scmp.le.s32.totalorder 1, %s11
      %p135 = scmp.lt.s32.totalorder %s11, 3
      %p136 = pnand %p134, %p135
      %p137 = pneg %p136
      // Predicated region
      $region9: #{_lambda_.17} parent=5 // pred_check
        _
      $region10: #{_lambda_.17} parent=5 // pred_check_branch
        %139 = sbr.rel (%p136) target = $region12
      $region11: #{_lambda_.17} parent=5 // pred_region
        %s140 = ssub.s32 %s11, 1
        // Predicated region
        $region13: #{_lambda_.17} parent=11 // pred_check
          %p141 = pneg %p32
        $region14: #{_lambda_.17} parent=11 // pred_check_branch
          %143 = sbr.rel (%p141) target = $region16
        $region15: #{_lambda_.17} parent=11 // pred_region
          _
        $region16: #{_lambda_.17} parent=11 // pred_fallthru
          _
        // Predicated region
        $region17: #{_lambda_.17} parent=11 // pred_check
          %p144 = pneg %p79
        $region18: #{_lambda_.17} parent=11 // pred_check_branch
          %146 = sbr.rel (%p144) target = $region20
        $region19: #{_lambda_.17} parent=11 // pred_region
          _
        $region20: #{_lambda_.17} parent=11 // pred_fallthru
          _
        // Predicated region
        $region21: #{_lambda_.17} parent=11 // pred_check
          %p147 = pneg %p100
        $region22: #{_lambda_.17} parent=11 // pred_check_branch
          %149 = sbr.rel (%p147) target = $region24
        $region23: #{_lambda_.17} parent=11 // pred_region
          _
        $region24: #{_lambda_.17} parent=11 // pred_fallthru
          _
      $region12: #{_lambda_.17} parent=5 // pred_fallthru
        _
      %p150 = scmp.lt.s32.totalorder %s11, 2
      // Predicated region
      $region25: #{_lambda_.17} parent=5 // pred_check
        %p151 = pneg %p150
      $region26: #{_lambda_.17} parent=5 // pred_check_branch
        %153 = sbr.rel (%p151) target = $region28
      $region27: #{_lambda_.17} parent=5 // pred_region
        // Predicated region
        $region29: #{_lambda_.17} parent=27 // pred_check
          %p154 = pneg %p52
        $region30: #{_lambda_.17} parent=27 // pred_check_branch
          %156 = sbr.rel (%p154) target = $region32
        $region31: #{_lambda_.17} parent=27 // pred_region
          %s157 = sand.u32 %s42, 1
          %s158 = sand.u32 %s42, 1
          %s159 = smul.addr %s158, 1152
          %s160 = scalar_lea.vmem [#allocation3], %s159
          %s161 = smul.u32 8, %s11
          %s162 = smul.addr %s161, 4
          %s163 = scalar_lea.vmem %s1, %s162
          // Predicated region
          $region33: #{_lambda_.17} parent=31 // pred_check
            _
          $region34: #{_lambda_.17} parent=31 // pred_check_branch
            %165 = sbr.rel (0) target = $region36
          $region35: #{_lambda_.17} parent=31 // pred_region
            // Predicated region
            $region37: #{_lambda_.17} parent=35 // pred_check
              _
            $region38: #{_lambda_.17} parent=35 // pred_check_branch
              %167 = sbr.rel (0) target = $region40
            $region39: #{_lambda_.17} parent=35 // pred_region
              loop: start=0, step=1, limit=1
              $region41: #{_lambda_.17} parent=39 // loop_pre_header
                _
              $region42: #{_lambda_.17} parent=39 // loop_header
                %s169 = sphi 0, %s173
                %p170 = scmp.ge.s32.totalorder %s169, 1
                %s174 = sphi %s163, %s163
                %s175 = sphi %s160, %s160
              $region43: #{_lambda_.17} parent=39 // loop_header_branch
                %172 = sbr.rel (%p170) target = $region47
              $region44: #{_lambda_.17} parent=39 // loop_body
                %v176 = vld [vmem:[%s174] sm:$0xff]
                %177 = vst [vmem:[%s175] sm:$0xff] %v176
                %v178 = vld [vmem:[%s174 + $0x8] sm:$0xff]
                %179 = vst [vmem:[%s175 + $0x8] sm:$0xff] %v178
                %v180 = vld [vmem:[%s174 + $0x10] sm:$0xff]
                %181 = vst [vmem:[%s175 + $0x10] sm:$0xff] %v180
                %v182 = vld [vmem:[%s174 + $0x18] sm:$0xff]
                %183 = vst [vmem:[%s175 + $0x18] sm:$0xff] %v182
                %v184 = vld [vmem:[%s174 + $0x40] sm:$0xff]
                %185 = vst [vmem:[%s175 + $0x20] sm:$0xff] %v184
                %v186 = vld [vmem:[%s174 + $0x48] sm:$0xff]
                %187 = vst [vmem:[%s175 + $0x28] sm:$0xff] %v186
                %v188 = vld [vmem:[%s174 + $0x50] sm:$0xff]
                %189 = vst [vmem:[%s175 + $0x30] sm:$0xff] %v188
                %v190 = vld [vmem:[%s174 + $0x58] sm:$0xff]
                %191 = vst [vmem:[%s175 + $0x38] sm:$0xff] %v190
                %v192 = vld [vmem:[%s174 + $0x80] sm:$0xff]
                %193 = vst [vmem:[%s175 + $0x40] sm:$0xff] %v192
                %v194 = vld [vmem:[%s174 + $0x88] sm:$0xff]
                %195 = vst [vmem:[%s175 + $0x48] sm:$0xff] %v194
                %v196 = vld [vmem:[%s174 + $0x90] sm:$0xff]
                %197 = vst [vmem:[%s175 + $0x50] sm:$0xff] %v196
                %v198 = vld [vmem:[%s174 + $0x98] sm:$0xff]
                %199 = vst [vmem:[%s175 + $0x58] sm:$0xff] %v198
                %v200 = vld [vmem:[%s174 + $0xc0] sm:$0xff]
                %201 = vst [vmem:[%s175 + $0x60] sm:$0xff] %v200
                %v202 = vld [vmem:[%s174 + $0xc8] sm:$0xff]
                %203 = vst [vmem:[%s175 + $0x68] sm:$0xff] %v202
                %v204 = vld [vmem:[%s174 + $0xd0] sm:$0xff]
                %205 = vst [vmem:[%s175 + $0x70] sm:$0xff] %v204
                %v206 = vld [vmem:[%s174 + $0xd8] sm:$0xff]
                %207 = vst [vmem:[%s175 + $0x78] sm:$0xff] %v206
                %v208 = vld [vmem:[%s174 + $0x100] sm:$0xff]
                %209 = vst [vmem:[%s175 + $0x80] sm:$0xff] %v208
                %v210 = vld [vmem:[%s174 + $0x108] sm:$0xff]
                %211 = vst [vmem:[%s175 + $0x88] sm:$0xff] %v210
                %v212 = vld [vmem:[%s174 + $0x110] sm:$0xff]
                %213 = vst [vmem:[%s175 + $0x90] sm:$0xff] %v212
                %v214 = vld [vmem:[%s174 + $0x118] sm:$0xff]
                %215 = vst [vmem:[%s175 + $0x98] sm:$0xff] %v214
                %v216 = vld [vmem:[%s174 + $0x140] sm:$0xff]
                %217 = vst [vmem:[%s175 + $0xa0] sm:$0xff] %v216
                %v218 = vld [vmem:[%s174 + $0x148] sm:$0xff]
                %219 = vst [vmem:[%s175 + $0xa8] sm:$0xff] %v218
                %v220 = vld [vmem:[%s174 + $0x150] sm:$0xff]
                %221 = vst [vmem:[%s175 + $0xb0] sm:$0xff] %v220
                %v222 = vld [vmem:[%s174 + $0x158] sm:$0xff]
                %223 = vst [vmem:[%s175 + $0xb8] sm:$0xff] %v222
                %v224 = vld [vmem:[%s174 + $0x180] sm:$0xff]
                %225 = vst [vmem:[%s175 + $0xc0] sm:$0xff] %v224
                %v226 = vld [vmem:[%s174 + $0x188] sm:$0xff]
                %227 = vst [vmem:[%s175 + $0xc8] sm:$0xff] %v226
                %v228 = vld [vmem:[%s174 + $0x190] sm:$0xff]
                %229 = vst [vmem:[%s175 + $0xd0] sm:$0xff] %v228
                %v230 = vld [vmem:[%s174 + $0x198] sm:$0xff]
                %231 = vst [vmem:[%s175 + $0xd8] sm:$0xff] %v230
                %v232 = vld [vmem:[%s174 + $0x1c0] sm:$0xff]
                %233 = vst [vmem:[%s175 + $0xe0] sm:$0xff] %v232
                %v234 = vld [vmem:[%s174 + $0x1c8] sm:$0xff]
                %235 = vst [vmem:[%s175 + $0xe8] sm:$0xff] %v234
                %v236 = vld [vmem:[%s174 + $0x1d0] sm:$0xff]
                %237 = vst [vmem:[%s175 + $0xf0] sm:$0xff] %v236
                %v238 = vld [vmem:[%s174 + $0x1d8] sm:$0xff]
                %239 = vst [vmem:[%s175 + $0xf8] sm:$0xff] %v238
                %v240 = vld [vmem:[%s174 + $0x200] sm:$0xff]
                %241 = vst [vmem:[%s175 + $0x100] sm:$0xff] %v240
                %v242 = vld [vmem:[%s174 + $0x208] sm:$0xff]
                %243 = vst [vmem:[%s175 + $0x108] sm:$0xff] %v242
                %v244 = vld [vmem:[%s174 + $0x210] sm:$0xff]
                %245 = vst [vmem:[%s175 + $0x110] sm:$0xff] %v244
                %v246 = vld [vmem:[%s174 + $0x218] sm:$0xff]
                %247 = vst [vmem:[%s175 + $0x118] sm:$0xff] %v246
                %v248 = vld [vmem:[%s174 + $0x240] sm:$0xff]
                %249 = vst [vmem:[%s175 + $0x120] sm:$0xff] %v248
                %v250 = vld [vmem:[%s174 + $0x248] sm:$0xff]
                %251 = vst [vmem:[%s175 + $0x128] sm:$0xff] %v250
                %v252 = vld [vmem:[%s174 + $0x250] sm:$0xff]
                %253 = vst [vmem:[%s175 + $0x130] sm:$0xff] %v252
                %v254 = vld [vmem:[%s174 + $0x258] sm:$0xff]
                %255 = vst [vmem:[%s175 + $0x138] sm:$0xff] %v254
                %v256 = vld [vmem:[%s174 + $0x280] sm:$0xff]
                %257 = vst [vmem:[%s175 + $0x140] sm:$0xff] %v256
                %v258 = vld [vmem:[%s174 + $0x288] sm:$0xff]
                %259 = vst [vmem:[%s175 + $0x148] sm:$0xff] %v258
                %v260 = vld [vmem:[%s174 + $0x290] sm:$0xff]
                %261 = vst [vmem:[%s175 + $0x150] sm:$0xff] %v260
                %v262 = vld [vmem:[%s174 + $0x298] sm:$0xff]
                %263 = vst [vmem:[%s175 + $0x158] sm:$0xff] %v262
                %v264 = vld [vmem:[%s174 + $0x2c0] sm:$0xff]
                %265 = vst [vmem:[%s175 + $0x160] sm:$0xff] %v264
                %v266 = vld [vmem:[%s174 + $0x2c8] sm:$0xff]
                %267 = vst [vmem:[%s175 + $0x168] sm:$0xff] %v266
                %v268 = vld [vmem:[%s174 + $0x2d0] sm:$0xff]
                %269 = vst [vmem:[%s175 + $0x170] sm:$0xff] %v268
                %v270 = vld [vmem:[%s174 + $0x2d8] sm:$0xff]
                %271 = vst [vmem:[%s175 + $0x178] sm:$0xff] %v270
                %v272 = vld [vmem:[%s174 + $0x300] sm:$0xff]
                %273 = vst [vmem:[%s175 + $0x180] sm:$0xff] %v272
                %v274 = vld [vmem:[%s174 + $0x308] sm:$0xff]
                %275 = vst [vmem:[%s175 + $0x188] sm:$0xff] %v274
                %v276 = vld [vmem:[%s174 + $0x310] sm:$0xff]
                %277 = vst [vmem:[%s175 + $0x190] sm:$0xff] %v276
                %v278 = vld [vmem:[%s174 + $0x318] sm:$0xff]
                %279 = vst [vmem:[%s175 + $0x198] sm:$0xff] %v278
                %v280 = vld [vmem:[%s174 + $0x340] sm:$0xff]
                %281 = vst [vmem:[%s175 + $0x1a0] sm:$0xff] %v280
                %v282 = vld [vmem:[%s174 + $0x348] sm:$0xff]
                %283 = vst [vmem:[%s175 + $0x1a8] sm:$0xff] %v282
                %v284 = vld [vmem:[%s174 + $0x350] sm:$0xff]
                %285 = vst [vmem:[%s175 + $0x1b0] sm:$0xff] %v284
                %v286 = vld [vmem:[%s174 + $0x358] sm:$0xff]
                %287 = vst [vmem:[%s175 + $0x1b8] sm:$0xff] %v286
                %v288 = vld [vmem:[%s174 + $0x380] sm:$0xff]
                %289 = vst [vmem:[%s175 + $0x1c0] sm:$0xff] %v288
                %v290 = vld [vmem:[%s174 + $0x388] sm:$0xff]
                %291 = vst [vmem:[%s175 + $0x1c8] sm:$0xff] %v290
                %v292 = vld [vmem:[%s174 + $0x390] sm:$0xff]
                %293 = vst [vmem:[%s175 + $0x1d0] sm:$0xff] %v292
                %v294 = vld [vmem:[%s174 + $0x398] sm:$0xff]
                %295 = vst [vmem:[%s175 + $0x1d8] sm:$0xff] %v294
                %v296 = vld [vmem:[%s174 + $0x3c0] sm:$0xff]
                %297 = vst [vmem:[%s175 + $0x1e0] sm:$0xff] %v296
                %v298 = vld [vmem:[%s174 + $0x3c8] sm:$0xff]
                %299 = vst [vmem:[%s175 + $0x1e8] sm:$0xff] %v298
                %v300 = vld [vmem:[%s174 + $0x3d0] sm:$0xff]
                %301 = vst [vmem:[%s175 + $0x1f0] sm:$0xff] %v300
                %v302 = vld [vmem:[%s174 + $0x3d8] sm:$0xff]
                %303 = vst [vmem:[%s175 + $0x1f8] sm:$0xff] %v302
                %v304 = vld [vmem:[%s174 + $0x400] sm:$0xff]
                %305 = vst [vmem:[%s175 + $0x200] sm:$0xff] %v304
                %v306 = vld [vmem:[%s174 + $0x408] sm:$0xff]
                %307 = vst [vmem:[%s175 + $0x208] sm:$0xff] %v306
                %v308 = vld [vmem:[%s174 + $0x410] sm:$0xff]
                %309 = vst [vmem:[%s175 + $0x210] sm:$0xff] %v308
                %v310 = vld [vmem:[%s174 + $0x418] sm:$0xff]
                %311 = vst [vmem:[%s175 + $0x218] sm:$0xff] %v310
                %v312 = vld [vmem:[%s174 + $0x440] sm:$0xff]
                %313 = vst [vmem:[%s175 + $0x220] sm:$0xff] %v312
                %v314 = vld [vmem:[%s174 + $0x448] sm:$0xff]
                %315 = vst [vmem:[%s175 + $0x228] sm:$0xff] %v314
                %v316 = vld [vmem:[%s174 + $0x450] sm:$0xff]
                %317 = vst [vmem:[%s175 + $0x230] sm:$0xff] %v316
                %v318 = vld [vmem:[%s174 + $0x458] sm:$0xff]
                %319 = vst [vmem:[%s175 + $0x238] sm:$0xff] %v318
                %v320 = vld [vmem:[%s174 + $0x480] sm:$0xff]
                %321 = vst [vmem:[%s175 + $0x240] sm:$0xff] %v320
                %v322 = vld [vmem:[%s174 + $0x488] sm:$0xff]
                %323 = vst [vmem:[%s175 + $0x248] sm:$0xff] %v322
                %v324 = vld [vmem:[%s174 + $0x490] sm:$0xff]
                %325 = vst [vmem:[%s175 + $0x250] sm:$0xff] %v324
                %v326 = vld [vmem:[%s174 + $0x498] sm:$0xff]
                %327 = vst [vmem:[%s175 + $0x258] sm:$0xff] %v326
                %v328 = vld [vmem:[%s174 + $0x4c0] sm:$0xff]
                %329 = vst [vmem:[%s175 + $0x260] sm:$0xff] %v328
                %v330 = vld [vmem:[%s174 + $0x4c8] sm:$0xff]
                %331 = vst [vmem:[%s175 + $0x268] sm:$0xff] %v330
                %v332 = vld [vmem:[%s174 + $0x4d0] sm:$0xff]
                %333 = vst [vmem:[%s175 + $0x270] sm:$0xff] %v332
                %v334 = vld [vmem:[%s174 + $0x4d8] sm:$0xff]
                %335 = vst [vmem:[%s175 + $0x278] sm:$0xff] %v334
                %v336 = vld [vmem:[%s174 + $0x500] sm:$0xff]
                %337 = vst [vmem:[%s175 + $0x280] sm:$0xff] %v336
                %v338 = vld [vmem:[%s174 + $0x508] sm:$0xff]
                %339 = vst [vmem:[%s175 + $0x288] sm:$0xff] %v338
                %v340 = vld [vmem:[%s174 + $0x510] sm:$0xff]
                %341 = vst [vmem:[%s175 + $0x290] sm:$0xff] %v340
                %v342 = vld [vmem:[%s174 + $0x518] sm:$0xff]
                %343 = vst [vmem:[%s175 + $0x298] sm:$0xff] %v342
                %v344 = vld [vmem:[%s174 + $0x540] sm:$0xff]
                %345 = vst [vmem:[%s175 + $0x2a0] sm:$0xff] %v344
                %v346 = vld [vmem:[%s174 + $0x548] sm:$0xff]
                %347 = vst [vmem:[%s175 + $0x2a8] sm:$0xff] %v346
                %v348 = vld [vmem:[%s174 + $0x550] sm:$0xff]
                %349 = vst [vmem:[%s175 + $0x2b0] sm:$0xff] %v348
                %v350 = vld [vmem:[%s174 + $0x558] sm:$0xff]
                %351 = vst [vmem:[%s175 + $0x2b8] sm:$0xff] %v350
                %v352 = vld [vmem:[%s174 + $0x580] sm:$0xff]
                %353 = vst [vmem:[%s175 + $0x2c0] sm:$0xff] %v352
                %v354 = vld [vmem:[%s174 + $0x588] sm:$0xff]
                %355 = vst [vmem:[%s175 + $0x2c8] sm:$0xff] %v354
                %v356 = vld [vmem:[%s174 + $0x590] sm:$0xff]
                %357 = vst [vmem:[%s175 + $0x2d0] sm:$0xff] %v356
                %v358 = vld [vmem:[%s174 + $0x598] sm:$0xff]
                %359 = vst [vmem:[%s175 + $0x2d8] sm:$0xff] %v358
                %v360 = vld [vmem:[%s174 + $0x5c0] sm:$0xff]
                %361 = vst [vmem:[%s175 + $0x2e0] sm:$0xff] %v360
                %v362 = vld [vmem:[%s174 + $0x5c8] sm:$0xff]
                %363 = vst [vmem:[%s175 + $0x2e8] sm:$0xff] %v362
                %v364 = vld [vmem:[%s174 + $0x5d0] sm:$0xff]
                %365 = vst [vmem:[%s175 + $0x2f0] sm:$0xff] %v364
                %v366 = vld [vmem:[%s174 + $0x5d8] sm:$0xff]
                %367 = vst [vmem:[%s175 + $0x2f8] sm:$0xff] %v366
                %v368 = vld [vmem:[%s174 + $0x600] sm:$0xff]
                %369 = vst [vmem:[%s175 + $0x300] sm:$0xff] %v368
                %v370 = vld [vmem:[%s174 + $0x608] sm:$0xff]
                %371 = vst [vmem:[%s175 + $0x308] sm:$0xff] %v370
                %v372 = vld [vmem:[%s174 + $0x610] sm:$0xff]
                %373 = vst [vmem:[%s175 + $0x310] sm:$0xff] %v372
                %v374 = vld [vmem:[%s174 + $0x618] sm:$0xff]
                %375 = vst [vmem:[%s175 + $0x318] sm:$0xff] %v374
                %v376 = vld [vmem:[%s174 + $0x640] sm:$0xff]
                %377 = vst [vmem:[%s175 + $0x320] sm:$0xff] %v376
                %v378 = vld [vmem:[%s174 + $0x648] sm:$0xff]
                %379 = vst [vmem:[%s175 + $0x328] sm:$0xff] %v378
                %v380 = vld [vmem:[%s174 + $0x650] sm:$0xff]
                %381 = vst [vmem:[%s175 + $0x330] sm:$0xff] %v380
                %v382 = vld [vmem:[%s174 + $0x658] sm:$0xff]
                %383 = vst [vmem:[%s175 + $0x338] sm:$0xff] %v382
                %v384 = vld [vmem:[%s174 + $0x680] sm:$0xff]
                %385 = vst [vmem:[%s175 + $0x340] sm:$0xff] %v384
                %v386 = vld [vmem:[%s174 + $0x688] sm:$0xff]
                %387 = vst [vmem:[%s175 + $0x348] sm:$0xff] %v386
                %v388 = vld [vmem:[%s174 + $0x690] sm:$0xff]
                %389 = vst [vmem:[%s175 + $0x350] sm:$0xff] %v388
                %v390 = vld [vmem:[%s174 + $0x698] sm:$0xff]
                %391 = vst [vmem:[%s175 + $0x358] sm:$0xff] %v390
                %v392 = vld [vmem:[%s174 + $0x6c0] sm:$0xff]
                %393 = vst [vmem:[%s175 + $0x360] sm:$0xff] %v392
                %v394 = vld [vmem:[%s174 + $0x6c8] sm:$0xff]
                %395 = vst [vmem:[%s175 + $0x368] sm:$0xff] %v394
                %v396 = vld [vmem:[%s174 + $0x6d0] sm:$0xff]
                %397 = vst [vmem:[%s175 + $0x370] sm:$0xff] %v396
                %v398 = vld [vmem:[%s174 + $0x6d8] sm:$0xff]
                %399 = vst [vmem:[%s175 + $0x378] sm:$0xff] %v398
                %v400 = vld [vmem:[%s174 + $0x700] sm:$0xff]
                %401 = vst [vmem:[%s175 + $0x380] sm:$0xff] %v400
                %v402 = vld [vmem:[%s174 + $0x708] sm:$0xff]
                %403 = vst [vmem:[%s175 + $0x388] sm:$0xff] %v402
                %v404 = vld [vmem:[%s174 + $0x710] sm:$0xff]
                %405 = vst [vmem:[%s175 + $0x390] sm:$0xff] %v404
                %v406 = vld [vmem:[%s174 + $0x718] sm:$0xff]
                %407 = vst [vmem:[%s175 + $0x398] sm:$0xff] %v406
                %v408 = vld [vmem:[%s174 + $0x740] sm:$0xff]
                %409 = vst [vmem:[%s175 + $0x3a0] sm:$0xff] %v408
                %v410 = vld [vmem:[%s174 + $0x748] sm:$0xff]
                %411 = vst [vmem:[%s175 + $0x3a8] sm:$0xff] %v410
                %v412 = vld [vmem:[%s174 + $0x750] sm:$0xff]
                %413 = vst [vmem:[%s175 + $0x3b0] sm:$0xff] %v412
                %v414 = vld [vmem:[%s174 + $0x758] sm:$0xff]
                %415 = vst [vmem:[%s175 + $0x3b8] sm:$0xff] %v414
                %v416 = vld [vmem:[%s174 + $0x780] sm:$0xff]
                %417 = vst [vmem:[%s175 + $0x3c0] sm:$0xff] %v416
                %v418 = vld [vmem:[%s174 + $0x788] sm:$0xff]
                %419 = vst [vmem:[%s175 + $0x3c8] sm:$0xff] %v418
                %v420 = vld [vmem:[%s174 + $0x790] sm:$0xff]
                %421 = vst [vmem:[%s175 + $0x3d0] sm:$0xff] %v420
                %v422 = vld [vmem:[%s174 + $0x798] sm:$0xff]
                %423 = vst [vmem:[%s175 + $0x3d8] sm:$0xff] %v422
                %v424 = vld [vmem:[%s174 + $0x7c0] sm:$0xff]
                %425 = vst [vmem:[%s175 + $0x3e0] sm:$0xff] %v424
                %v426 = vld [vmem:[%s174 + $0x7c8] sm:$0xff]
                %427 = vst [vmem:[%s175 + $0x3e8] sm:$0xff] %v426
                %v428 = vld [vmem:[%s174 + $0x7d0] sm:$0xff]
                %429 = vst [vmem:[%s175 + $0x3f0] sm:$0xff] %v428
                %v430 = vld [vmem:[%s174 + $0x7d8] sm:$0xff]
                %431 = vst [vmem:[%s175 + $0x3f8] sm:$0xff] %v430
                %v432 = vld [vmem:[%s174 + $0x800] sm:$0xff]
                %433 = vst [vmem:[%s175 + $0x400] sm:$0xff] %v432
                %v434 = vld [vmem:[%s174 + $0x808] sm:$0xff]
                %435 = vst [vmem:[%s175 + $0x408] sm:$0xff] %v434
                %v436 = vld [vmem:[%s174 + $0x810] sm:$0xff]
                %437 = vst [vmem:[%s175 + $0x410] sm:$0xff] %v436
                %v438 = vld [vmem:[%s174 + $0x818] sm:$0xff]
                %439 = vst [vmem:[%s175 + $0x418] sm:$0xff] %v438
                %v440 = vld [vmem:[%s174 + $0x840] sm:$0xff]
                %441 = vst [vmem:[%s175 + $0x420] sm:$0xff] %v440
                %v442 = vld [vmem:[%s174 + $0x848] sm:$0xff]
                %443 = vst [vmem:[%s175 + $0x428] sm:$0xff] %v442
                %v444 = vld [vmem:[%s174 + $0x850] sm:$0xff]
                %445 = vst [vmem:[%s175 + $0x430] sm:$0xff] %v444
                %v446 = vld [vmem:[%s174 + $0x858] sm:$0xff]
                %447 = vst [vmem:[%s175 + $0x438] sm:$0xff] %v446
                %v448 = vld [vmem:[%s174 + $0x880] sm:$0xff]
                %449 = vst [vmem:[%s175 + $0x440] sm:$0xff] %v448
                %v450 = vld [vmem:[%s174 + $0x888] sm:$0xff]
                %451 = vst [vmem:[%s175 + $0x448] sm:$0xff] %v450
                %v452 = vld [vmem:[%s174 + $0x890] sm:$0xff]
                %453 = vst [vmem:[%s175 + $0x450] sm:$0xff] %v452
                %v454 = vld [vmem:[%s174 + $0x898] sm:$0xff]
                %455 = vst [vmem:[%s175 + $0x458] sm:$0xff] %v454
                %v456 = vld [vmem:[%s174 + $0x8c0] sm:$0xff]
                %457 = vst [vmem:[%s175 + $0x460] sm:$0xff] %v456
                %v458 = vld [vmem:[%s174 + $0x8c8] sm:$0xff]
                %459 = vst [vmem:[%s175 + $0x468] sm:$0xff] %v458
                %v460 = vld [vmem:[%s174 + $0x8d0] sm:$0xff]
                %461 = vst [vmem:[%s175 + $0x470] sm:$0xff] %v460
                %v462 = vld [vmem:[%s174 + $0x8d8] sm:$0xff]
                %463 = vst [vmem:[%s175 + $0x478] sm:$0xff] %v462
              $region45: #{_lambda_.17} parent=39 // loop_footer
                %s173 = sadd.s32 1, %s169
              $region46: #{_lambda_.17} parent=39 // loop_footer_branch
                %168 = sbr.rel target = $region42
              $region47: #{_lambda_.17} parent=39 // loop_exit
                _
            $region40: #{_lambda_.17} parent=35 // pred_fallthru
              _
            // Predicated region
            $region48: #{_lambda_.17} parent=35 // pred_check
              _
            $region49: #{_lambda_.17} parent=35 // pred_check_branch
              %465 = sbr.rel target = $region51
            $region50: #{_lambda_.17} parent=35 // pred_region
              _
            $region51: #{_lambda_.17} parent=35 // pred_fallthru
              _
          $region36: #{_lambda_.17} parent=31 // pred_fallthru
            _
          %466 = vnop
        $region32: #{_lambda_.17} parent=27 // pred_fallthru
          _
      $region28: #{_lambda_.17} parent=5 // pred_fallthru
        _
      %p467 = scmp.le.s32.totalorder 1, %s11
      %p468 = scmp.lt.s32.totalorder %s11, 3
      %p469 = pnand %p467, %p468
      %p470 = pneg %p469
      // Predicated region
      $region52: #{_lambda_.17} parent=5 // pred_check
        _
      $region53: #{_lambda_.17} parent=5 // pred_check_branch
        %472 = sbr.rel (%p469) target = $region55
      $region54: #{_lambda_.17} parent=5 // pred_region
        %s473 = ssub.s32 %s11, 1
        %s474 = sand.u32 %s45, 1
        %s475 = sand.u32 %s45, 1
        %s476 = smul.addr %s475, 1152
        %s477 = scalar_lea.vmem [#allocation3], %s476
        // Predicated region
        $region56: #{_lambda_.17} parent=54 // pred_check
          %p478 = pneg %p58
        $region57: #{_lambda_.17} parent=54 // pred_check_branch
          %480 = sbr.rel (%p478) target = $region59
        $region58: #{_lambda_.17} parent=54 // pred_region
          _
        $region59: #{_lambda_.17} parent=54 // pred_fallthru
          _
        %p481 = pneg %p32
        %p482 = pneg %p29
        %s483 = sand.u32 %s45, 1
        %s484 = sand.u32 %s45, 1
        %s485 = smul.addr %s484, 1152
        %s486 = scalar_lea.vmem [#allocation3], %s485
        %p487 = pneg %p58
        %p488 = pneg %p55
        %p489 = pneg %p79
        %p490 = pneg %p76
        %p491 = pneg %p100
        %p492 = pneg %p97
        %p493 = pneg %p126
        %p494 = pneg %p123
        %s495 = smul.u32 8, %s16
        %p496 = scmp.lt.s32.totalorder %s495, 15
        %s497 = scalar_select %p496, %s495, 15
        %s498 = smul.addr %s497, 8
        %s499 = scalar_lea.vmem %s4, %s498
        %s500 = smul.u32 8, %s16
        %s501 = smul.u32 8, %s16
        %p502 = scmp.lt.s32.totalorder %s501, 15
        %s503 = scalar_select %p502, %s501, 15
        %s504 = smul.addr %s503, 8
        %s505 = scalar_lea.vmem %s4, %s504
        %s506 = smul.u32 8, %s16
        %v508 = vld [vmem:[%s0] sm:$0xff]
        %v509 = vld [vmem:[%s0 + $0x8] sm:$0xf]
        %v510 = vld [vmem:[%s477] sm:$0xff]
        %v511 = vld [vmem:[%s477 + $0x8] sm:$0xff]
        %v512 = vld [vmem:[%s477 + $0x10] sm:$0xff]
        %v513 = vld [vmem:[%s477 + $0x18] sm:$0xff]
        %v514 = vld [vmem:[%s477 + $0x20] sm:$0xff]
        %v515 = vld [vmem:[%s477 + $0x28] sm:$0xff]
        %v516 = vld [vmem:[%s477 + $0x30] sm:$0xff]
        %v517 = vld [vmem:[%s477 + $0x38] sm:$0xff]
        %v518 = vld [vmem:[%s477 + $0x40] sm:$0xff]
        %v519 = vld [vmem:[%s477 + $0x48] sm:$0xff]
        %v520 = vld [vmem:[%s477 + $0x50] sm:$0xff]
        %v521 = vld [vmem:[%s477 + $0x58] sm:$0xff]
        %v522 = vld [vmem:[%s477 + $0x60] sm:$0xff]
        %v523 = vld [vmem:[%s477 + $0x68] sm:$0xff]
        %v524 = vld [vmem:[%s477 + $0x70] sm:$0xff]
        %v525 = vld [vmem:[%s477 + $0x78] sm:$0xff]
        %v526 = vld [vmem:[%s477 + $0x80] sm:$0xff]
        %v527 = vld [vmem:[%s477 + $0x88] sm:$0xff]
        %v528 = vld [vmem:[%s477 + $0x90] sm:$0xff]
        %v529 = vld [vmem:[%s477 + $0x98] sm:$0xff]
        %v530 = vld [vmem:[%s477 + $0xa0] sm:$0xff]
        %v531 = vld [vmem:[%s477 + $0xa8] sm:$0xff]
        %v532 = vld [vmem:[%s477 + $0xb0] sm:$0xff]
        %v533 = vld [vmem:[%s477 + $0xb8] sm:$0xff]
        %v534 = vld [vmem:[%s477 + $0xc0] sm:$0xff]
        %v535 = vld [vmem:[%s477 + $0xc8] sm:$0xff]
        %v536 = vld [vmem:[%s477 + $0xd0] sm:$0xff]
        %v537 = vld [vmem:[%s477 + $0xd8] sm:$0xff]
        %v538 = vld [vmem:[%s477 + $0xe0] sm:$0xff]
        %v539 = vld [vmem:[%s477 + $0xe8] sm:$0xff]
        %v540 = vld [vmem:[%s477 + $0xf0] sm:$0xff]
        %v541 = vld [vmem:[%s477 + $0xf8] sm:$0xff]
        %v542 = vld [vmem:[%s477 + $0x100] sm:$0xff]
        %v543 = vld [vmem:[%s477 + $0x108] sm:$0xff]
        %v544 = vld [vmem:[%s477 + $0x110] sm:$0xff]
        %v545 = vld [vmem:[%s477 + $0x118] sm:$0xff]
        %v546 = vld [vmem:[%s477 + $0x120] sm:$0xff]
        %v547 = vld [vmem:[%s477 + $0x128] sm:$0xff]
        %v548 = vld [vmem:[%s477 + $0x130] sm:$0xff]
        %v549 = vld [vmem:[%s477 + $0x138] sm:$0xff]
        %v550 = vld [vmem:[%s477 + $0x140] sm:$0xff]
        %v551 = vld [vmem:[%s477 + $0x148] sm:$0xff]
        %v552 = vld [vmem:[%s477 + $0x150] sm:$0xff]
        %v553 = vld [vmem:[%s477 + $0x158] sm:$0xff]
        %v554 = vld [vmem:[%s477 + $0x160] sm:$0xff]
        %v555 = vld [vmem:[%s477 + $0x168] sm:$0xff]
        %v556 = vld [vmem:[%s477 + $0x170] sm:$0xff]
        %v557 = vld [vmem:[%s477 + $0x178] sm:$0xff]
        %v558 = vld [vmem:[%s477 + $0x180] sm:$0xff]
        %v559 = vld [vmem:[%s477 + $0x188] sm:$0xff]
        %v560 = vld [vmem:[%s477 + $0x190] sm:$0xff]
        %v561 = vld [vmem:[%s477 + $0x198] sm:$0xff]
        %v562 = vld [vmem:[%s477 + $0x1a0] sm:$0xff]
        %v563 = vld [vmem:[%s477 + $0x1a8] sm:$0xff]
        %v564 = vld [vmem:[%s477 + $0x1b0] sm:$0xff]
        %v565 = vld [vmem:[%s477 + $0x1b8] sm:$0xff]
        %v566 = vld [vmem:[%s477 + $0x1c0] sm:$0xff]
        %v567 = vld [vmem:[%s477 + $0x1c8] sm:$0xff]
        %v568 = vld [vmem:[%s477 + $0x1d0] sm:$0xff]
        %v569 = vld [vmem:[%s477 + $0x1d8] sm:$0xff]
        %v570 = vld [vmem:[%s477 + $0x1e0] sm:$0xff]
        %v571 = vld [vmem:[%s477 + $0x1e8] sm:$0xff]
        %v572 = vld [vmem:[%s477 + $0x1f0] sm:$0xff]
        %v573 = vld [vmem:[%s477 + $0x1f8] sm:$0xff]
        %v574 = vld [vmem:[%s477 + $0x200] sm:$0xff]
        %v575 = vld [vmem:[%s477 + $0x208] sm:$0xff]
        %v576 = vld [vmem:[%s477 + $0x210] sm:$0xff]
        %v577 = vld [vmem:[%s477 + $0x218] sm:$0xff]
        %v578 = vld [vmem:[%s477 + $0x220] sm:$0xff]
        %v579 = vld [vmem:[%s477 + $0x228] sm:$0xff]
        %v580 = vld [vmem:[%s477 + $0x230] sm:$0xff]
        %v581 = vld [vmem:[%s477 + $0x238] sm:$0xff]
        %v582 = vld [vmem:[%s477 + $0x240] sm:$0xff]
        %v583 = vld [vmem:[%s477 + $0x248] sm:$0xff]
        %v584 = vld [vmem:[%s477 + $0x250] sm:$0xff]
        %v585 = vld [vmem:[%s477 + $0x258] sm:$0xff]
        %v586 = vld [vmem:[%s477 + $0x260] sm:$0xff]
        %v587 = vld [vmem:[%s477 + $0x268] sm:$0xff]
        %v588 = vld [vmem:[%s477 + $0x270] sm:$0xff]
        %v589 = vld [vmem:[%s477 + $0x278] sm:$0xff]
        %v590 = vld [vmem:[%s477 + $0x280] sm:$0xff]
        %v591 = vld [vmem:[%s477 + $0x288] sm:$0xff]
        %v592 = vld [vmem:[%s477 + $0x290] sm:$0xff]
        %v593 = vld [vmem:[%s477 + $0x298] sm:$0xff]
        %v594 = vld [vmem:[%s477 + $0x2a0] sm:$0xff]
        %v595 = vld [vmem:[%s477 + $0x2a8] sm:$0xff]
        %v596 = vld [vmem:[%s477 + $0x2b0] sm:$0xff]
        %v597 = vld [vmem:[%s477 + $0x2b8] sm:$0xff]
        %v598 = vld [vmem:[%s477 + $0x2c0] sm:$0xff]
        %v599 = vld [vmem:[%s477 + $0x2c8] sm:$0xff]
        %v600 = vld [vmem:[%s477 + $0x2d0] sm:$0xff]
        %v601 = vld [vmem:[%s477 + $0x2d8] sm:$0xff]
        %v602 = vld [vmem:[%s477 + $0x2e0] sm:$0xff]
        %v603 = vld [vmem:[%s477 + $0x2e8] sm:$0xff]
        %v604 = vld [vmem:[%s477 + $0x2f0] sm:$0xff]
        %v605 = vld [vmem:[%s477 + $0x2f8] sm:$0xff]
        %v606 = vld [vmem:[%s477 + $0x300] sm:$0xff]
        %v607 = vld [vmem:[%s477 + $0x308] sm:$0xff]
        %v608 = vld [vmem:[%s477 + $0x310] sm:$0xff]
        %v609 = vld [vmem:[%s477 + $0x318] sm:$0xff]
        %v610 = vld [vmem:[%s477 + $0x320] sm:$0xff]
        %v611 = vld [vmem:[%s477 + $0x328] sm:$0xff]
        %v612 = vld [vmem:[%s477 + $0x330] sm:$0xff]
        %v613 = vld [vmem:[%s477 + $0x338] sm:$0xff]
        %v614 = vld [vmem:[%s477 + $0x340] sm:$0xff]
        %v615 = vld [vmem:[%s477 + $0x348] sm:$0xff]
        %v616 = vld [vmem:[%s477 + $0x350] sm:$0xff]
        %v617 = vld [vmem:[%s477 + $0x358] sm:$0xff]
        %v618 = vld [vmem:[%s477 + $0x360] sm:$0xff]
        %v619 = vld [vmem:[%s477 + $0x368] sm:$0xff]
        %v620 = vld [vmem:[%s477 + $0x370] sm:$0xff]
        %v621 = vld [vmem:[%s477 + $0x378] sm:$0xff]
        %v622 = vld [vmem:[%s477 + $0x380] sm:$0xff]
        %v623 = vld [vmem:[%s477 + $0x388] sm:$0xff]
        %v624 = vld [vmem:[%s477 + $0x390] sm:$0xff]
        %v625 = vld [vmem:[%s477 + $0x398] sm:$0xff]
        %v626 = vld [vmem:[%s477 + $0x3a0] sm:$0xff]
        %v627 = vld [vmem:[%s477 + $0x3a8] sm:$0xff]
        %v628 = vld [vmem:[%s477 + $0x3b0] sm:$0xff]
        %v629 = vld [vmem:[%s477 + $0x3b8] sm:$0xff]
        %v630 = vld [vmem:[%s477 + $0x3c0] sm:$0xff]
        %v631 = vld [vmem:[%s477 + $0x3c8] sm:$0xff]
        %v632 = vld [vmem:[%s477 + $0x3d0] sm:$0xff]
        %v633 = vld [vmem:[%s477 + $0x3d8] sm:$0xff]
        %v634 = vld [vmem:[%s477 + $0x3e0] sm:$0xff]
        %v635 = vld [vmem:[%s477 + $0x3e8] sm:$0xff]
        %v636 = vld [vmem:[%s477 + $0x3f0] sm:$0xff]
        %v637 = vld [vmem:[%s477 + $0x3f8] sm:$0xff]
        %v638 = vld [vmem:[%s477 + $0x400] sm:$0xff]
        %v639 = vld [vmem:[%s477 + $0x408] sm:$0xff]
        %v640 = vld [vmem:[%s477 + $0x410] sm:$0xff]
        %v641 = vld [vmem:[%s477 + $0x418] sm:$0xff]
        %v642 = vld [vmem:[%s477 + $0x420] sm:$0xff]
        %v643 = vld [vmem:[%s477 + $0x428] sm:$0xff]
        %v644 = vld [vmem:[%s477 + $0x430] sm:$0xff]
        %v645 = vld [vmem:[%s477 + $0x438] sm:$0xff]
        %v646 = vld [vmem:[%s477 + $0x440] sm:$0xff]
        %v647 = vld [vmem:[%s477 + $0x448] sm:$0xff]
        %v648 = vld [vmem:[%s477 + $0x450] sm:$0xff]
        %v649 = vld [vmem:[%s477 + $0x458] sm:$0xff]
        %v650 = vld [vmem:[%s477 + $0x460] sm:$0xff]
        %v651 = vld [vmem:[%s477 + $0x468] sm:$0xff]
        %v652 = vld [vmem:[%s477 + $0x470] sm:$0xff]
        %v653 = vld [vmem:[%s477 + $0x478] sm:$0xff]
        %v654 = vld [vmem:[%s2] sm:$0xff]
        %656 = vset.pattern.permute.xlu0 0
        %657 = vperm.xlu0 %656, %v654
        %v658 = vpop.permute.xlu0 %657
        %v662 = vunpack.c.l.b16 %v508
        %v663 = vunpack.c.h.b16 %v508
        %v664 = vunpack.c.l.b16 %v509
        %v665 = vpack.c.b16 %v662, %v662
        %v666 = vpack.c.b16 %v663, %v663
        %v667 = vpack.c.b16 %v664, %v664
        %v814 = vunpack.c.l.b16 %v510
        %v815 = vunpack.c.h.b16 %v510
        %v816 = vunpack.c.l.b16 %v511
        %v817 = vunpack.c.h.b16 %v511
        %v818 = vunpack.c.l.b16 %v512
        %v819 = vunpack.c.h.b16 %v512
        %v820 = vunpack.c.l.b16 %v513
        %v821 = vunpack.c.h.b16 %v513
        %v822 = vunpack.c.l.b16 %v514
        %v823 = vunpack.c.h.b16 %v514
        %v824 = vunpack.c.l.b16 %v515
        %v825 = vunpack.c.h.b16 %v515
        %v826 = vunpack.c.l.b16 %v516
        %v827 = vunpack.c.h.b16 %v516
        %v828 = vunpack.c.l.b16 %v517
        %v829 = vunpack.c.h.b16 %v517
        %v830 = vunpack.c.l.b16 %v518
        %v831 = vunpack.c.h.b16 %v518
        %v832 = vunpack.c.l.b16 %v519
        %v833 = vunpack.c.h.b16 %v519
        %v834 = vunpack.c.l.b16 %v520
        %v835 = vunpack.c.h.b16 %v520
        %v836 = vunpack.c.l.b16 %v521
        %v837 = vunpack.c.h.b16 %v521
        %v838 = vunpack.c.l.b16 %v522
        %v839 = vunpack.c.h.b16 %v522
        %v840 = vunpack.c.l.b16 %v523
        %v841 = vunpack.c.h.b16 %v523
        %v842 = vunpack.c.l.b16 %v524
        %v843 = vunpack.c.h.b16 %v524
        %v844 = vunpack.c.l.b16 %v525
        %v845 = vunpack.c.h.b16 %v525
        %v846 = vunpack.c.l.b16 %v526
        %v847 = vunpack.c.h.b16 %v526
        %v848 = vunpack.c.l.b16 %v527
        %v849 = vunpack.c.h.b16 %v527
        %v850 = vunpack.c.l.b16 %v528
        %v851 = vunpack.c.h.b16 %v528
        %v852 = vunpack.c.l.b16 %v529
        %v853 = vunpack.c.h.b16 %v529
        %v854 = vunpack.c.l.b16 %v530
        %v855 = vunpack.c.h.b16 %v530
        %v856 = vunpack.c.l.b16 %v531
        %v857 = vunpack.c.h.b16 %v531
        %v858 = vunpack.c.l.b16 %v532
        %v859 = vunpack.c.h.b16 %v532
        %v860 = vunpack.c.l.b16 %v533
        %v861 = vunpack.c.h.b16 %v533
        %v862 = vunpack.c.l.b16 %v534
        %v863 = vunpack.c.h.b16 %v534
        %v864 = vunpack.c.l.b16 %v535
        %v865 = vunpack.c.h.b16 %v535
        %v866 = vunpack.c.l.b16 %v536
        %v867 = vunpack.c.h.b16 %v536
        %v868 = vunpack.c.l.b16 %v537
        %v869 = vunpack.c.h.b16 %v537
        %v870 = vunpack.c.l.b16 %v538
        %v871 = vunpack.c.h.b16 %v538
        %v872 = vunpack.c.l.b16 %v539
        %v873 = vunpack.c.h.b16 %v539
        %v874 = vunpack.c.l.b16 %v540
        %v875 = vunpack.c.h.b16 %v540
        %v876 = vunpack.c.l.b16 %v541
        %v877 = vunpack.c.h.b16 %v541
        %v878 = vunpack.c.l.b16 %v542
        %v879 = vunpack.c.h.b16 %v542
        %v880 = vunpack.c.l.b16 %v543
        %v881 = vunpack.c.h.b16 %v543
        %v882 = vunpack.c.l.b16 %v544
        %v883 = vunpack.c.h.b16 %v544
        %v884 = vunpack.c.l.b16 %v545
        %v885 = vunpack.c.h.b16 %v545
        %v886 = vunpack.c.l.b16 %v546
        %v887 = vunpack.c.h.b16 %v546
        %v888 = vunpack.c.l.b16 %v547
        %v889 = vunpack.c.h.b16 %v547
        %v890 = vunpack.c.l.b16 %v548
        %v891 = vunpack.c.h.b16 %v548
        %v892 = vunpack.c.l.b16 %v549
        %v893 = vunpack.c.h.b16 %v549
        %v894 = vunpack.c.l.b16 %v550
        %v895 = vunpack.c.h.b16 %v550
        %v896 = vunpack.c.l.b16 %v551
        %v897 = vunpack.c.h.b16 %v551
        %v898 = vunpack.c.l.b16 %v552
        %v899 = vunpack.c.h.b16 %v552
        %v900 = vunpack.c.l.b16 %v553
        %v901 = vunpack.c.h.b16 %v553
        %v902 = vunpack.c.l.b16 %v554
        %v903 = vunpack.c.h.b16 %v554
        %v904 = vunpack.c.l.b16 %v555
        %v905 = vunpack.c.h.b16 %v555
        %v906 = vunpack.c.l.b16 %v556
        %v907 = vunpack.c.h.b16 %v556
        %v908 = vunpack.c.l.b16 %v557
        %v909 = vunpack.c.h.b16 %v557
        %v910 = vunpack.c.l.b16 %v558
        %v911 = vunpack.c.h.b16 %v558
        %v912 = vunpack.c.l.b16 %v559
        %v913 = vunpack.c.h.b16 %v559
        %v914 = vunpack.c.l.b16 %v560
        %v915 = vunpack.c.h.b16 %v560
        %v916 = vunpack.c.l.b16 %v561
        %v917 = vunpack.c.h.b16 %v561
        %v918 = vunpack.c.l.b16 %v562
        %v919 = vunpack.c.h.b16 %v562
        %v920 = vunpack.c.l.b16 %v563
        %v921 = vunpack.c.h.b16 %v563
        %v922 = vunpack.c.l.b16 %v564
        %v923 = vunpack.c.h.b16 %v564
        %v924 = vunpack.c.l.b16 %v565
        %v925 = vunpack.c.h.b16 %v565
        %v926 = vunpack.c.l.b16 %v566
        %v927 = vunpack.c.h.b16 %v566
        %v928 = vunpack.c.l.b16 %v567
        %v929 = vunpack.c.h.b16 %v567
        %v930 = vunpack.c.l.b16 %v568
        %v931 = vunpack.c.h.b16 %v568
        %v932 = vunpack.c.l.b16 %v569
        %v933 = vunpack.c.h.b16 %v569
        %v934 = vunpack.c.l.b16 %v570
        %v935 = vunpack.c.h.b16 %v570
        %v936 = vunpack.c.l.b16 %v571
        %v937 = vunpack.c.h.b16 %v571
        %v938 = vunpack.c.l.b16 %v572
        %v939 = vunpack.c.h.b16 %v572
        %v940 = vunpack.c.l.b16 %v573
        %v941 = vunpack.c.h.b16 %v573
        %v942 = vunpack.c.l.b16 %v574
        %v943 = vunpack.c.h.b16 %v574
        %v944 = vunpack.c.l.b16 %v575
        %v945 = vunpack.c.h.b16 %v575
        %v946 = vunpack.c.l.b16 %v576
        %v947 = vunpack.c.h.b16 %v576
        %v948 = vunpack.c.l.b16 %v577
        %v949 = vunpack.c.h.b16 %v577
        %v950 = vunpack.c.l.b16 %v578
        %v951 = vunpack.c.h.b16 %v578
        %v952 = vunpack.c.l.b16 %v579
        %v953 = vunpack.c.h.b16 %v579
        %v954 = vunpack.c.l.b16 %v580
        %v955 = vunpack.c.h.b16 %v580
        %v956 = vunpack.c.l.b16 %v581
        %v957 = vunpack.c.h.b16 %v581
        %v958 = vunpack.c.l.b16 %v582
        %v959 = vunpack.c.h.b16 %v582
        %v960 = vunpack.c.l.b16 %v583
        %v961 = vunpack.c.h.b16 %v583
        %v962 = vunpack.c.l.b16 %v584
        %v963 = vunpack.c.h.b16 %v584
        %v964 = vunpack.c.l.b16 %v585
        %v965 = vunpack.c.h.b16 %v585
        %v966 = vunpack.c.l.b16 %v586
        %v967 = vunpack.c.h.b16 %v586
        %v968 = vunpack.c.l.b16 %v587
        %v969 = vunpack.c.h.b16 %v587
        %v970 = vunpack.c.l.b16 %v588
        %v971 = vunpack.c.h.b16 %v588
        %v972 = vunpack.c.l.b16 %v589
        %v973 = vunpack.c.h.b16 %v589
        %v974 = vunpack.c.l.b16 %v590
        %v975 = vunpack.c.h.b16 %v590
        %v976 = vunpack.c.l.b16 %v591
        %v977 = vunpack.c.h.b16 %v591
        %v978 = vunpack.c.l.b16 %v592
        %v979 = vunpack.c.h.b16 %v592
        %v980 = vunpack.c.l.b16 %v593
        %v981 = vunpack.c.h.b16 %v593
        %v982 = vunpack.c.l.b16 %v594
        %v983 = vunpack.c.h.b16 %v594
        %v984 = vunpack.c.l.b16 %v595
        %v985 = vunpack.c.h.b16 %v595
        %v986 = vunpack.c.l.b16 %v596
        %v987 = vunpack.c.h.b16 %v596
        %v988 = vunpack.c.l.b16 %v597
        %v989 = vunpack.c.h.b16 %v597
        %v990 = vunpack.c.l.b16 %v598
        %v991 = vunpack.c.h.b16 %v598
        %v992 = vunpack.c.l.b16 %v599
        %v993 = vunpack.c.h.b16 %v599
        %v994 = vunpack.c.l.b16 %v600
        %v995 = vunpack.c.h.b16 %v600
        %v996 = vunpack.c.l.b16 %v601
        %v997 = vunpack.c.h.b16 %v601
        %v998 = vunpack.c.l.b16 %v602
        %v999 = vunpack.c.h.b16 %v602
        %v1000 = vunpack.c.l.b16 %v603
        %v1001 = vunpack.c.h.b16 %v603
        %v1002 = vunpack.c.l.b16 %v604
        %v1003 = vunpack.c.h.b16 %v604
        %v1004 = vunpack.c.l.b16 %v605
        %v1005 = vunpack.c.h.b16 %v605
        %v1006 = vunpack.c.l.b16 %v606
        %v1007 = vunpack.c.h.b16 %v606
        %v1008 = vunpack.c.l.b16 %v607
        %v1009 = vunpack.c.h.b16 %v607
        %v1010 = vunpack.c.l.b16 %v608
        %v1011 = vunpack.c.h.b16 %v608
        %v1012 = vunpack.c.l.b16 %v609
        %v1013 = vunpack.c.h.b16 %v609
        %v1014 = vunpack.c.l.b16 %v610
        %v1015 = vunpack.c.h.b16 %v610
        %v1016 = vunpack.c.l.b16 %v611
        %v1017 = vunpack.c.h.b16 %v611
        %v1018 = vunpack.c.l.b16 %v612
        %v1019 = vunpack.c.h.b16 %v612
        %v1020 = vunpack.c.l.b16 %v613
        %v1021 = vunpack.c.h.b16 %v613
        %v1022 = vunpack.c.l.b16 %v614
        %v1023 = vunpack.c.h.b16 %v614
        %v1024 = vunpack.c.l.b16 %v615
        %v1025 = vunpack.c.h.b16 %v615
        %v1026 = vunpack.c.l.b16 %v616
        %v1027 = vunpack.c.h.b16 %v616
        %v1028 = vunpack.c.l.b16 %v617
        %v1029 = vunpack.c.h.b16 %v617
        %v1030 = vunpack.c.l.b16 %v618
        %v1031 = vunpack.c.h.b16 %v618
        %v1032 = vunpack.c.l.b16 %v619
        %v1033 = vunpack.c.h.b16 %v619
        %v1034 = vunpack.c.l.b16 %v620
        %v1035 = vunpack.c.h.b16 %v620
        %v1036 = vunpack.c.l.b16 %v621
        %v1037 = vunpack.c.h.b16 %v621
        %v1038 = vunpack.c.l.b16 %v622
        %v1039 = vunpack.c.h.b16 %v622
        %v1040 = vunpack.c.l.b16 %v623
        %v1041 = vunpack.c.h.b16 %v623
        %v1042 = vunpack.c.l.b16 %v624
        %v1043 = vunpack.c.h.b16 %v624
        %v1044 = vunpack.c.l.b16 %v625
        %v1045 = vunpack.c.h.b16 %v625
        %v1046 = vunpack.c.l.b16 %v626
        %v1047 = vunpack.c.h.b16 %v626
        %v1048 = vunpack.c.l.b16 %v627
        %v1049 = vunpack.c.h.b16 %v627
        %v1050 = vunpack.c.l.b16 %v628
        %v1051 = vunpack.c.h.b16 %v628
        %v1052 = vunpack.c.l.b16 %v629
        %v1053 = vunpack.c.h.b16 %v629
        %v1054 = vunpack.c.l.b16 %v630
        %v1055 = vunpack.c.h.b16 %v630
        %v1056 = vunpack.c.l.b16 %v631
        %v1057 = vunpack.c.h.b16 %v631
        %v1058 = vunpack.c.l.b16 %v632
        %v1059 = vunpack.c.h.b16 %v632
        %v1060 = vunpack.c.l.b16 %v633
        %v1061 = vunpack.c.h.b16 %v633
        %v1062 = vunpack.c.l.b16 %v634
        %v1063 = vunpack.c.h.b16 %v634
        %v1064 = vunpack.c.l.b16 %v635
        %v1065 = vunpack.c.h.b16 %v635
        %v1066 = vunpack.c.l.b16 %v636
        %v1067 = vunpack.c.h.b16 %v636
        %v1068 = vunpack.c.l.b16 %v637
        %v1069 = vunpack.c.h.b16 %v637
        %v1070 = vunpack.c.l.b16 %v638
        %v1071 = vunpack.c.h.b16 %v638
        %v1072 = vunpack.c.l.b16 %v639
        %v1073 = vunpack.c.h.b16 %v639
        %v1074 = vunpack.c.l.b16 %v640
        %v1075 = vunpack.c.h.b16 %v640
        %v1076 = vunpack.c.l.b16 %v641
        %v1077 = vunpack.c.h.b16 %v641
        %v1078 = vunpack.c.l.b16 %v642
        %v1079 = vunpack.c.h.b16 %v642
        %v1080 = vunpack.c.l.b16 %v643
        %v1081 = vunpack.c.h.b16 %v643
        %v1082 = vunpack.c.l.b16 %v644
        %v1083 = vunpack.c.h.b16 %v644
        %v1084 = vunpack.c.l.b16 %v645
        %v1085 = vunpack.c.h.b16 %v645
        %v1086 = vunpack.c.l.b16 %v646
        %v1087 = vunpack.c.h.b16 %v646
        %v1088 = vunpack.c.l.b16 %v647
        %v1089 = vunpack.c.h.b16 %v647
        %v1090 = vunpack.c.l.b16 %v648
        %v1091 = vunpack.c.h.b16 %v648
        %v1092 = vunpack.c.l.b16 %v649
        %v1093 = vunpack.c.h.b16 %v649
        %v1094 = vunpack.c.l.b16 %v650
        %v1095 = vunpack.c.h.b16 %v650
        %v1096 = vunpack.c.l.b16 %v651
        %v1097 = vunpack.c.h.b16 %v651
        %v1098 = vunpack.c.l.b16 %v652
        %v1099 = vunpack.c.h.b16 %v652
        %v1100 = vunpack.c.l.b16 %v653
        %v1101 = vunpack.c.h.b16 %v653
        %v1102 = vpack.c.b16 %v822, %v814
        %v1103 = vpack.c.b16 %v823, %v815
        %v1104 = vpack.c.b16 %v824, %v816
        %v1105 = vpack.c.b16 %v825, %v817
        %v1106 = vpack.c.b16 %v826, %v818
        %v1107 = vpack.c.b16 %v827, %v819
        %v1108 = vpack.c.b16 %v828, %v820
        %v1109 = vpack.c.b16 %v829, %v821
        %v1110 = vpack.c.b16 %v838, %v830
        %v1111 = vpack.c.b16 %v839, %v831
        %v1112 = vpack.c.b16 %v840, %v832
        %v1113 = vpack.c.b16 %v841, %v833
        %v1114 = vpack.c.b16 %v842, %v834
        %v1115 = vpack.c.b16 %v843, %v835
        %v1116 = vpack.c.b16 %v844, %v836
        %v1117 = vpack.c.b16 %v845, %v837
        %v1118 = vpack.c.b16 %v854, %v846
        %v1119 = vpack.c.b16 %v855, %v847
        %v1120 = vpack.c.b16 %v856, %v848
        %v1121 = vpack.c.b16 %v857, %v849
        %v1122 = vpack.c.b16 %v858, %v850
        %v1123 = vpack.c.b16 %v859, %v851
        %v1124 = vpack.c.b16 %v860, %v852
        %v1125 = vpack.c.b16 %v861, %v853
        %v1126 = vpack.c.b16 %v870, %v862
        %v1127 = vpack.c.b16 %v871, %v863
        %v1128 = vpack.c.b16 %v872, %v864
        %v1129 = vpack.c.b16 %v873, %v865
        %v1130 = vpack.c.b16 %v874, %v866
        %v1131 = vpack.c.b16 %v875, %v867
        %v1132 = vpack.c.b16 %v876, %v868
        %v1133 = vpack.c.b16 %v877, %v869
        %v1134 = vpack.c.b16 %v886, %v878
        %v1135 = vpack.c.b16 %v887, %v879
        %v1136 = vpack.c.b16 %v888, %v880
        %v1137 = vpack.c.b16 %v889, %v881
        %v1138 = vpack.c.b16 %v890, %v882
        %v1139 = vpack.c.b16 %v891, %v883
        %v1140 = vpack.c.b16 %v892, %v884
        %v1141 = vpack.c.b16 %v893, %v885
        %v1142 = vpack.c.b16 %v902, %v894
        %v1143 = vpack.c.b16 %v903, %v895
        %v1144 = vpack.c.b16 %v904, %v896
        %v1145 = vpack.c.b16 %v905, %v897
        %v1146 = vpack.c.b16 %v906, %v898
        %v1147 = vpack.c.b16 %v907, %v899
        %v1148 = vpack.c.b16 %v908, %v900
        %v1149 = vpack.c.b16 %v909, %v901
        %v1150 = vpack.c.b16 %v918, %v910
        %v1151 = vpack.c.b16 %v919, %v911
        %v1152 = vpack.c.b16 %v920, %v912
        %v1153 = vpack.c.b16 %v921, %v913
        %v1154 = vpack.c.b16 %v922, %v914
        %v1155 = vpack.c.b16 %v923, %v915
        %v1156 = vpack.c.b16 %v924, %v916
        %v1157 = vpack.c.b16 %v925, %v917
        %v1158 = vpack.c.b16 %v934, %v926
        %v1159 = vpack.c.b16 %v935, %v927
        %v1160 = vpack.c.b16 %v936, %v928
        %v1161 = vpack.c.b16 %v937, %v929
        %v1162 = vpack.c.b16 %v938, %v930
        %v1163 = vpack.c.b16 %v939, %v931
        %v1164 = vpack.c.b16 %v940, %v932
        %v1165 = vpack.c.b16 %v941, %v933
        %v1166 = vpack.c.b16 %v950, %v942
        %v1167 = vpack.c.b16 %v951, %v943
        %v1168 = vpack.c.b16 %v952, %v944
        %v1169 = vpack.c.b16 %v953, %v945
        %v1170 = vpack.c.b16 %v954, %v946
        %v1171 = vpack.c.b16 %v955, %v947
        %v1172 = vpack.c.b16 %v956, %v948
        %v1173 = vpack.c.b16 %v957, %v949
        %v1174 = vpack.c.b16 %v966, %v958
        %v1175 = vpack.c.b16 %v967, %v959
        %v1176 = vpack.c.b16 %v968, %v960
        %v1177 = vpack.c.b16 %v969, %v961
        %v1178 = vpack.c.b16 %v970, %v962
        %v1179 = vpack.c.b16 %v971, %v963
        %v1180 = vpack.c.b16 %v972, %v964
        %v1181 = vpack.c.b16 %v973, %v965
        %v1182 = vpack.c.b16 %v982, %v974
        %v1183 = vpack.c.b16 %v983, %v975
        %v1184 = vpack.c.b16 %v984, %v976
        %v1185 = vpack.c.b16 %v985, %v977
        %v1186 = vpack.c.b16 %v986, %v978
        %v1187 = vpack.c.b16 %v987, %v979
        %v1188 = vpack.c.b16 %v988, %v980
        %v1189 = vpack.c.b16 %v989, %v981
        %v1190 = vpack.c.b16 %v998, %v990
        %v1191 = vpack.c.b16 %v999, %v991
        %v1192 = vpack.c.b16 %v1000, %v992
        %v1193 = vpack.c.b16 %v1001, %v993
        %v1194 = vpack.c.b16 %v1002, %v994
        %v1195 = vpack.c.b16 %v1003, %v995
        %v1196 = vpack.c.b16 %v1004, %v996
        %v1197 = vpack.c.b16 %v1005, %v997
        %v1198 = vpack.c.b16 %v1014, %v1006
        %v1199 = vpack.c.b16 %v1015, %v1007
        %v1200 = vpack.c.b16 %v1016, %v1008
        %v1201 = vpack.c.b16 %v1017, %v1009
        %v1202 = vpack.c.b16 %v1018, %v1010
        %v1203 = vpack.c.b16 %v1019, %v1011
        %v1204 = vpack.c.b16 %v1020, %v1012
        %v1205 = vpack.c.b16 %v1021, %v1013
        %v1206 = vpack.c.b16 %v1030, %v1022
        %v1207 = vpack.c.b16 %v1031, %v1023
        %v1208 = vpack.c.b16 %v1032, %v1024
        %v1209 = vpack.c.b16 %v1033, %v1025
        %v1210 = vpack.c.b16 %v1034, %v1026
        %v1211 = vpack.c.b16 %v1035, %v1027
        %v1212 = vpack.c.b16 %v1036, %v1028
        %v1213 = vpack.c.b16 %v1037, %v1029
        %v1214 = vpack.c.b16 %v1046, %v1038
        %v1215 = vpack.c.b16 %v1047, %v1039
        %v1216 = vpack.c.b16 %v1048, %v1040
        %v1217 = vpack.c.b16 %v1049, %v1041
        %v1218 = vpack.c.b16 %v1050, %v1042
        %v1219 = vpack.c.b16 %v1051, %v1043
        %v1220 = vpack.c.b16 %v1052, %v1044
        %v1221 = vpack.c.b16 %v1053, %v1045
        %v1222 = vpack.c.b16 %v1062, %v1054
        %v1223 = vpack.c.b16 %v1063, %v1055
        %v1224 = vpack.c.b16 %v1064, %v1056
        %v1225 = vpack.c.b16 %v1065, %v1057
        %v1226 = vpack.c.b16 %v1066, %v1058
        %v1227 = vpack.c.b16 %v1067, %v1059
        %v1228 = vpack.c.b16 %v1068, %v1060
        %v1229 = vpack.c.b16 %v1069, %v1061
        %v1230 = vpack.c.b16 %v1078, %v1070
        %v1231 = vpack.c.b16 %v1079, %v1071
        %v1232 = vpack.c.b16 %v1080, %v1072
        %v1233 = vpack.c.b16 %v1081, %v1073
        %v1234 = vpack.c.b16 %v1082, %v1074
        %v1235 = vpack.c.b16 %v1083, %v1075
        %v1236 = vpack.c.b16 %v1084, %v1076
        %v1237 = vpack.c.b16 %v1085, %v1077
        %v1238 = vpack.c.b16 %v1094, %v1086
        %v1239 = vpack.c.b16 %v1095, %v1087
        %v1240 = vpack.c.b16 %v1096, %v1088
        %v1241 = vpack.c.b16 %v1097, %v1089
        %v1242 = vpack.c.b16 %v1098, %v1090
        %v1243 = vpack.c.b16 %v1099, %v1091
        %v1244 = vpack.c.b16 %v1100, %v1092
        %v1245 = vpack.c.b16 %v1101, %v1093
        %vm1390 = vcmask 261120
        %v1392 = vsel %vm1390, %v667, 0
        %1394 = vmatprep.subr.bf16.mxu0 %v1103
        %1395 = vmatpush1.bf16.msra.mxu0 %v1102
        %1396 = vmatprep.subr.bf16.mxu0 %v1111
        %1397 = vmatpush1.bf16.msra.mxu0 %v1110
        %1398 = vmatprep.subr.bf16.mxu0 %v1119
        %1399 = vmatpush1.bf16.msra.mxu0 %v1118
        %1400 = vmatprep.subr.bf16.mxu0 %v1127
        %1401 = vmatpush1.bf16.msra.mxu0 %v1126
        %1402 = vmatprep.subr.bf16.mxu0 %v1135
        %1403 = vmatpush1.bf16.msra.mxu0 %v1134
        %1404 = vmatprep.subr.bf16.mxu0 %v1143
        %1405 = vmatpush1.bf16.msra.mxu0 %v1142
        %1406 = vmatprep.subr.bf16.mxu0 %v1151
        %1407 = vmatpush1.bf16.msra.mxu0 %v1150
        %1408 = vmatprep.subr.bf16.mxu0 %v1159
        %1409 = vmatpush1.bf16.msra.mxu0 %v1158
        %1410 = vmatprep.subr.bf16.mxu0 %v1167
        %1411 = vmatpush1.bf16.msra.mxu0 %v1166
        %1412 = vmatprep.subr.bf16.mxu0 %v1175
        %1413 = vmatpush1.bf16.msra.mxu0 %v1174
        %1414 = vmatprep.subr.bf16.mxu0 %v1183
        %1415 = vmatpush1.bf16.msra.mxu0 %v1182
        %1416 = vmatprep.subr.bf16.mxu0 %v1191
        %1417 = vmatpush1.bf16.msra.mxu0 %v1190
        %1418 = vmatprep.subr.bf16.mxu0 %v1199
        %1419 = vmatpush1.bf16.msra.mxu0 %v1198
        %1420 = vmatprep.subr.bf16.mxu0 %v1207
        %1421 = vmatpush1.bf16.msra.mxu0 %v1206
        %1422 = vmatprep.subr.bf16.mxu0 %v1215
        %1423 = vmatpush1.bf16.msra.mxu0 %v1214
        %1424 = vmatprep.subr.bf16.mxu0 %v1223
        %1425 = vmatpush1.bf16.msra.mxu0 %v1222
        %1426 = vmatprep.mubr.bf16.mxu0 %v666
        %1427 = vmatmul.mubr.bf16.gmra.mrb[0].mxu0 %v665
        %v1428 = vpop.f32.mrb[0].mxu0
        %v1429 = vadd.f32 %v658, %v1428
        %v1430 = vpop.f32.mrb[0].mxu0
        %v1431 = vadd.f32 %v658, %v1430
        %v1432 = vpop.f32.mrb[0].mxu0
        %v1433 = vpop.f32.mrb[0].mxu0
        %1434 = vdwg.mxu0
        %1435 = vmatprep.subr.bf16.mxu0 %v1231
        %1436 = vmatpush1.bf16.msra.mxu0 %v1230
        %1437 = vmatprep.subr.bf16.mxu0 %v1239
        %1438 = vmatpush1.bf16.msra.mxu0 %v1238
        %1439 = vmatprep.subr.bf16.mxu0 0
        %1440 = vmatpush1.bf16.msra.mxu0 0
        %1441 = vmatprep.subr.bf16.mxu0 0
        %1442 = vmatpush1.bf16.msra.mxu0 0
        %1443 = vmatprep.subr.bf16.mxu0 0
        %1444 = vmatpush1.bf16.msra.mxu0 0
        %1445 = vmatprep.subr.bf16.mxu0 0
        %1446 = vmatpush1.bf16.msra.mxu0 0
        %1447 = vmatprep.subr.bf16.mxu0 0
        %1448 = vmatpush1.bf16.msra.mxu0 0
        %1449 = vmatprep.subr.bf16.mxu0 0
        %1450 = vmatpush1.bf16.msra.mxu0 0
        %1451 = vmatprep.subr.bf16.mxu0 0
        %1452 = vmatpush1.bf16.msra.mxu0 0
        %1453 = vmatprep.subr.bf16.mxu0 0
        %1454 = vmatpush1.bf16.msra.mxu0 0
        %1455 = vmatprep.subr.bf16.mxu0 0
        %1456 = vmatpush1.bf16.msra.mxu0 0
        %1457 = vmatprep.subr.bf16.mxu0 0
        %1458 = vmatpush1.bf16.msra.mxu0 0
        %1459 = vmatprep.subr.bf16.mxu0 0
        %1460 = vmatpush1.bf16.msra.mxu0 0
        %1461 = vmatprep.subr.bf16.mxu0 0
        %1462 = vmatpush1.bf16.msra.mxu0 0
        %1463 = vmatprep.subr.bf16.mxu0 0
        %1464 = vmatpush1.bf16.msra.mxu0 0
        %1465 = vmatprep.subr.bf16.mxu0 0
        %1466 = vmatpush1.bf16.msra.mxu0 0
        %1467 = vmatprep.mubr.bf16.mxu0 0
        %1468 = vmatmul.mubr.bf16.gmra.mrb[0].mxu0 %v1392
        %v1469 = vpop.f32.mrb[0].mxu0
        %v1470 = vadd.f32 %v1429, %v1469
        %v1471 = vpop.f32.mrb[0].mxu0
        %v1472 = vadd.f32 %v1431, %v1471
        %v1473 = vpop.f32.mrb[0].mxu0
        %v1474 = vpop.f32.mrb[0].mxu0
        %1475 = vdwg.mxu0
        %1476 = vmatprep.subr.bf16.mxu0 %v1105
        %1477 = vmatpush1.bf16.msra.mxu0 %v1104
        %1478 = vmatprep.subr.bf16.mxu0 %v1113
        %1479 = vmatpush1.bf16.msra.mxu0 %v1112
        %1480 = vmatprep.subr.bf16.mxu0 %v1121
        %1481 = vmatpush1.bf16.msra.mxu0 %v1120
        %1482 = vmatprep.subr.bf16.mxu0 %v1129
        %1483 = vmatpush1.bf16.msra.mxu0 %v1128
        %1484 = vmatprep.subr.bf16.mxu0 %v1137
        %1485 = vmatpush1.bf16.msra.mxu0 %v1136
        %1486 = vmatprep.subr.bf16.mxu0 %v1145
        %1487 = vmatpush1.bf16.msra.mxu0 %v1144
        %1488 = vmatprep.subr.bf16.mxu0 %v1153
        %1489 = vmatpush1.bf16.msra.mxu0 %v1152
        %1490 = vmatprep.subr.bf16.mxu0 %v1161
        %1491 = vmatpush1.bf16.msra.mxu0 %v1160
        %1492 = vmatprep.subr.bf16.mxu0 %v1169
        %1493 = vmatpush1.bf16.msra.mxu0 %v1168
        %1494 = vmatprep.subr.bf16.mxu0 %v1177
        %1495 = vmatpush1.bf16.msra.mxu0 %v1176
        %1496 = vmatprep.subr.bf16.mxu0 %v1185
        %1497 = vmatpush1.bf16.msra.mxu0 %v1184
        %1498 = vmatprep.subr.bf16.mxu0 %v1193
        %1499 = vmatpush1.bf16.msra.mxu0 %v1192
        %1500 = vmatprep.subr.bf16.mxu0 %v1201
        %1501 = vmatpush1.bf16.msra.mxu0 %v1200
        %1502 = vmatprep.subr.bf16.mxu0 %v1209
        %1503 = vmatpush1.bf16.msra.mxu0 %v1208
        %1504 = vmatprep.subr.bf16.mxu0 %v1217
        %1505 = vmatpush1.bf16.msra.mxu0 %v1216
        %1506 = vmatprep.subr.bf16.mxu0 %v1225
        %1507 = vmatpush1.bf16.msra.mxu0 %v1224
        %1508 = vmatprep.mubr.bf16.mxu0 %v666
        %1509 = vmatmul.mubr.bf16.gmra.mrb[0].mxu0 %v665
        %v1510 = vpop.f32.mrb[0].mxu0
        %v1511 = vadd.f32 %v658, %v1510
        %v1512 = vpop.f32.mrb[0].mxu0
        %v1513 = vadd.f32 %v658, %v1512
        %v1514 = vpop.f32.mrb[0].mxu0
        %v1515 = vpop.f32.mrb[0].mxu0
        %1516 = vdwg.mxu0
        %1517 = vmatprep.subr.bf16.mxu0 %v1233
        %1518 = vmatpush1.bf16.msra.mxu0 %v1232
        %1519 = vmatprep.subr.bf16.mxu0 %v1241
        %1520 = vmatpush1.bf16.msra.mxu0 %v1240
        %1521 = vmatprep.subr.bf16.mxu0 0
        %1522 = vmatpush1.bf16.msra.mxu0 0
        %1523 = vmatprep.subr.bf16.mxu0 0
        %1524 = vmatpush1.bf16.msra.mxu0 0
        %1525 = vmatprep.subr.bf16.mxu0 0
        %1526 = vmatpush1.bf16.msra.mxu0 0
        %1527 = vmatprep.subr.bf16.mxu0 0
        %1528 = vmatpush1.bf16.msra.mxu0 0
        %1529 = vmatprep.subr.bf16.mxu0 0
        %1530 = vmatpush1.bf16.msra.mxu0 0
        %1531 = vmatprep.subr.bf16.mxu0 0
        %1532 = vmatpush1.bf16.msra.mxu0 0
        %1533 = vmatprep.subr.bf16.mxu0 0
        %1534 = vmatpush1.bf16.msra.mxu0 0
        %1535 = vmatprep.subr.bf16.mxu0 0
        %1536 = vmatpush1.bf16.msra.mxu0 0
        %1537 = vmatprep.subr.bf16.mxu0 0
        %1538 = vmatpush1.bf16.msra.mxu0 0
        %1539 = vmatprep.subr.bf16.mxu0 0
        %1540 = vmatpush1.bf16.msra.mxu0 0
        %1541 = vmatprep.subr.bf16.mxu0 0
        %1542 = vmatpush1.bf16.msra.mxu0 0
        %1543 = vmatprep.subr.bf16.mxu0 0
        %1544 = vmatpush1.bf16.msra.mxu0 0
        %1545 = vmatprep.subr.bf16.mxu0 0
        %1546 = vmatpush1.bf16.msra.mxu0 0
        %1547 = vmatprep.subr.bf16.mxu0 0
        %1548 = vmatpush1.bf16.msra.mxu0 0
        %1549 = vmatprep.mubr.bf16.mxu0 0
        %1550 = vmatmul.mubr.bf16.gmra.mrb[0].mxu0 %v1392
        %v1551 = vpop.f32.mrb[0].mxu0
        %v1552 = vadd.f32 %v1511, %v1551
        %v1553 = vpop.f32.mrb[0].mxu0
        %v1554 = vadd.f32 %v1513, %v1553
        %v1555 = vpop.f32.mrb[0].mxu0
        %v1556 = vpop.f32.mrb[0].mxu0
        %1557 = vdwg.mxu0
        %1558 = vmatprep.subr.bf16.mxu0 %v1107
        %1559 = vmatpush1.bf16.msra.mxu0 %v1106
        %1560 = vmatprep.subr.bf16.mxu0 %v1115
        %1561 = vmatpush1.bf16.msra.mxu0 %v1114
        %1562 = vmatprep.subr.bf16.mxu0 %v1123
        %1563 = vmatpush1.bf16.msra.mxu0 %v1122
        %1564 = vmatprep.subr.bf16.mxu0 %v1131
        %1565 = vmatpush1.bf16.msra.mxu0 %v1130
        %1566 = vmatprep.subr.bf16.mxu0 %v1139
        %1567 = vmatpush1.bf16.msra.mxu0 %v1138
        %1568 = vmatprep.subr.bf16.mxu0 %v1147
        %1569 = vmatpush1.bf16.msra.mxu0 %v1146
        %1570 = vmatprep.subr.bf16.mxu0 %v1155
        %1571 = vmatpush1.bf16.msra.mxu0 %v1154
        %1572 = vmatprep.subr.bf16.mxu0 %v1163
        %1573 = vmatpush1.bf16.msra.mxu0 %v1162
        %1574 = vmatprep.subr.bf16.mxu0 %v1171
        %1575 = vmatpush1.bf16.msra.mxu0 %v1170
        %1576 = vmatprep.subr.bf16.mxu0 %v1179
        %1577 = vmatpush1.bf16.msra.mxu0 %v1178
        %1578 = vmatprep.subr.bf16.mxu0 %v1187
        %1579 = vmatpush1.bf16.msra.mxu0 %v1186
        %1580 = vmatprep.subr.bf16.mxu0 %v1195
        %1581 = vmatpush1.bf16.msra.mxu0 %v1194
        %1582 = vmatprep.subr.bf16.mxu0 %v1203
        %1583 = vmatpush1.bf16.msra.mxu0 %v1202
        %1584 = vmatprep.subr.bf16.mxu0 %v1211
        %1585 = vmatpush1.bf16.msra.mxu0 %v1210
        %1586 = vmatprep.subr.bf16.mxu0 %v1219
        %1587 = vmatpush1.bf16.msra.mxu0 %v1218
        %1588 = vmatprep.subr.bf16.mxu0 %v1227
        %1589 = vmatpush1.bf16.msra.mxu0 %v1226
        %1590 = vmatprep.mubr.bf16.mxu0 %v666
        %1591 = vmatmul.mubr.bf16.gmra.mrb[0].mxu0 %v665
        %v1592 = vpop.f32.mrb[0].mxu0
        %v1593 = vadd.f32 %v658, %v1592
        %v1594 = vpop.f32.mrb[0].mxu0
        %v1595 = vadd.f32 %v658, %v1594
        %v1596 = vpop.f32.mrb[0].mxu0
        %v1597 = vpop.f32.mrb[0].mxu0
        %1598 = vdwg.mxu0
        %1599 = vmatprep.subr.bf16.mxu0 %v1235
        %1600 = vmatpush1.bf16.msra.mxu0 %v1234
        %1601 = vmatprep.subr.bf16.mxu0 %v1243
        %1602 = vmatpush1.bf16.msra.mxu0 %v1242
        %1603 = vmatprep.subr.bf16.mxu0 0
        %1604 = vmatpush1.bf16.msra.mxu0 0
        %1605 = vmatprep.subr.bf16.mxu0 0
        %1606 = vmatpush1.bf16.msra.mxu0 0
        %1607 = vmatprep.subr.bf16.mxu0 0
        %1608 = vmatpush1.bf16.msra.mxu0 0
        %1609 = vmatprep.subr.bf16.mxu0 0
        %1610 = vmatpush1.bf16.msra.mxu0 0
        %1611 = vmatprep.subr.bf16.mxu0 0
        %1612 = vmatpush1.bf16.msra.mxu0 0
        %1613 = vmatprep.subr.bf16.mxu0 0
        %1614 = vmatpush1.bf16.msra.mxu0 0
        %1615 = vmatprep.subr.bf16.mxu0 0
        %1616 = vmatpush1.bf16.msra.mxu0 0
        %1617 = vmatprep.subr.bf16.mxu0 0
        %1618 = vmatpush1.bf16.msra.mxu0 0
        %1619 = vmatprep.subr.bf16.mxu0 0
        %1620 = vmatpush1.bf16.msra.mxu0 0
        %1621 = vmatprep.subr.bf16.mxu0 0
        %1622 = vmatpush1.bf16.msra.mxu0 0
        %1623 = vmatprep.subr.bf16.mxu0 0
        %1624 = vmatpush1.bf16.msra.mxu0 0
        %1625 = vmatprep.subr.bf16.mxu0 0
        %1626 = vmatpush1.bf16.msra.mxu0 0
        %1627 = vmatprep.subr.bf16.mxu0 0
        %1628 = vmatpush1.bf16.msra.mxu0 0
        %1629 = vmatprep.subr.bf16.mxu0 0
        %1630 = vmatpush1.bf16.msra.mxu0 0
        %1631 = vmatprep.mubr.bf16.mxu0 0
        %1632 = vmatmul.mubr.bf16.gmra.mrb[0].mxu0 %v1392
        %v1633 = vpop.f32.mrb[0].mxu0
        %v1634 = vadd.f32 %v1593, %v1633
        %v1635 = vpop.f32.mrb[0].mxu0
        %v1636 = vadd.f32 %v1595, %v1635
        %v1637 = vpop.f32.mrb[0].mxu0
        %v1638 = vpop.f32.mrb[0].mxu0
        %1639 = vdwg.mxu0
        %1640 = vmatprep.subr.bf16.mxu0 %v1109
        %1641 = vmatpush1.bf16.msra.mxu0 %v1108
        %1642 = vmatprep.subr.bf16.mxu0 %v1117
        %1643 = vmatpush1.bf16.msra.mxu0 %v1116
        %1644 = vmatprep.subr.bf16.mxu0 %v1125
        %1645 = vmatpush1.bf16.msra.mxu0 %v1124
        %1646 = vmatprep.subr.bf16.mxu0 %v1133
        %1647 = vmatpush1.bf16.msra.mxu0 %v1132
        %1648 = vmatprep.subr.bf16.mxu0 %v1141
        %1649 = vmatpush1.bf16.msra.mxu0 %v1140
        %1650 = vmatprep.subr.bf16.mxu0 %v1149
        %1651 = vmatpush1.bf16.msra.mxu0 %v1148
        %1652 = vmatprep.subr.bf16.mxu0 %v1157
        %1653 = vmatpush1.bf16.msra.mxu0 %v1156
        %1654 = vmatprep.subr.bf16.mxu0 %v1165
        %1655 = vmatpush1.bf16.msra.mxu0 %v1164
        %1656 = vmatprep.subr.bf16.mxu0 %v1173
        %1657 = vmatpush1.bf16.msra.mxu0 %v1172
        %1658 = vmatprep.subr.bf16.mxu0 %v1181
        %1659 = vmatpush1.bf16.msra.mxu0 %v1180
        %1660 = vmatprep.subr.bf16.mxu0 %v1189
        %1661 = vmatpush1.bf16.msra.mxu0 %v1188
        %1662 = vmatprep.subr.bf16.mxu0 %v1197
        %1663 = vmatpush1.bf16.msra.mxu0 %v1196
        %1664 = vmatprep.subr.bf16.mxu0 %v1205
        %1665 = vmatpush1.bf16.msra.mxu0 %v1204
        %1666 = vmatprep.subr.bf16.mxu0 %v1213
        %1667 = vmatpush1.bf16.msra.mxu0 %v1212
        %1668 = vmatprep.subr.bf16.mxu0 %v1221
        %1669 = vmatpush1.bf16.msra.mxu0 %v1220
        %1670 = vmatprep.subr.bf16.mxu0 %v1229
        %1671 = vmatpush1.bf16.msra.mxu0 %v1228
        %1672 = vmatprep.mubr.bf16.mxu0 %v666
        %1673 = vmatmul.mubr.bf16.gmra.mrb[0].mxu0 %v665
        %v1674 = vpop.f32.mrb[0].mxu0
        %v1675 = vadd.f32 %v658, %v1674
        %v1676 = vpop.f32.mrb[0].mxu0
        %v1677 = vadd.f32 %v658, %v1676
        %v1678 = vpop.f32.mrb[0].mxu0
        %v1679 = vpop.f32.mrb[0].mxu0
        %1680 = vdwg.mxu0
        %1681 = vmatprep.subr.bf16.mxu0 %v1237
        %1682 = vmatpush1.bf16.msra.mxu0 %v1236
        %1683 = vmatprep.subr.bf16.mxu0 %v1245
        %1684 = vmatpush1.bf16.msra.mxu0 %v1244
        %1685 = vmatprep.subr.bf16.mxu0 0
        %1686 = vmatpush1.bf16.msra.mxu0 0
        %1687 = vmatprep.subr.bf16.mxu0 0
        %1688 = vmatpush1.bf16.msra.mxu0 0
        %1689 = vmatprep.subr.bf16.mxu0 0
        %1690 = vmatpush1.bf16.msra.mxu0 0
        %1691 = vmatprep.subr.bf16.mxu0 0
        %1692 = vmatpush1.bf16.msra.mxu0 0
        %1693 = vmatprep.subr.bf16.mxu0 0
        %1694 = vmatpush1.bf16.msra.mxu0 0
        %1695 = vmatprep.subr.bf16.mxu0 0
        %1696 = vmatpush1.bf16.msra.mxu0 0
        %1697 = vmatprep.subr.bf16.mxu0 0
        %1698 = vmatpush1.bf16.msra.mxu0 0
        %1699 = vmatprep.subr.bf16.mxu0 0
        %1700 = vmatpush1.bf16.msra.mxu0 0
        %1701 = vmatprep.subr.bf16.mxu0 0
        %1702 = vmatpush1.bf16.msra.mxu0 0
        %1703 = vmatprep.subr.bf16.mxu0 0
        %1704 = vmatpush1.bf16.msra.mxu0 0
        %1705 = vmatprep.subr.bf16.mxu0 0
        %1706 = vmatpush1.bf16.msra.mxu0 0
        %1707 = vmatprep.subr.bf16.mxu0 0
        %1708 = vmatpush1.bf16.msra.mxu0 0
        %1709 = vmatprep.subr.bf16.mxu0 0
        %1710 = vmatpush1.bf16.msra.mxu0 0
        %1711 = vmatprep.subr.bf16.mxu0 0
        %1712 = vmatpush1.bf16.msra.mxu0 0
        %1713 = vmatprep.mubr.bf16.mxu0 0
        %1714 = vmatmul.mubr.bf16.gmra.mrb[0].mxu0 %v1392
        %v1715 = vpop.f32.mrb[0].mxu0
        %v1716 = vadd.f32 %v1675, %v1715
        %v1717 = vpop.f32.mrb[0].mxu0
        %v1718 = vadd.f32 %v1677, %v1717
        %v1719 = vpop.f32.mrb[0].mxu0
        %v1720 = vpop.f32.mrb[0].mxu0
        %1721 = vdwg.mxu0
        %s1722 = sld [smem:[#allocation2]]
        %vm1723 = vcmp.ge.f32.partialorder %v1470, 0.0
        %vm1724 = vcmp.ge.f32.partialorder %v1472, 0.0
        %vm1725 = vcmp.ge.f32.partialorder %v1552, 0.0
        %vm1726 = vcmp.ge.f32.partialorder %v1554, 0.0
        %vm1727 = vcmp.ge.f32.partialorder %v1634, 0.0
        %vm1728 = vcmp.ge.f32.partialorder %v1636, 0.0
        %vm1729 = vcmp.ge.f32.partialorder %v1716, 0.0
        %vm1730 = vcmp.ge.f32.partialorder %v1718, 0.0
        %v1731 = vstv %s1722
        %v1732 = vmul.f32 %v1731, %v1470
        %v1733 = vmul.f32 %v1731, %v1472
        %v1734 = vmul.f32 %v1731, %v1552
        %v1735 = vmul.f32 %v1731, %v1554
        %v1736 = vmul.f32 %v1731, %v1634
        %v1737 = vmul.f32 %v1731, %v1636
        %v1738 = vmul.f32 %v1731, %v1716
        %v1739 = vmul.f32 %v1731, %v1718
        %v1740 = vsel %vm1723, %v1470, %v1732
        %v1741 = vsel %vm1724, %v1472, %v1733
        %v1742 = vsel %vm1725, %v1552, %v1734
        %v1743 = vsel %vm1726, %v1554, %v1735
        %v1744 = vsel %vm1727, %v1634, %v1736
        %v1745 = vsel %vm1728, %v1636, %v1737
        %v1746 = vsel %vm1729, %v1716, %v1738
        %v1747 = vsel %vm1730, %v1718, %v1739
        %1748 = vst [vmem:[%s505] sm:$0xff] %v1740
        %1749 = vst [vmem:[%s505 + $0x8] sm:$0xff] %v1741
        %1750 = vst [vmem:[%s505 + $0x10] sm:$0xff] %v1742
        %1751 = vst [vmem:[%s505 + $0x18] sm:$0xff] %v1743
        %1752 = vst [vmem:[%s505 + $0x20] sm:$0xff] %v1744
        %1753 = vst [vmem:[%s505 + $0x28] sm:$0xff] %v1745
        %1754 = vst [vmem:[%s505 + $0x30] sm:$0xff] %v1746
        %1755 = vst [vmem:[%s505 + $0x38] sm:$0xff] %v1747
        %s1756 = smul.u32 8, %s16
        %p1757 = scmp.lt.s32.totalorder %s1756, 15
        %s1758 = scalar_select %p1757, %s1756, 15
        %s1759 = smul.addr %s1758, 8
        %s1760 = scalar_lea.vmem %s4, %s1759
        // Predicated region
        $region60: #{_lambda_.17} parent=54 // pred_check
          %p1761 = pneg %p123
        $region61: #{_lambda_.17} parent=54 // pred_check_branch
          %1763 = sbr.rel (%p1761) target = $region63
        $region62: #{_lambda_.17} parent=54 // pred_region
          %s1764 = smul.u32 8, %s16
        $region63: #{_lambda_.17} parent=54 // pred_fallthru
          _
      $region55: #{_lambda_.17} parent=5 // pred_fallthru
        _
      %p1765 = scmp.le.s32.totalorder 2, %s11
      // Predicated region
      $region64: #{_lambda_.17} parent=5 // pred_check
        %p1766 = pneg %p1765
      $region65: #{_lambda_.17} parent=5 // pred_check_branch
        %1768 = sbr.rel (%p1766) target = $region67
      $region66: #{_lambda_.17} parent=5 // pred_region
        %s1769 = ssub.s32 %s11, 2
        // Predicated region
        $region68: #{_lambda_.17} parent=66 // pred_check
          %p1770 = pneg %p129
        $region69: #{_lambda_.17} parent=66 // pred_check_branch
          %1772 = sbr.rel (%p1770) target = $region71
        $region70: #{_lambda_.17} parent=66 // pred_region
          %s1773 = smul.u32 8, %s17
          %p1774 = scmp.lt.s32.totalorder %s1773, 15
          %s1775 = scalar_select %p1774, %s1773, 15
          %s1776 = smul.addr %s1775, 8
          %s1777 = scalar_lea.vmem %s4, %s1776
        $region71: #{_lambda_.17} parent=66 // pred_fallthru
          _
      $region67: #{_lambda_.17} parent=5 // pred_fallthru
        _
    $region6: #{_lambda_.17} parent=1 // loop_footer
      %s15 = sadd.s32 1, %s11
    $region7: #{_lambda_.17} parent=1 // loop_footer_branch
      %10 = sbr.rel target = $region3
    $region8: #{_lambda_.17} parent=1 // loop_exit
      _

// kernel: _lambda_.19
$region0: #{_lambda_.19}
  #allocation0 [shape = 'u32[]', space=smem, size = 0x4, offset = 0x4, fixed_abs, tag = 'smem constant byte address 0x4 - core index']
  #allocation1 [shape = 'u32[144,128]{1,0:T(1,128)}', space=vmem, size = 0x12000, scoped, tag = 'internal scratch']
  %s0 = inlined_call_operand.vmem [shape: bf16[8,72], index: 0, kind: input, shape index: {}]
  %s1 = inlined_call_operand.vmem [shape: bf16[72,8192], index: 1, kind: input, shape index: {}]
  %s2 = inlined_call_operand.vmem [shape: f32[8,1], index: 2, kind: input, shape index: {}]
  %s3 = inlined_call_operand.vmem [shape: f32[8,8192], index: 3, kind: output, shape index: {}]
  %s4 = sld [smem:[#allocation0]]
  $region68: #{_lambda_.19} parent=0
    _
  %s6 = ssub.s32 1, %s4
  %s7 = scalar_select 0, %s6, %s4
  $region1: #{_lambda_.19} parent=0
    #allocation2 [shape = 'u8[294912]{0}', space=vmem, size = 0x48000, scoped, tag = 'input window, operand 1']
    loop: start=0, step=1, limit=10
    $region2: #{_lambda_.19} parent=1 // loop_pre_header
      _
    $region3: #{_lambda_.19} parent=1 // loop_header
      %s9 = sphi 0, %s13
      %p10 = scmp.ge.s32.totalorder %s9, 10
      %s17 = sphi 0, %s17
      %s19 = sphi 0, %s17
      %s20 = sphi 0, %s19
      %s34 = sphi 0, %s20
      %s40 = sphi 0, %s42
      %s43 = sphi 0, %s40
      %s44 = sphi 0, %s43
      %s60 = sphi 0, %s44
      %s64 = sphi 0, %s64
      %s66 = sphi 0, %s64
      %s67 = sphi 0, %s66
      %s81 = sphi 0, %s67
      %s87 = sphi 0, %s89
      %s90 = sphi 0, %s87
      %s91 = sphi 0, %s90
      %s107 = sphi 0, %s91
    $region4: #{_lambda_.19} parent=1 // loop_header_branch
      %12 = sbr.rel (%p10) target = $region8
    $region5: #{_lambda_.19} parent=1 // loop_body
      %s14 = ssub.s32 %s9, 1
      %s15 = ssub.s32 %s9, 2
      %s16 = sadd.s32 %s9, 1
      %s18 = sadd.s32 %s17, 1
      %p21 = scmp.eq.s32.totalorder %s9, 7
      %p22 = scmp.ne.s32.totalorder %s17, %s19
      %p23 = scmp.eq.s32.totalorder %s9, 0
      %p24 = por %p22, %p23
      %p25 = scmp.ne.s32.totalorder %s17, %s19
      %p26 = scmp.eq.s32.totalorder %s14, 7
      %p27 = por %p25, %p26
      %p28 = scmp.ne.s32.totalorder %s19, %s20
      %p29 = scmp.eq.s32.totalorder %s14, 0
      %p30 = por %p28, %p29
      %p31 = scmp.ne.s32.totalorder %s19, %s20
      %p32 = scmp.eq.s32.totalorder %s15, 7
      %p33 = por %p31, %p32
      %p35 = scmp.ne.s32.totalorder %s20, %s34
      %p36 = scmp.eq.s32.totalorder %s15, 0
      %p37 = por %p35, %p36
      %s38 = ssub.s32 %s9, %s16
      %p39 = scmp.eq.s32.totalorder %s38, 0
      %s41 = sadd.s32 %s40, 1
      %s42 = scalar_select %p39, %s40, %s41
      %p45 = pneg %p39
      %p46 = scmp.eq.s32.totalorder %s9, 7
      %p47 = por %p45, %p46
      %p48 = scmp.ne.s32.totalorder %s40, %s43
      %p49 = scmp.eq.s32.totalorder %s9, 0
      %p50 = por %p48, %p49
      %p51 = scmp.ne.s32.totalorder %s40, %s43
      %p52 = scmp.eq.s32.totalorder %s14, 7
      %p53 = por %p51, %p52
      %p54 = scmp.ne.s32.totalorder %s43, %s44
      %p55 = scmp.eq.s32.totalorder %s14, 0
      %p56 = por %p54, %p55
      %p57 = scmp.ne.s32.totalorder %s43, %s44
      %p58 = scmp.eq.s32.totalorder %s15, 7
      %p59 = por %p57, %p58
      %p61 = scmp.ne.s32.totalorder %s44, %s60
      %p62 = scmp.eq.s32.totalorder %s15, 0
      %p63 = por %p61, %p62
      %s65 = sadd.s32 %s64, 1
      %p68 = scmp.eq.s32.totalorder %s9, 7
      %p69 = scmp.ne.s32.totalorder %s64, %s66
      %p70 = scmp.eq.s32.totalorder %s9, 0
      %p71 = por %p69, %p70
      %p72 = scmp.ne.s32.totalorder %s64, %s66
      %p73 = scmp.eq.s32.totalorder %s14, 7
      %p74 = por %p72, %p73
      %p75 = scmp.ne.s32.totalorder %s66, %s67
      %p76 = scmp.eq.s32.totalorder %s14, 0
      %p77 = por %p75, %p76
      %p78 = scmp.ne.s32.totalorder %s66, %s67
      %p79 = scmp.eq.s32.totalorder %s15, 7
      %p80 = por %p78, %p79
      %p82 = scmp.ne.s32.totalorder %s67, %s81
      %p83 = scmp.eq.s32.totalorder %s15, 0
      %p84 = por %p82, %p83
      %s85 = ssub.s32 %s9, %s16
      %p86 = scmp.eq.s32.totalorder %s85, 0
      %s88 = sadd.s32 %s87, 1
      %s89 = scalar_select %p86, %s87, %s88
      %p92 = pneg %p86
      %p93 = scmp.eq.s32.totalorder %s9, 7
      %p94 = por %p92, %p93
      %p95 = scmp.ne.s32.totalorder %s87, %s90
      %p96 = scmp.eq.s32.totalorder %s9, 0
      %p97 = por %p95, %p96
      %p98 = scmp.ne.s32.totalorder %s87, %s90
      %p99 = scmp.eq.s32.totalorder %s14, 7
      %p100 = por %p98, %p99
      %p101 = scmp.ne.s32.totalorder %s90, %s91
      %p102 = scmp.eq.s32.totalorder %s14, 0
      %p103 = por %p101, %p102
      %p104 = scmp.ne.s32.totalorder %s90, %s91
      %p105 = scmp.eq.s32.totalorder %s15, 7
      %p106 = por %p104, %p105
      %p108 = scmp.ne.s32.totalorder %s91, %s107
      %p109 = scmp.eq.s32.totalorder %s15, 0
      %p110 = por %p108, %p109
      %p111 = scmp.le.s32.totalorder 1, %s9
      %p112 = scmp.lt.s32.totalorder %s9, 9
      %p113 = pnand %p111, %p112
      %p114 = pneg %p113
      // Predicated region
      $region9: #{_lambda_.19} parent=5 // pred_check
        _
      $region10: #{_lambda_.19} parent=5 // pred_check_branch
        %116 = sbr.rel (%p113) target = $region12
      $region11: #{_lambda_.19} parent=5 // pred_region
        %s117 = ssub.s32 %s9, 1
        // Predicated region
        $region13: #{_lambda_.19} parent=11 // pred_check
          %p118 = pneg %p30
        $region14: #{_lambda_.19} parent=11 // pred_check_branch
          %120 = sbr.rel (%p118) target = $region16
        $region15: #{_lambda_.19} parent=11 // pred_region
          _
        $region16: #{_lambda_.19} parent=11 // pred_fallthru
          _
        // Predicated region
        $region17: #{_lambda_.19} parent=11 // pred_check
          %p121 = pneg %p77
        $region18: #{_lambda_.19} parent=11 // pred_check_branch
          %123 = sbr.rel (%p121) target = $region20
        $region19: #{_lambda_.19} parent=11 // pred_region
          _
        $region20: #{_lambda_.19} parent=11 // pred_fallthru
          _
      $region12: #{_lambda_.19} parent=5 // pred_fallthru
        _
      %p124 = scmp.lt.s32.totalorder %s9, 8
      // Predicated region
      $region21: #{_lambda_.19} parent=5 // pred_check
        %p125 = pneg %p124
      $region22: #{_lambda_.19} parent=5 // pred_check_branch
        %127 = sbr.rel (%p125) target = $region24
      $region23: #{_lambda_.19} parent=5 // pred_region
        // Predicated region
        $region25: #{_lambda_.19} parent=23 // pred_check
          %p128 = pneg %p50
        $region26: #{_lambda_.19} parent=23 // pred_check_branch
          %130 = sbr.rel (%p128) target = $region28
        $region27: #{_lambda_.19} parent=23 // pred_region
          %s131 = sand.u32 %s40, 1
          %s132 = sand.u32 %s40, 1
          %s133 = smul.addr %s132, 288
          %s134 = scalar_lea.vmem [#allocation2], %s133
          %s135 = smul.u32 8, %s9
          %s136 = smul.addr %s135, 4
          %s137 = scalar_lea.vmem %s1, %s136
          // Predicated region
          $region29: #{_lambda_.19} parent=27 // pred_check
            _
          $region30: #{_lambda_.19} parent=27 // pred_check_branch
            %139 = sbr.rel (0) target = $region32
          $region31: #{_lambda_.19} parent=27 // pred_region
            // Predicated region
            $region33: #{_lambda_.19} parent=31 // pred_check
              _
            $region34: #{_lambda_.19} parent=31 // pred_check_branch
              %141 = sbr.rel (0) target = $region36
            $region35: #{_lambda_.19} parent=31 // pred_region
              loop: start=0, step=1, limit=1
              $region37: #{_lambda_.19} parent=35 // loop_pre_header
                _
              $region38: #{_lambda_.19} parent=35 // loop_header
                %s143 = sphi 0, %s147
                %p144 = scmp.ge.s32.totalorder %s143, 1
                %s148 = sphi %s137, %s137
                %s149 = sphi %s134, %s134
              $region39: #{_lambda_.19} parent=35 // loop_header_branch
                %146 = sbr.rel (%p144) target = $region43
              $region40: #{_lambda_.19} parent=35 // loop_body
                %v150 = vld [vmem:[%s148] sm:$0xff]
                %151 = vst [vmem:[%s149] sm:$0xff] %v150
                %v152 = vld [vmem:[%s148 + $0x8] sm:$0xff]
                %153 = vst [vmem:[%s149 + $0x8] sm:$0xff] %v152
                %v154 = vld [vmem:[%s148 + $0x10] sm:$0xff]
                %155 = vst [vmem:[%s149 + $0x10] sm:$0xff] %v154
                %v156 = vld [vmem:[%s148 + $0x18] sm:$0xff]
                %157 = vst [vmem:[%s149 + $0x18] sm:$0xff] %v156
                %v158 = vld [vmem:[%s148 + $0x100] sm:$0xff]
                %159 = vst [vmem:[%s149 + $0x20] sm:$0xff] %v158
                %v160 = vld [vmem:[%s148 + $0x108] sm:$0xff]
                %161 = vst [vmem:[%s149 + $0x28] sm:$0xff] %v160
                %v162 = vld [vmem:[%s148 + $0x110] sm:$0xff]
                %163 = vst [vmem:[%s149 + $0x30] sm:$0xff] %v162
                %v164 = vld [vmem:[%s148 + $0x118] sm:$0xff]
                %165 = vst [vmem:[%s149 + $0x38] sm:$0xff] %v164
                %v166 = vld [vmem:[%s148 + $0x200] sm:$0xff]
                %167 = vst [vmem:[%s149 + $0x40] sm:$0xff] %v166
                %v168 = vld [vmem:[%s148 + $0x208] sm:$0xff]
                %169 = vst [vmem:[%s149 + $0x48] sm:$0xff] %v168
                %v170 = vld [vmem:[%s148 + $0x210] sm:$0xff]
                %171 = vst [vmem:[%s149 + $0x50] sm:$0xff] %v170
                %v172 = vld [vmem:[%s148 + $0x218] sm:$0xff]
                %173 = vst [vmem:[%s149 + $0x58] sm:$0xff] %v172
                %v174 = vld [vmem:[%s148 + $0x300] sm:$0xff]
                %175 = vst [vmem:[%s149 + $0x60] sm:$0xff] %v174
                %v176 = vld [vmem:[%s148 + $0x308] sm:$0xff]
                %177 = vst [vmem:[%s149 + $0x68] sm:$0xff] %v176
                %v178 = vld [vmem:[%s148 + $0x310] sm:$0xff]
                %179 = vst [vmem:[%s149 + $0x70] sm:$0xff] %v178
                %v180 = vld [vmem:[%s148 + $0x318] sm:$0xff]
                %181 = vst [vmem:[%s149 + $0x78] sm:$0xff] %v180
                %v182 = vld [vmem:[%s148 + $0x400] sm:$0xff]
                %183 = vst [vmem:[%s149 + $0x80] sm:$0xff] %v182
                %v184 = vld [vmem:[%s148 + $0x408] sm:$0xff]
                %185 = vst [vmem:[%s149 + $0x88] sm:$0xff] %v184
                %v186 = vld [vmem:[%s148 + $0x410] sm:$0xff]
                %187 = vst [vmem:[%s149 + $0x90] sm:$0xff] %v186
                %v188 = vld [vmem:[%s148 + $0x418] sm:$0xff]
                %189 = vst [vmem:[%s149 + $0x98] sm:$0xff] %v188
                %v190 = vld [vmem:[%s148 + $0x500] sm:$0xff]
                %191 = vst [vmem:[%s149 + $0xa0] sm:$0xff] %v190
                %v192 = vld [vmem:[%s148 + $0x508] sm:$0xff]
                %193 = vst [vmem:[%s149 + $0xa8] sm:$0xff] %v192
                %v194 = vld [vmem:[%s148 + $0x510] sm:$0xff]
                %195 = vst [vmem:[%s149 + $0xb0] sm:$0xff] %v194
                %v196 = vld [vmem:[%s148 + $0x518] sm:$0xff]
                %197 = vst [vmem:[%s149 + $0xb8] sm:$0xff] %v196
                %v198 = vld [vmem:[%s148 + $0x600] sm:$0xff]
                %199 = vst [vmem:[%s149 + $0xc0] sm:$0xff] %v198
                %v200 = vld [vmem:[%s148 + $0x608] sm:$0xff]
                %201 = vst [vmem:[%s149 + $0xc8] sm:$0xff] %v200
                %v202 = vld [vmem:[%s148 + $0x610] sm:$0xff]
                %203 = vst [vmem:[%s149 + $0xd0] sm:$0xff] %v202
                %v204 = vld [vmem:[%s148 + $0x618] sm:$0xff]
                %205 = vst [vmem:[%s149 + $0xd8] sm:$0xff] %v204
                %v206 = vld [vmem:[%s148 + $0x700] sm:$0xff]
                %207 = vst [vmem:[%s149 + $0xe0] sm:$0xff] %v206
                %v208 = vld [vmem:[%s148 + $0x708] sm:$0xff]
                %209 = vst [vmem:[%s149 + $0xe8] sm:$0xff] %v208
                %v210 = vld [vmem:[%s148 + $0x710] sm:$0xff]
                %211 = vst [vmem:[%s149 + $0xf0] sm:$0xff] %v210
                %v212 = vld [vmem:[%s148 + $0x718] sm:$0xff]
                %213 = vst [vmem:[%s149 + $0xf8] sm:$0xff] %v212
                %v214 = vld [vmem:[%s148 + $0x800] sm:$0xff]
                %215 = vst [vmem:[%s149 + $0x100] sm:$0xff] %v214
                %v216 = vld [vmem:[%s148 + $0x808] sm:$0xff]
                %217 = vst [vmem:[%s149 + $0x108] sm:$0xff] %v216
                %v218 = vld [vmem:[%s148 + $0x810] sm:$0xff]
                %219 = vst [vmem:[%s149 + $0x110] sm:$0xff] %v218
                %v220 = vld [vmem:[%s148 + $0x818] sm:$0xff]
                %221 = vst [vmem:[%s149 + $0x118] sm:$0xff] %v220
              $region41: #{_lambda_.19} parent=35 // loop_footer
                %s147 = sadd.s32 1, %s143
              $region42: #{_lambda_.19} parent=35 // loop_footer_branch
                %142 = sbr.rel target = $region38
              $region43: #{_lambda_.19} parent=35 // loop_exit
                _
            $region36: #{_lambda_.19} parent=31 // pred_fallthru
              _
            // Predicated region
            $region44: #{_lambda_.19} parent=31 // pred_check
              _
            $region45: #{_lambda_.19} parent=31 // pred_check_branch
              %223 = sbr.rel target = $region47
            $region46: #{_lambda_.19} parent=31 // pred_region
              _
            $region47: #{_lambda_.19} parent=31 // pred_fallthru
              _
          $region32: #{_lambda_.19} parent=27 // pred_fallthru
            _
          %224 = vnop
        $region28: #{_lambda_.19} parent=23 // pred_fallthru
          _
      $region24: #{_lambda_.19} parent=5 // pred_fallthru
        _
      %p225 = scmp.le.s32.totalorder 1, %s9
      %p226 = scmp.lt.s32.totalorder %s9, 9
      %p227 = pnand %p225, %p226
      %p228 = pneg %p227
      // Predicated region
      $region48: #{_lambda_.19} parent=5 // pred_check
        _
      $region49: #{_lambda_.19} parent=5 // pred_check_branch
        %230 = sbr.rel (%p227) target = $region51
      $region50: #{_lambda_.19} parent=5 // pred_region
        %s231 = ssub.s32 %s9, 1
        %s232 = sand.u32 %s43, 1
        %s233 = sand.u32 %s43, 1
        %s234 = smul.addr %s233, 288
        %s235 = scalar_lea.vmem [#allocation2], %s234
        // Predicated region
        $region52: #{_lambda_.19} parent=50 // pred_check
          %p236 = pneg %p56
        $region53: #{_lambda_.19} parent=50 // pred_check_branch
          %238 = sbr.rel (%p236) target = $region55
        $region54: #{_lambda_.19} parent=50 // pred_region
          _
        $region55: #{_lambda_.19} parent=50 // pred_fallthru
          _
        %p239 = pneg %p30
        %p240 = pneg %p27
        %s241 = sand.u32 %s43, 1
        %s242 = sand.u32 %s43, 1
        %s243 = smul.addr %s242, 288
        %s244 = scalar_lea.vmem [#allocation2], %s243
        %p245 = pneg %p56
        %p246 = pneg %p53
        %p247 = pneg %p77
        %p248 = pneg %p74
        %p249 = pneg %p103
        %p250 = pneg %p100
        %s251 = smul.u32 8, %s14
        %p252 = scmp.lt.s32.totalorder %s251, 63
        %s253 = scalar_select %p252, %s251, 63
        %s254 = smul.addr %s253, 8
        %s255 = scalar_lea.vmem %s3, %s254
        %s256 = smul.u32 8, %s14
        %s257 = smul.u32 8, %s14
        %p258 = scmp.lt.s32.totalorder %s257, 63
        %s259 = scalar_select %p258, %s257, 63
        %s260 = smul.addr %s259, 8
        %s261 = scalar_lea.vmem %s3, %s260
        %s262 = smul.u32 8, %s14
        %v264 = vld [vmem:[%s0] sm:$0xf]
        %v265 = vld [vmem:[%s235] sm:$0xff]
        %v266 = vld [vmem:[%s235 + $0x8] sm:$0xff]
        %v267 = vld [vmem:[%s235 + $0x10] sm:$0xff]
        %v268 = vld [vmem:[%s235 + $0x18] sm:$0xff]
        %v269 = vld [vmem:[%s235 + $0x20] sm:$0xff]
        %v270 = vld [vmem:[%s235 + $0x28] sm:$0xff]
        %v271 = vld [vmem:[%s235 + $0x30] sm:$0xff]
        %v272 = vld [vmem:[%s235 + $0x38] sm:$0xff]
        %v273 = vld [vmem:[%s235 + $0x40] sm:$0xff]
        %v274 = vld [vmem:[%s235 + $0x48] sm:$0xff]
        %v275 = vld [vmem:[%s235 + $0x50] sm:$0xff]
        %v276 = vld [vmem:[%s235 + $0x58] sm:$0xff]
        %v277 = vld [vmem:[%s235 + $0x60] sm:$0xff]
        %v278 = vld [vmem:[%s235 + $0x68] sm:$0xff]
        %v279 = vld [vmem:[%s235 + $0x70] sm:$0xff]
        %v280 = vld [vmem:[%s235 + $0x78] sm:$0xff]
        %v281 = vld [vmem:[%s235 + $0x80] sm:$0xff]
        %v282 = vld [vmem:[%s235 + $0x88] sm:$0xff]
        %v283 = vld [vmem:[%s235 + $0x90] sm:$0xff]
        %v284 = vld [vmem:[%s235 + $0x98] sm:$0xff]
        %v285 = vld [vmem:[%s235 + $0xa0] sm:$0xff]
        %v286 = vld [vmem:[%s235 + $0xa8] sm:$0xff]
        %v287 = vld [vmem:[%s235 + $0xb0] sm:$0xff]
        %v288 = vld [vmem:[%s235 + $0xb8] sm:$0xff]
        %v289 = vld [vmem:[%s235 + $0xc0] sm:$0xff]
        %v290 = vld [vmem:[%s235 + $0xc8] sm:$0xff]
        %v291 = vld [vmem:[%s235 + $0xd0] sm:$0xff]
        %v292 = vld [vmem:[%s235 + $0xd8] sm:$0xff]
        %v293 = vld [vmem:[%s235 + $0xe0] sm:$0xff]
        %v294 = vld [vmem:[%s235 + $0xe8] sm:$0xff]
        %v295 = vld [vmem:[%s235 + $0xf0] sm:$0xff]
        %v296 = vld [vmem:[%s235 + $0xf8] sm:$0xff]
        %v297 = vld [vmem:[%s235 + $0x100] sm:$0xff]
        %v298 = vld [vmem:[%s235 + $0x108] sm:$0xff]
        %v299 = vld [vmem:[%s235 + $0x110] sm:$0xff]
        %v300 = vld [vmem:[%s235 + $0x118] sm:$0xff]
        %v301 = vld [vmem:[%s2] sm:$0xff]
        %303 = vset.pattern.permute.xlu0 0
        %304 = vperm.xlu0 %303, %v301
        %v305 = vpop.permute.xlu0 %304
        %v343 = vunpack.c.l.b16 %v265
        %v344 = vunpack.c.h.b16 %v265
        %v345 = vunpack.c.l.b16 %v266
        %v346 = vunpack.c.h.b16 %v266
        %v347 = vunpack.c.l.b16 %v267
        %v348 = vunpack.c.h.b16 %v267
        %v349 = vunpack.c.l.b16 %v268
        %v350 = vunpack.c.h.b16 %v268
        %v351 = vunpack.c.l.b16 %v269
        %v352 = vunpack.c.h.b16 %v269
        %v353 = vunpack.c.l.b16 %v270
        %v354 = vunpack.c.h.b16 %v270
        %v355 = vunpack.c.l.b16 %v271
        %v356 = vunpack.c.h.b16 %v271
        %v357 = vunpack.c.l.b16 %v272
        %v358 = vunpack.c.h.b16 %v272
        %v359 = vunpack.c.l.b16 %v273
        %v360 = vunpack.c.h.b16 %v273
        %v361 = vunpack.c.l.b16 %v274
        %v362 = vunpack.c.h.b16 %v274
        %v363 = vunpack.c.l.b16 %v275
        %v364 = vunpack.c.h.b16 %v275
        %v365 = vunpack.c.l.b16 %v276
        %v366 = vunpack.c.h.b16 %v276
        %v367 = vunpack.c.l.b16 %v277
        %v368 = vunpack.c.h.b16 %v277
        %v369 = vunpack.c.l.b16 %v278
        %v370 = vunpack.c.h.b16 %v278
        %v371 = vunpack.c.l.b16 %v279
        %v372 = vunpack.c.h.b16 %v279
        %v373 = vunpack.c.l.b16 %v280
        %v374 = vunpack.c.h.b16 %v280
        %v375 = vunpack.c.l.b16 %v281
        %v376 = vunpack.c.h.b16 %v281
        %v377 = vunpack.c.l.b16 %v282
        %v378 = vunpack.c.h.b16 %v282
        %v379 = vunpack.c.l.b16 %v283
        %v380 = vunpack.c.h.b16 %v283
        %v381 = vunpack.c.l.b16 %v284
        %v382 = vunpack.c.h.b16 %v284
        %v383 = vunpack.c.l.b16 %v285
        %v384 = vunpack.c.h.b16 %v285
        %v385 = vunpack.c.l.b16 %v286
        %v386 = vunpack.c.h.b16 %v286
        %v387 = vunpack.c.l.b16 %v287
        %v388 = vunpack.c.h.b16 %v287
        %v389 = vunpack.c.l.b16 %v288
        %v390 = vunpack.c.h.b16 %v288
        %v391 = vunpack.c.l.b16 %v289
        %v392 = vunpack.c.h.b16 %v289
        %v393 = vunpack.c.l.b16 %v290
        %v394 = vunpack.c.h.b16 %v290
        %v395 = vunpack.c.l.b16 %v291
        %v396 = vunpack.c.h.b16 %v291
        %v397 = vunpack.c.l.b16 %v292
        %v398 = vunpack.c.h.b16 %v292
        %v399 = vunpack.c.l.b16 %v293
        %v400 = vunpack.c.h.b16 %v293
        %v401 = vunpack.c.l.b16 %v294
        %v402 = vunpack.c.h.b16 %v294
        %v403 = vunpack.c.l.b16 %v295
        %v404 = vunpack.c.h.b16 %v295
        %v405 = vunpack.c.l.b16 %v296
        %v406 = vunpack.c.h.b16 %v296
        %v407 = vunpack.c.l.b16 %v297
        %v408 = vunpack.c.h.b16 %v297
        %v409 = vunpack.c.l.b16 %v298
        %v410 = vunpack.c.h.b16 %v298
        %v411 = vunpack.c.l.b16 %v299
        %v412 = vunpack.c.h.b16 %v299
        %v413 = vunpack.c.l.b16 %v300
        %v414 = vunpack.c.h.b16 %v300
        %v415 = vpack.c.b16 %v351, %v343
        %v416 = vpack.c.b16 %v352, %v344
        %v417 = vpack.c.b16 %v353, %v345
        %v418 = vpack.c.b16 %v354, %v346
        %v419 = vpack.c.b16 %v355, %v347
        %v420 = vpack.c.b16 %v356, %v348
        %v421 = vpack.c.b16 %v357, %v349
        %v422 = vpack.c.b16 %v358, %v350
        %v423 = vpack.c.b16 %v367, %v359
        %v424 = vpack.c.b16 %v368, %v360
        %v425 = vpack.c.b16 %v369, %v361
        %v426 = vpack.c.b16 %v370, %v362
        %v427 = vpack.c.b16 %v371, %v363
        %v428 = vpack.c.b16 %v372, %v364
        %v429 = vpack.c.b16 %v373, %v365
        %v430 = vpack.c.b16 %v374, %v366
        %v431 = vpack.c.b16 %v383, %v375
        %v432 = vpack.c.b16 %v384, %v376
        %v433 = vpack.c.b16 %v385, %v377
        %v434 = vpack.c.b16 %v386, %v378
        %v435 = vpack.c.b16 %v387, %v379
        %v436 = vpack.c.b16 %v388, %v380
        %v437 = vpack.c.b16 %v389, %v381
        %v438 = vpack.c.b16 %v390, %v382
        %v439 = vpack.c.b16 %v399, %v391
        %v440 = vpack.c.b16 %v400, %v392
        %v441 = vpack.c.b16 %v401, %v393
        %v442 = vpack.c.b16 %v402, %v394
        %v443 = vpack.c.b16 %v403, %v395
        %v444 = vpack.c.b16 %v404, %v396
        %v445 = vpack.c.b16 %v405, %v397
        %v446 = vpack.c.b16 %v406, %v398
        %v447 = vpack.c.b16 %v407, %v407
        %v448 = vpack.c.b16 %v408, %v408
        %v449 = vpack.c.b16 %v409, %v409
        %v450 = vpack.c.b16 %v410, %v410
        %v451 = vpack.c.b16 %v411, %v411
        %v452 = vpack.c.b16 %v412, %v412
        %v453 = vpack.c.b16 %v413, %v413
        %v454 = vpack.c.b16 %v414, %v414
        %vm487 = vcmask 588800
        %v489 = vsel %vm487, %v264, 0
        %vm491 = vcmask 1043456
        %v493 = vsel %vm491, %v447, 0
        %v496 = vsel %vm491, %v448, 0
        %v499 = vsel %vm491, %v449, 0
        %v502 = vsel %vm491, %v450, 0
        %v505 = vsel %vm491, %v451, 0
        %v508 = vsel %vm491, %v452, 0
        %v511 = vsel %vm491, %v453, 0
        %v514 = vsel %vm491, %v454, 0
        %516 = vmatprep.subr.bf16.mxu0 %v416
        %517 = vmatpush1.bf16.msra.mxu0 %v415
        %518 = vmatprep.subr.bf16.mxu0 %v424
        %519 = vmatpush1.bf16.msra.mxu0 %v423
        %520 = vmatprep.subr.bf16.mxu0 %v432
        %521 = vmatpush1.bf16.msra.mxu0 %v431
        %522 = vmatprep.subr.bf16.mxu0 %v440
        %523 = vmatpush1.bf16.msra.mxu0 %v439
        %524 = vmatprep.subr.bf16.mxu0 %v496
        %525 = vmatpush1.bf16.msra.mxu0 %v493
        %526 = vmatprep.subr.bf16.mxu0 0
        %527 = vmatpush1.bf16.msra.mxu0 0
        %528 = vmatprep.subr.bf16.mxu0 0
        %529 = vmatpush1.bf16.msra.mxu0 0
        %530 = vmatprep.subr.bf16.mxu0 0
        %531 = vmatpush1.bf16.msra.mxu0 0
        %532 = vmatprep.subr.bf16.mxu0 0
        %533 = vmatpush1.bf16.msra.mxu0 0
        %534 = vmatprep.subr.bf16.mxu0 0
        %535 = vmatpush1.bf16.msra.mxu0 0
        %536 = vmatprep.subr.bf16.mxu0 0
        %537 = vmatpush1.bf16.msra.mxu0 0
        %538 = vmatprep.subr.bf16.mxu0 0
        %539 = vmatpush1.bf16.msra.mxu0 0
        %540 = vmatprep.subr.bf16.mxu0 0
        %541 = vmatpush1.bf16.msra.mxu0 0
        %542 = vmatprep.subr.bf16.mxu0 0
        %543 = vmatpush1.bf16.msra.mxu0 0
        %544 = vmatprep.subr.bf16.mxu0 0
        %545 = vmatpush1.bf16.msra.mxu0 0
        %546 = vmatprep.subr.bf16.mxu0 0
        %547 = vmatpush1.bf16.msra.mxu0 0
        %548 = vmatprep.mubr.bf16.mxu0 0
        %549 = vmatmul.mubr.bf16.gmra.mrb[0].mxu0 %v489
        %v550 = vpop.f32.mrb[0].mxu0
        %v551 = vadd.f32 %v305, %v550
        %v552 = vpop.f32.mrb[0].mxu0
        %v553 = vadd.f32 %v305, %v552
        %v554 = vpop.f32.mrb[0].mxu0
        %v555 = vpop.f32.mrb[0].mxu0
        %556 = vdwg.mxu0
        %557 = vmatprep.subr.bf16.mxu0 %v418
        %558 = vmatpush1.bf16.msra.mxu0 %v417
        %559 = vmatprep.subr.bf16.mxu0 %v426
        %560 = vmatpush1.bf16.msra.mxu0 %v425
        %561 = vmatprep.subr.bf16.mxu0 %v434
        %562 = vmatpush1.bf16.msra.mxu0 %v433
        %563 = vmatprep.subr.bf16.mxu0 %v442
        %564 = vmatpush1.bf16.msra.mxu0 %v441
        %565 = vmatprep.subr.bf16.mxu0 %v502
        %566 = vmatpush1.bf16.msra.mxu0 %v499
        %567 = vmatprep.subr.bf16.mxu0 0
        %568 = vmatpush1.bf16.msra.mxu0 0
        %569 = vmatprep.subr.bf16.mxu0 0
        %570 = vmatpush1.bf16.msra.mxu0 0
        %571 = vmatprep.subr.bf16.mxu0 0
        %572 = vmatpush1.bf16.msra.mxu0 0
        %573 = vmatprep.subr.bf16.mxu0 0
        %574 = vmatpush1.bf16.msra.mxu0 0
        %575 = vmatprep.subr.bf16.mxu0 0
        %576 = vmatpush1.bf16.msra.mxu0 0
        %577 = vmatprep.subr.bf16.mxu0 0
        %578 = vmatpush1.bf16.msra.mxu0 0
        %579 = vmatprep.subr.bf16.mxu0 0
        %580 = vmatpush1.bf16.msra.mxu0 0
        %581 = vmatprep.subr.bf16.mxu0 0
        %582 = vmatpush1.bf16.msra.mxu0 0
        %583 = vmatprep.subr.bf16.mxu0 0
        %584 = vmatpush1.bf16.msra.mxu0 0
        %585 = vmatprep.subr.bf16.mxu0 0
        %586 = vmatpush1.bf16.msra.mxu0 0
        %587 = vmatprep.subr.bf16.mxu0 0
        %588 = vmatpush1.bf16.msra.mxu0 0
        %589 = vmatprep.mubr.bf16.mxu0 0
        %590 = vmatmul.mubr.bf16.gmra.mrb[0].mxu0 %v489
        %v591 = vpop.f32.mrb[0].mxu0
        %v592 = vadd.f32 %v305, %v591
        %v593 = vpop.f32.mrb[0].mxu0
        %v594 = vadd.f32 %v305, %v593
        %v595 = vpop.f32.mrb[0].mxu0
        %v596 = vpop.f32.mrb[0].mxu0
        %597 = vdwg.mxu0
        %598 = vmatprep.subr.bf16.mxu0 %v420
        %599 = vmatpush1.bf16.msra.mxu0 %v419
        %600 = vmatprep.subr.bf16.mxu0 %v428
        %601 = vmatpush1.bf16.msra.mxu0 %v427
        %602 = vmatprep.subr.bf16.mxu0 %v436
        %603 = vmatpush1.bf16.msra.mxu0 %v435
        %604 = vmatprep.subr.bf16.mxu0 %v444
        %605 = vmatpush1.bf16.msra.mxu0 %v443
        %606 = vmatprep.subr.bf16.mxu0 %v508
        %607 = vmatpush1.bf16.msra.mxu0 %v505
        %608 = vmatprep.subr.bf16.mxu0 0
        %609 = vmatpush1.bf16.msra.mxu0 0
        %610 = vmatprep.subr.bf16.mxu0 0
        %611 = vmatpush1.bf16.msra.mxu0 0
        %612 = vmatprep.subr.bf16.mxu0 0
        %613 = vmatpush1.bf16.msra.mxu0 0
        %614 = vmatprep.subr.bf16.mxu0 0
        %615 = vmatpush1.bf16.msra.mxu0 0
        %616 = vmatprep.subr.bf16.mxu0 0
        %617 = vmatpush1.bf16.msra.mxu0 0
        %618 = vmatprep.subr.bf16.mxu0 0
        %619 = vmatpush1.bf16.msra.mxu0 0
        %620 = vmatprep.subr.bf16.mxu0 0
        %621 = vmatpush1.bf16.msra.mxu0 0
        %622 = vmatprep.subr.bf16.mxu0 0
        %623 = vmatpush1.bf16.msra.mxu0 0
        %624 = vmatprep.subr.bf16.mxu0 0
        %625 = vmatpush1.bf16.msra.mxu0 0
        %626 = vmatprep.subr.bf16.mxu0 0
        %627 = vmatpush1.bf16.msra.mxu0 0
        %628 = vmatprep.subr.bf16.mxu0 0
        %629 = vmatpush1.bf16.msra.mxu0 0
        %630 = vmatprep.mubr.bf16.mxu0 0
        %631 = vmatmul.mubr.bf16.gmra.mrb[0].mxu0 %v489
        %v632 = vpop.f32.mrb[0].mxu0
        %v633 = vadd.f32 %v305, %v632
        %v634 = vpop.f32.mrb[0].mxu0
        %v635 = vadd.f32 %v305, %v634
        %v636 = vpop.f32.mrb[0].mxu0
        %v637 = vpop.f32.mrb[0].mxu0
        %638 = vdwg.mxu0
        %639 = vmatprep.subr.bf16.mxu0 %v422
        %640 = vmatpush1.bf16.msra.mxu0 %v421
        %641 = vmatprep.subr.bf16.mxu0 %v430
        %642 = vmatpush1.bf16.msra.mxu0 %v429
        %643 = vmatprep.subr.bf16.mxu0 %v438
        %644 = vmatpush1.bf16.msra.mxu0 %v437
        %645 = vmatprep.subr.bf16.mxu0 %v446
        %646 = vmatpush1.bf16.msra.mxu0 %v445
        %647 = vmatprep.subr.bf16.mxu0 %v514
        %648 = vmatpush1.bf16.msra.mxu0 %v511
        %649 = vmatprep.subr.bf16.mxu0 0
        %650 = vmatpush1.bf16.msra.mxu0 0
        %651 = vmatprep.subr.bf16.mxu0 0
        %652 = vmatpush1.bf16.msra.mxu0 0
        %653 = vmatprep.subr.bf16.mxu0 0
        %654 = vmatpush1.bf16.msra.mxu0 0
        %655 = vmatprep.subr.bf16.mxu0 0
        %656 = vmatpush1.bf16.msra.mxu0 0
        %657 = vmatprep.subr.bf16.mxu0 0
        %658 = vmatpush1.bf16.msra.mxu0 0
        %659 = vmatprep.subr.bf16.mxu0 0
        %660 = vmatpush1.bf16.msra.mxu0 0
        %661 = vmatprep.subr.bf16.mxu0 0
        %662 = vmatpush1.bf16.msra.mxu0 0
        %663 = vmatprep.subr.bf16.mxu0 0
        %664 = vmatpush1.bf16.msra.mxu0 0
        %665 = vmatprep.subr.bf16.mxu0 0
        %666 = vmatpush1.bf16.msra.mxu0 0
        %667 = vmatprep.subr.bf16.mxu0 0
        %668 = vmatpush1.bf16.msra.mxu0 0
        %669 = vmatprep.subr.bf16.mxu0 0
        %670 = vmatpush1.bf16.msra.mxu0 0
        %671 = vmatprep.mubr.bf16.mxu0 0
        %672 = vmatmul.mubr.bf16.gmra.mrb[0].mxu0 %v489
        %v673 = vpop.f32.mrb[0].mxu0
        %v674 = vadd.f32 %v305, %v673
        %v675 = vpop.f32.mrb[0].mxu0
        %v676 = vadd.f32 %v305, %v675
        %v677 = vpop.f32.mrb[0].mxu0
        %v678 = vpop.f32.mrb[0].mxu0
        %679 = vdwg.mxu0
        %680 = vst [vmem:[%s261] sm:$0xff] %v551
        %681 = vst [vmem:[%s261 + $0x8] sm:$0xff] %v553
        %682 = vst [vmem:[%s261 + $0x10] sm:$0xff] %v592
        %683 = vst [vmem:[%s261 + $0x18] sm:$0xff] %v594
        %684 = vst [vmem:[%s261 + $0x20] sm:$0xff] %v633
        %685 = vst [vmem:[%s261 + $0x28] sm:$0xff] %v635
        %686 = vst [vmem:[%s261 + $0x30] sm:$0xff] %v674
        %687 = vst [vmem:[%s261 + $0x38] sm:$0xff] %v676
        %s688 = smul.u32 8, %s14
        %p689 = scmp.lt.s32.totalorder %s688, 63
        %s690 = scalar_select %p689, %s688, 63
        %s691 = smul.addr %s690, 8
        %s692 = scalar_lea.vmem %s3, %s691
        // Predicated region
        $region56: #{_lambda_.19} parent=50 // pred_check
          %p693 = pneg %p100
        $region57: #{_lambda_.19} parent=50 // pred_check_branch
          %695 = sbr.rel (%p693) target = $region59
        $region58: #{_lambda_.19} parent=50 // pred_region
          %s696 = smul.u32 8, %s14
        $region59: #{_lambda_.19} parent=50 // pred_fallthru
          _
      $region51: #{_lambda_.19} parent=5 // pred_fallthru
        _
      %p697 = scmp.le.s32.totalorder 2, %s9
      // Predicated region
      $region60: #{_lambda_.19} parent=5 // pred_check
        %p698 = pneg %p697
      $region61: #{_lambda_.19} parent=5 // pred_check_branch
        %700 = sbr.rel (%p698) target = $region63
      $region62: #{_lambda_.19} parent=5 // pred_region
        %s701 = ssub.s32 %s9, 2
        // Predicated region
        $region64: #{_lambda_.19} parent=62 // pred_check
          %p702 = pneg %p106
        $region65: #{_lambda_.19} parent=62 // pred_check_branch
          %704 = sbr.rel (%p702) target = $region67
        $region66: #{_lambda_.19} parent=62 // pred_region
          %s705 = smul.u32 8, %s15
          %p706 = scmp.lt.s32.totalorder %s705, 63
          %s707 = scalar_select %p706, %s705, 63
          %s708 = smul.addr %s707, 8
          %s709 = scalar_lea.vmem %s3, %s708
        $region67: #{_lambda_.19} parent=62 // pred_fallthru
          _
      $region63: #{_lambda_.19} parent=5 // pred_fallthru
        _
    $region6: #{_lambda_.19} parent=1 // loop_footer
      %s13 = sadd.s32 1, %s9
    $region7: #{_lambda_.19} parent=1 // loop_footer_branch
      %8 = sbr.rel target = $region3
    $region8: #{_lambda_.19} parent=1 // loop_exit
      _

</llo_original>
